<compile_context>
chip_gen: v7x
topology: tpu7x:2x2x1
jax: 0.10.0
libtpu: 0.0.40
codegen_flags: <defaults>
</compile_context>

<pallas_src>
import functools

import jax
import jax.numpy as jnp
import numpy as np
from jax.experimental import pallas as pl
from jax.experimental.pallas import tpu as pltpu


PARAM_ORDER = ("dil_lr", "loc_lr", "mid_w", "mid_b",
               "gf_w", "gf_b", "proj_w", "proj_b")


def _dilated_block_kernel(n_layers, d_pad,
                          x_ref,
                          dil_lr_ref, loc_lr_ref, mid_w_ref, mid_b_ref,
                          gf_w_ref, gf_b_ref, proj_w_ref, proj_b_ref,
                          out_ref,
                          pad_ref):
    L, C = x_ref.shape[1], x_ref.shape[2]
    cdt = pad_ref.dtype                    # MXU operand dtype (bf16 or f32)

    # Zero the padded shift buffer once.  Only the interior [d_pad, d_pad + L)
    # is ever written afterwards, so the halo stays zero and provides the
    # "same"-padding for every shifted view (correct even when dilation > L).
    pad_ref[...] = jnp.zeros_like(pad_ref)

    def mm(a, b):
        return jnp.dot(a, b, preferred_element_type=jnp.float32)

    h = x_ref[0].astype(jnp.float32)       # (L, C) residual stream (f32)
    skip = jnp.zeros((L, C), jnp.float32)

    for i in range(n_layers):              # static unroll over layers
        d = 3 ** i

        # ---- y = dil_conv(h) + local_conv(h) + direct_conv(h) --------------
        h_c = h.astype(cdt)
        pad_ref[pl.ds(d_pad, L), :] = h_c
        left1 = pad_ref[pl.ds(d_pad - 1, L), :]    # h[t-1] ("same"-padded)
        right1 = pad_ref[pl.ds(d_pad + 1, L), :]   # h[t+1]

        if d == 1:
            # dilated and local convs coincide for layer 0: fold side taps too.
            w_l = dil_lr_ref[i, 0] + loc_lr_ref[i, 0]
            w_r = dil_lr_ref[i, 1] + loc_lr_ref[i, 1]
            y = mm(left1, w_l) + mm(right1, w_r)
        else:
            left_d = pad_ref[pl.ds(d_pad - d, L), :]
            right_d = pad_ref[pl.ds(d_pad + d, L), :]
            y = (mm(left_d, dil_lr_ref[i, 0]) + mm(right_d, dil_lr_ref[i, 1])
                 + mm(left1, loc_lr_ref[i, 0]) + mm(right1, loc_lr_ref[i, 1]))
        # fused center tap (dil center + local center + direct 1x1) + biases
        y = y + mm(h_c, mid_w_ref[i]) + mid_b_ref[pl.ds(i, 1), :]

        # ---- gated activation: one fused (3, C, 2C) conv --------------------
        y_c = y.astype(cdt)
        pad_ref[pl.ds(d_pad, L), :] = y_c
        gl = pad_ref[pl.ds(d_pad - 1, L), :]
        gr = pad_ref[pl.ds(d_pad + 1, L), :]
        gf = (mm(gl, gf_w_ref[i, 0]) + mm(y_c, gf_w_ref[i, 1])
              + mm(gr, gf_w_ref[i, 2]) + gf_b_ref[pl.ds(i, 1), :])
        act = jax.nn.sigmoid(gf[:, :C]) * jnp.tanh(gf[:, C:])

        # ---- 1x1 projection, residual + skip --------------------------------
        y2 = mm(act.astype(cdt), proj_w_ref[i]) + proj_b_ref[pl.ds(i, 1), :]
        h = h + y2
        skip = skip + y2

    out_ref[0] = skip.astype(out_ref.dtype)


def dilated_block_pallas(x_ncl, kparams, n_layers):
    """x_ncl: (N, C, L) float32 (PyTorch Conv1d layout). Returns skip sum (N, C, L)."""
    N, C, L = x_ncl.shape
    x_nlc = jnp.transpose(x_ncl, (0, 2, 1))        # -> (N, L, C)

    d_max = 3 ** (n_layers - 1)
    d_pad = ((d_max + 7) // 8) * 8                 # sublane-aligned halo

    weight_args = [kparams[k] for k in PARAM_ORDER]
    cdt = kparams["mid_w"].dtype                   # compute (MXU operand) dtype

    in_specs = [pl.BlockSpec((1, L, C), lambda n: (n, 0, 0))]
    for a in weight_args:
        # Grid-invariant blocks: whole tensor, same block for every grid step.
        # TODO(synk): pipeline_mode=pl.Buffered(1) would drop the redundant
        # double-buffer for these constant blocks; left off for compatibility.
        in_specs.append(pl.BlockSpec(a.shape, lambda n, nd=a.ndim: (0,) * nd))

    # Advisory cost estimate so XLA schedules neighbouring ops sensibly.
    y_mms = sum(3 if i == 0 else 5 for i in range(n_layers))
    flops = int(2 * N * L * C * C * (y_mms + 7 * n_layers))  # gf(3x 2C) + proj
    transcendentals = int(2 * N * L * C * n_layers)
    bytes_accessed = int(2 * x_nlc.size * x_nlc.dtype.itemsize
                         + sum(a.size * a.dtype.itemsize for a in weight_args))

    out = pl.pallas_call(
        functools.partial(_dilated_block_kernel, n_layers, d_pad),
        out_shape=jax.ShapeDtypeStruct((N, L, C), jnp.float32),
        grid_spec=pltpu.PrefetchScalarGridSpec(
            num_scalar_prefetch=0,
            grid=(N,),
            in_specs=in_specs,
            out_specs=pl.BlockSpec((1, L, C), lambda n: (n, 0, 0)),
            scratch_shapes=[pltpu.VMEM((L + 2 * d_pad, C), cdt)],
        ),
        compiler_params=pltpu.CompilerParams(dimension_semantics=("parallel",)),
        cost_estimate=pl.CostEstimate(flops=flops,
                                      transcendentals=transcendentals,
                                      bytes_accessed=bytes_accessed),
    )(x_nlc, *weight_args)
    # TODO(synk): for long-audio L on v7x (64 MiB VMEM), add a second
    # "parallel" grid axis that tiles L with a sum_i(3^i + 3) halo per side.
    return jnp.transpose(out, (0, 2, 1))           # back to (N, C, L)


# ---------------- parameter preparation (wrapper-side constant folding) --------

def prepare_kernel_params(torch_params, weight_dtype=jnp.bfloat16):
    """Fold/concat PyTorch-layout conv weights into the kernel's fused layout."""
    def t3(w):   # (Cout, Cin, 3) -> (3, Cin, Cout);  out[t] = w0 x[t-d] + w1 x[t] + w2 x[t+d]
        return jnp.transpose(w, (2, 1, 0))

    dil_lr, loc_lr, mid_w, mid_b = [], [], [], []
    gf_w, gf_b, proj_w, proj_b = [], [], [], []
    for p in torch_params:
        dw, lw = t3(p["dil_w"]), t3(p["local_w"])
        drw = p["direct_w"][:, :, 0].T                 # (Cin, Cout)
        dil_lr.append(jnp.stack([dw[0], dw[2]]))       # side taps of dilated conv
        loc_lr.append(jnp.stack([lw[0], lw[2]]))       # side taps of local conv
        mid_w.append(dw[1] + lw[1] + drw)              # fused center tap + 1x1
        mid_b.append(p["dil_b"] + p["local_b"] + p["direct_b"])
        gw, fw = t3(p["gate_w"]), t3(p["filter_w"])
        gf_w.append(jnp.concatenate([gw, fw], axis=-1))          # (3, Cin, 2C)
        gf_b.append(jnp.concatenate([p["gate_b"], p["filter_b"]]))
        proj_w.append(p["proj_w"][:, :, 0].T)
        proj_b.append(p["proj_b"])

    wd = weight_dtype
    return dict(
        dil_lr=jnp.stack(dil_lr).astype(wd),
        loc_lr=jnp.stack(loc_lr).astype(wd),
        mid_w=jnp.stack(mid_w).astype(wd),
        mid_b=jnp.stack(mid_b).astype(jnp.float32),
        gf_w=jnp.stack(gf_w).astype(wd),
        gf_b=jnp.stack(gf_b).astype(jnp.float32),
        proj_w=jnp.stack(proj_w).astype(wd),
        proj_b=jnp.stack(proj_b).astype(jnp.float32),
    )


# ---------------- pure-JAX reference (mirrors the PyTorch forward) -------------

def _conv1d_ref(x, w, b, padding, dilation):
    # x: (N, C, L), w: (Cout, Cin, K)  — PyTorch Conv1d semantics.
    out = jax.lax.conv_general_dilated(
        x, w, window_strides=(1,), padding=[(padding, padding)],
        rhs_dilation=(dilation,), dimension_numbers=("NCH", "OIH", "NCH"))
    return out + b[None, :, None]


def dilated_block_ref(x, torch_params):
    y = jnp.zeros_like(x)
    for i, p in enumerate(torch_params):
        d = 3 ** i
        t = (_conv1d_ref(x, p["dil_w"], p["dil_b"], d, d)
             + _conv1d_ref(x, p["local_w"], p["local_b"], 1, 1)
             + _conv1d_ref(x, p["direct_w"], p["direct_b"], 0, 1))
        g = _conv1d_ref(t, p["gate_w"], p["gate_b"], 1, 1)
        f = _conv1d_ref(t, p["filter_w"], p["filter_b"], 1, 1)
        t = jax.nn.sigmoid(g) * jnp.tanh(f)
        t = _conv1d_ref(t, p["proj_w"], p["proj_b"], 0, 1)
        x = x + t
        y = y + t
    return y


# ---------------- deterministic parameter construction -------------------------

def make_params(key, hidden, n_layers):
    keys = jax.random.split(key, n_layers * 12)
    idx = [0]

    def nxt(shape, fan_in):
        k = keys[idx[0]]
        idx[0] += 1
        return (fan_in ** -0.5) * jax.random.normal(k, shape, jnp.float32)

    torch_params = []
    for _ in range(n_layers):
        C = hidden
        torch_params.append(dict(
            dil_w=nxt((C, C, 3), 3 * C), dil_b=nxt((C,), 3 * C),
            local_w=nxt((C, C, 3), 3 * C), local_b=nxt((C,), 3 * C),
            direct_w=nxt((C, C, 1), C), direct_b=nxt((C,), C),
            gate_w=nxt((C, C, 3), 3 * C), gate_b=nxt((C,), 3 * C),
            filter_w=nxt((C, C, 3), 3 * C), filter_b=nxt((C,), 3 * C),
            proj_w=nxt((C, C, 1), C), proj_b=nxt((C,), C),
        ))
    return torch_params


if __name__ == "__main__":
    N, C, L, n_layers = 2, 32, 64, 3   # dilations 1, 3, 9
    key = jax.random.PRNGKey(0)
    kx, kp = jax.random.split(key)
    x = jax.random.normal(kx, (N, C, L), jnp.float32)

    torch_params = make_params(kp, C, n_layers)
    ref = jax.block_until_ready(dilated_block_ref(x, torch_params))

    # f32-operand path: strict semantics check against the conv reference.
    kparams_f32 = prepare_kernel_params(torch_params, jnp.float32)
    out_f32 = jax.block_until_ready(dilated_block_pallas(x, kparams_f32, n_layers))
    np.testing.assert_allclose(np.asarray(out_f32), np.asarray(ref),
                               rtol=2e-3, atol=2e-3)

    # bf16-operand path (the performance configuration, f32 accumulation):
    # looser tolerance accounts for bf16 matmul inputs.
    kparams_bf16 = prepare_kernel_params(torch_params, jnp.bfloat16)
    out_bf16 = jax.block_until_ready(dilated_block_pallas(x, kparams_bf16, n_layers))
    np.testing.assert_allclose(np.asarray(out_bf16), np.asarray(ref),
                               rtol=5e-2, atol=5e-2)

    print("KERNEL_OK")
</pallas_src>

<mosaic_0001>
module attributes {stable_mosaic.version = 11 : i64} {
  func.func @_dilated_block_kernel(%arg0: i32, %arg1: memref<1x64x32xf32, #tpu.memory_space<vmem>>, %arg2: memref<3x2x32x32xf32, #tpu.memory_space<vmem>>, %arg3: memref<3x2x32x32xf32, #tpu.memory_space<vmem>>, %arg4: memref<3x32x32xf32, #tpu.memory_space<vmem>>, %arg5: memref<3x32xf32, #tpu.memory_space<vmem>>, %arg6: memref<3x3x32x64xf32, #tpu.memory_space<vmem>>, %arg7: memref<3x64xf32, #tpu.memory_space<vmem>>, %arg8: memref<3x32x32xf32, #tpu.memory_space<vmem>>, %arg9: memref<3x32xf32, #tpu.memory_space<vmem>>, %arg10: memref<1x64x32xf32, #tpu.memory_space<vmem>>, %arg11: memref<96x32xf32, #tpu.memory_space<vmem>>) attributes {dimension_semantics = [#tpu.dimension_semantics<parallel>], iteration_bounds = array<i64: 2>, scalar_prefetch = 0 : i64, scratch_operands = 1 : i64, tpu.core_type = #tpu.core_type<tc>, window_params = [{transform_indices = @transform_0, window_bounds = array<i64: 1, 64, 32>}, {pipeline_mode = #tpu.pipeline_mode<synchronous>, transform_indices = @transform_1, window_bounds = array<i64: 3, 2, 32, 32>}, {pipeline_mode = #tpu.pipeline_mode<synchronous>, transform_indices = @transform_2, window_bounds = array<i64: 3, 2, 32, 32>}, {pipeline_mode = #tpu.pipeline_mode<synchronous>, transform_indices = @transform_3, window_bounds = array<i64: 3, 32, 32>}, {pipeline_mode = #tpu.pipeline_mode<synchronous>, transform_indices = @transform_4, window_bounds = array<i64: 3, 32>}, {pipeline_mode = #tpu.pipeline_mode<synchronous>, transform_indices = @transform_5, window_bounds = array<i64: 3, 3, 32, 64>}, {pipeline_mode = #tpu.pipeline_mode<synchronous>, transform_indices = @transform_6, window_bounds = array<i64: 3, 64>}, {pipeline_mode = #tpu.pipeline_mode<synchronous>, transform_indices = @transform_7, window_bounds = array<i64: 3, 32, 32>}, {pipeline_mode = #tpu.pipeline_mode<synchronous>, transform_indices = @transform_8, window_bounds = array<i64: 3, 32>}, {transform_indices = @transform_9, window_bounds = array<i64: 1, 64, 32>}]} {
    %cst = arith.constant 0.000000e+00 : f32
    %0 = vector.broadcast %cst : f32 to vector<96x32xf32>
    %c0 = arith.constant 0 : index
    %c0_0 = arith.constant 0 : index
    %1 = vector.load %arg11[%c0, %c0_0] : memref<96x32xf32, #tpu.memory_space<vmem>>, vector<96x32xf32>
    tpu.vector_store %arg11[%c0, %c0_0], %0 {strides = array<i32>} : memref<96x32xf32, #tpu.memory_space<vmem>>, vector<96x32xf32>,
    %c0_1 = arith.constant 0 : index
    %c0_2 = arith.constant 0 : index
    %c0_3 = arith.constant 0 : index
    %2 = vector.load %arg1[%c0_1, %c0_2, %c0_3] : memref<1x64x32xf32, #tpu.memory_space<vmem>>, vector<1x64x32xf32>
    %3 = vector.shape_cast %2 : vector<1x64x32xf32> to vector<64x32xf32>
    %cst_4 = arith.constant 0.000000e+00 : f32
    %4 = vector.broadcast %cst_4 : f32 to vector<64x32xf32>
    %c16 = arith.constant 16 : index
    %c0_5 = arith.constant 0 : index
    %5 = vector.load %arg11[%c16, %c0_5] : memref<96x32xf32, #tpu.memory_space<vmem>>, vector<64x32xf32>
    tpu.vector_store %arg11[%c16, %c0_5], %3 {strides = array<i32>} : memref<96x32xf32, #tpu.memory_space<vmem>>, vector<64x32xf32>,
    %c15 = arith.constant 15 : index
    %c0_6 = arith.constant 0 : index
    %6 = vector.load %arg11[%c15, %c0_6] : memref<96x32xf32, #tpu.memory_space<vmem>>, vector<64x32xf32>
    %c17 = arith.constant 17 : index
    %c0_7 = arith.constant 0 : index
    %7 = vector.load %arg11[%c17, %c0_7] : memref<96x32xf32, #tpu.memory_space<vmem>>, vector<64x32xf32>
    %c0_8 = arith.constant 0 : index
    %c0_9 = arith.constant 0 : index
    %c0_10 = arith.constant 0 : index
    %c0_11 = arith.constant 0 : index
    %8 = vector.load %arg2[%c0_8, %c0_9, %c0_10, %c0_11] : memref<3x2x32x32xf32, #tpu.memory_space<vmem>>, vector<1x1x32x32xf32>
    %9 = vector.shape_cast %8 : vector<1x1x32x32xf32> to vector<32x32xf32>
    %c0_12 = arith.constant 0 : index
    %c0_13 = arith.constant 0 : index
    %c0_14 = arith.constant 0 : index
    %c0_15 = arith.constant 0 : index
    %10 = vector.load %arg3[%c0_12, %c0_13, %c0_14, %c0_15] : memref<3x2x32x32xf32, #tpu.memory_space<vmem>>, vector<1x1x32x32xf32>
    %11 = vector.shape_cast %10 : vector<1x1x32x32xf32> to vector<32x32xf32>
    %12 = arith.addf %9, %11 : vector<32x32xf32>
    %c0_16 = arith.constant 0 : index
    %c1 = arith.constant 1 : index
    %c0_17 = arith.constant 0 : index
    %c0_18 = arith.constant 0 : index
    %13 = vector.load %arg2[%c0_16, %c1, %c0_17, %c0_18] : memref<3x2x32x32xf32, #tpu.memory_space<vmem>>, vector<1x1x32x32xf32>
    %14 = vector.shape_cast %13 : vector<1x1x32x32xf32> to vector<32x32xf32>
    %c0_19 = arith.constant 0 : index
    %c1_20 = arith.constant 1 : index
    %c0_21 = arith.constant 0 : index
    %c0_22 = arith.constant 0 : index
    %15 = vector.load %arg3[%c0_19, %c1_20, %c0_21, %c0_22] : memref<3x2x32x32xf32, #tpu.memory_space<vmem>>, vector<1x1x32x32xf32>
    %16 = vector.shape_cast %15 : vector<1x1x32x32xf32> to vector<32x32xf32>
    %17 = arith.addf %14, %16 : vector<32x32xf32>
    %cst_23 = arith.constant dense<0.000000e+00> : vector<64x32xf32>
    %18 = tpu.matmul %6, %12, %cst_23 {dimension_numbers = #tpu.dot_dimension_numbers<[1], [0], [0], [1], [0, 0, 1, 1], [], []>} : vector<64x32xf32>, vector<32x32xf32>, vector<64x32xf32> -> vector<64x32xf32>
    %cst_24 = arith.constant dense<0.000000e+00> : vector<64x32xf32>
    %19 = tpu.matmul %7, %17, %cst_24 {dimension_numbers = #tpu.dot_dimension_numbers<[1], [0], [0], [1], [0, 0, 1, 1], [], []>} : vector<64x32xf32>, vector<32x32xf32>, vector<64x32xf32> -> vector<64x32xf32>
    %20 = arith.addf %18, %19 : vector<64x32xf32>
    %c0_25 = arith.constant 0 : index
    %c0_26 = arith.constant 0 : index
    %c0_27 = arith.constant 0 : index
    %21 = vector.load %arg4[%c0_25, %c0_26, %c0_27] : memref<3x32x32xf32, #tpu.memory_space<vmem>>, vector<1x32x32xf32>
    %22 = vector.shape_cast %21 : vector<1x32x32xf32> to vector<32x32xf32>
    %cst_28 = arith.constant dense<0.000000e+00> : vector<64x32xf32>
    %23 = tpu.matmul %3, %22, %cst_28 {dimension_numbers = #tpu.dot_dimension_numbers<[1], [0], [0], [1], [0, 0, 1, 1], [], []>} : vector<64x32xf32>, vector<32x32xf32>, vector<64x32xf32> -> vector<64x32xf32>
    %24 = arith.addf %20, %23 : vector<64x32xf32>
    %c0_29 = arith.constant 0 : index
    %c0_30 = arith.constant 0 : index
    %25 = vector.load %arg5[%c0_29, %c0_30] : memref<3x32xf32, #tpu.memory_space<vmem>>, vector<1x32xf32>
    %26 = vector.broadcast %25 : vector<1x32xf32> to vector<64x32xf32>
    %27 = arith.addf %24, %26 : vector<64x32xf32>
    %c16_31 = arith.constant 16 : index
    %c0_32 = arith.constant 0 : index
    %28 = vector.load %arg11[%c16_31, %c0_32] : memref<96x32xf32, #tpu.memory_space<vmem>>, vector<64x32xf32>
    tpu.vector_store %arg11[%c16_31, %c0_32], %27 {strides = array<i32>} : memref<96x32xf32, #tpu.memory_space<vmem>>, vector<64x32xf32>,
    %c15_33 = arith.constant 15 : index
    %c0_34 = arith.constant 0 : index
    %29 = vector.load %arg11[%c15_33, %c0_34] : memref<96x32xf32, #tpu.memory_space<vmem>>, vector<64x32xf32>
    %c17_35 = arith.constant 17 : index
    %c0_36 = arith.constant 0 : index
    %30 = vector.load %arg11[%c17_35, %c0_36] : memref<96x32xf32, #tpu.memory_space<vmem>>, vector<64x32xf32>
    %c0_37 = arith.constant 0 : index
    %c0_38 = arith.constant 0 : index
    %c0_39 = arith.constant 0 : index
    %c0_40 = arith.constant 0 : index
    %31 = vector.load %arg6[%c0_37, %c0_38, %c0_39, %c0_40] : memref<3x3x32x64xf32, #tpu.memory_space<vmem>>, vector<1x1x32x64xf32>
    %32 = vector.shape_cast %31 : vector<1x1x32x64xf32> to vector<32x64xf32>
    %cst_41 = arith.constant dense<0.000000e+00> : vector<64x64xf32>
    %33 = tpu.matmul %29, %32, %cst_41 {dimension_numbers = #tpu.dot_dimension_numbers<[1], [0], [0], [1], [0, 0, 1, 1], [], []>} : vector<64x32xf32>, vector<32x64xf32>, vector<64x64xf32> -> vector<64x64xf32>
    %c0_42 = arith.constant 0 : index
    %c1_43 = arith.constant 1 : index
    %c0_44 = arith.constant 0 : index
    %c0_45 = arith.constant 0 : index
    %34 = vector.load %arg6[%c0_42, %c1_43, %c0_44, %c0_45] : memref<3x3x32x64xf32, #tpu.memory_space<vmem>>, vector<1x1x32x64xf32>
    %35 = vector.shape_cast %34 : vector<1x1x32x64xf32> to vector<32x64xf32>
    %cst_46 = arith.constant dense<0.000000e+00> : vector<64x64xf32>
    %36 = tpu.matmul %27, %35, %cst_46 {dimension_numbers = #tpu.dot_dimension_numbers<[1], [0], [0], [1], [0, 0, 1, 1], [], []>} : vector<64x32xf32>, vector<32x64xf32>, vector<64x64xf32> -> vector<64x64xf32>
    %37 = arith.addf %33, %36 : vector<64x64xf32>
    %c0_47 = arith.constant 0 : index
    %c2 = arith.constant 2 : index
    %c0_48 = arith.constant 0 : index
    %c0_49 = arith.constant 0 : index
    %38 = vector.load %arg6[%c0_47, %c2, %c0_48, %c0_49] : memref<3x3x32x64xf32, #tpu.memory_space<vmem>>, vector<1x1x32x64xf32>
    %39 = vector.shape_cast %38 : vector<1x1x32x64xf32> to vector<32x64xf32>
    %cst_50 = arith.constant dense<0.000000e+00> : vector<64x64xf32>
    %40 = tpu.matmul %30, %39, %cst_50 {dimension_numbers = #tpu.dot_dimension_numbers<[1], [0], [0], [1], [0, 0, 1, 1], [], []>} : vector<64x32xf32>, vector<32x64xf32>, vector<64x64xf32> -> vector<64x64xf32>
    %41 = arith.addf %37, %40 : vector<64x64xf32>
    %c0_51 = arith.constant 0 : index
    %c0_52 = arith.constant 0 : index
    %42 = vector.load %arg7[%c0_51, %c0_52] : memref<3x64xf32, #tpu.memory_space<vmem>>, vector<1x64xf32>
    %43 = vector.broadcast %42 : vector<1x64xf32> to vector<64x64xf32>
    %44 = arith.addf %41, %43 : vector<64x64xf32>
    %45 = vector.extract_strided_slice %44 {offsets = [0, 0], sizes = [64, 32], strides = [1, 1]} : vector<64x64xf32> to vector<64x32xf32>
    %46 = arith.negf %45 : vector<64x32xf32>
    %47 = math.exp %46 : vector<64x32xf32>
    %cst_53 = arith.constant 1.000000e+00 : f32
    %48 = vector.broadcast %cst_53 : f32 to vector<64x32xf32>
    %49 = arith.addf %48, %47 : vector<64x32xf32>
    %50 = arith.divf %48, %49 : vector<64x32xf32>
    %51 = vector.extract_strided_slice %44 {offsets = [0, 32], sizes = [64, 32], strides = [1, 1]} : vector<64x64xf32> to vector<64x32xf32>
    %52 = math.tanh %51 : vector<64x32xf32>
    %53 = arith.mulf %50, %52 : vector<64x32xf32>
    %c0_54 = arith.constant 0 : index
    %c0_55 = arith.constant 0 : index
    %c0_56 = arith.constant 0 : index
    %54 = vector.load %arg8[%c0_54, %c0_55, %c0_56] : memref<3x32x32xf32, #tpu.memory_space<vmem>>, vector<1x32x32xf32>
    %55 = vector.shape_cast %54 : vector<1x32x32xf32> to vector<32x32xf32>
    %cst_57 = arith.constant dense<0.000000e+00> : vector<64x32xf32>
    %56 = tpu.matmul %53, %55, %cst_57 {dimension_numbers = #tpu.dot_dimension_numbers<[1], [0], [0], [1], [0, 0, 1, 1], [], []>} : vector<64x32xf32>, vector<32x32xf32>, vector<64x32xf32> -> vector<64x32xf32>
    %c0_58 = arith.constant 0 : index
    %c0_59 = arith.constant 0 : index
    %57 = vector.load %arg9[%c0_58, %c0_59] : memref<3x32xf32, #tpu.memory_space<vmem>>, vector<1x32xf32>
    %58 = vector.broadcast %57 : vector<1x32xf32> to vector<64x32xf32>
    %59 = arith.addf %56, %58 : vector<64x32xf32>
    %60 = arith.addf %3, %59 : vector<64x32xf32>
    %61 = arith.addf %4, %59 : vector<64x32xf32>
    %c16_60 = arith.constant 16 : index
    %c0_61 = arith.constant 0 : index
    %62 = vector.load %arg11[%c16_60, %c0_61] : memref<96x32xf32, #tpu.memory_space<vmem>>, vector<64x32xf32>
    tpu.vector_store %arg11[%c16_60, %c0_61], %60 {strides = array<i32>} : memref<96x32xf32, #tpu.memory_space<vmem>>, vector<64x32xf32>,
    %c15_62 = arith.constant 15 : index
    %c0_63 = arith.constant 0 : index
    %63 = vector.load %arg11[%c15_62, %c0_63] : memref<96x32xf32, #tpu.memory_space<vmem>>, vector<64x32xf32>
    %c17_64 = arith.constant 17 : index
    %c0_65 = arith.constant 0 : index
    %64 = vector.load %arg11[%c17_64, %c0_65] : memref<96x32xf32, #tpu.memory_space<vmem>>, vector<64x32xf32>
    %c13 = arith.constant 13 : index
    %c0_66 = arith.constant 0 : index
    %65 = vector.load %arg11[%c13, %c0_66] : memref<96x32xf32, #tpu.memory_space<vmem>>, vector<64x32xf32>
    %c19 = arith.constant 19 : index
    %c0_67 = arith.constant 0 : index
    %66 = vector.load %arg11[%c19, %c0_67] : memref<96x32xf32, #tpu.memory_space<vmem>>, vector<64x32xf32>
    %c1_68 = arith.constant 1 : index
    %c0_69 = arith.constant 0 : index
    %c0_70 = arith.constant 0 : index
    %c0_71 = arith.constant 0 : index
    %67 = vector.load %arg2[%c1_68, %c0_69, %c0_70, %c0_71] : memref<3x2x32x32xf32, #tpu.memory_space<vmem>>, vector<1x1x32x32xf32>
    %68 = vector.shape_cast %67 : vector<1x1x32x32xf32> to vector<32x32xf32>
    %cst_72 = arith.constant dense<0.000000e+00> : vector<64x32xf32>
    %69 = tpu.matmul %65, %68, %cst_72 {dimension_numbers = #tpu.dot_dimension_numbers<[1], [0], [0], [1], [0, 0, 1, 1], [], []>} : vector<64x32xf32>, vector<32x32xf32>, vector<64x32xf32> -> vector<64x32xf32>
    %c1_73 = arith.constant 1 : index
    %c1_74 = arith.constant 1 : index
    %c0_75 = arith.constant 0 : index
    %c0_76 = arith.constant 0 : index
    %70 = vector.load %arg2[%c1_73, %c1_74, %c0_75, %c0_76] : memref<3x2x32x32xf32, #tpu.memory_space<vmem>>, vector<1x1x32x32xf32>
    %71 = vector.shape_cast %70 : vector<1x1x32x32xf32> to vector<32x32xf32>
    %cst_77 = arith.constant dense<0.000000e+00> : vector<64x32xf32>
    %72 = tpu.matmul %66, %71, %cst_77 {dimension_numbers = #tpu.dot_dimension_numbers<[1], [0], [0], [1], [0, 0, 1, 1], [], []>} : vector<64x32xf32>, vector<32x32xf32>, vector<64x32xf32> -> vector<64x32xf32>
    %73 = arith.addf %69, %72 : vector<64x32xf32>
    %c1_78 = arith.constant 1 : index
    %c0_79 = arith.constant 0 : index
    %c0_80 = arith.constant 0 : index
    %c0_81 = arith.constant 0 : index
    %74 = vector.load %arg3[%c1_78, %c0_79, %c0_80, %c0_81] : memref<3x2x32x32xf32, #tpu.memory_space<vmem>>, vector<1x1x32x32xf32>
    %75 = vector.shape_cast %74 : vector<1x1x32x32xf32> to vector<32x32xf32>
    %cst_82 = arith.constant dense<0.000000e+00> : vector<64x32xf32>
    %76 = tpu.matmul %63, %75, %cst_82 {dimension_numbers = #tpu.dot_dimension_numbers<[1], [0], [0], [1], [0, 0, 1, 1], [], []>} : vector<64x32xf32>, vector<32x32xf32>, vector<64x32xf32> -> vector<64x32xf32>
    %77 = arith.addf %73, %76 : vector<64x32xf32>
    %c1_83 = arith.constant 1 : index
    %c1_84 = arith.constant 1 : index
    %c0_85 = arith.constant 0 : index
    %c0_86 = arith.constant 0 : index
    %78 = vector.load %arg3[%c1_83, %c1_84, %c0_85, %c0_86] : memref<3x2x32x32xf32, #tpu.memory_space<vmem>>, vector<1x1x32x32xf32>
    %79 = vector.shape_cast %78 : vector<1x1x32x32xf32> to vector<32x32xf32>
    %cst_87 = arith.constant dense<0.000000e+00> : vector<64x32xf32>
    %80 = tpu.matmul %64, %79, %cst_87 {dimension_numbers = #tpu.dot_dimension_numbers<[1], [0], [0], [1], [0, 0, 1, 1], [], []>} : vector<64x32xf32>, vector<32x32xf32>, vector<64x32xf32> -> vector<64x32xf32>
    %81 = arith.addf %77, %80 : vector<64x32xf32>
    %c1_88 = arith.constant 1 : index
    %c0_89 = arith.constant 0 : index
    %c0_90 = arith.constant 0 : index
    %82 = vector.load %arg4[%c1_88, %c0_89, %c0_90] : memref<3x32x32xf32, #tpu.memory_space<vmem>>, vector<1x32x32xf32>
    %83 = vector.shape_cast %82 : vector<1x32x32xf32> to vector<32x32xf32>
    %cst_91 = arith.constant dense<0.000000e+00> : vector<64x32xf32>
    %84 = tpu.matmul %60, %83, %cst_91 {dimension_numbers = #tpu.dot_dimension_numbers<[1], [0], [0], [1], [0, 0, 1, 1], [], []>} : vector<64x32xf32>, vector<32x32xf32>, vector<64x32xf32> -> vector<64x32xf32>
    %85 = arith.addf %81, %84 : vector<64x32xf32>
    %c1_92 = arith.constant 1 : index
    %c0_93 = arith.constant 0 : index
    %86 = vector.load %arg5[%c1_92, %c0_93] : memref<3x32xf32, #tpu.memory_space<vmem>>, vector<1x32xf32>
    %87 = vector.broadcast %86 : vector<1x32xf32> to vector<64x32xf32>
    %88 = arith.addf %85, %87 : vector<64x32xf32>
    %c16_94 = arith.constant 16 : index
    %c0_95 = arith.constant 0 : index
    %89 = vector.load %arg11[%c16_94, %c0_95] : memref<96x32xf32, #tpu.memory_space<vmem>>, vector<64x32xf32>
    tpu.vector_store %arg11[%c16_94, %c0_95], %88 {strides = array<i32>} : memref<96x32xf32, #tpu.memory_space<vmem>>, vector<64x32xf32>,
    %c15_96 = arith.constant 15 : index
    %c0_97 = arith.constant 0 : index
    %90 = vector.load %arg11[%c15_96, %c0_97] : memref<96x32xf32, #tpu.memory_space<vmem>>, vector<64x32xf32>
    %c17_98 = arith.constant 17 : index
    %c0_99 = arith.constant 0 : index
    %91 = vector.load %arg11[%c17_98, %c0_99] : memref<96x32xf32, #tpu.memory_space<vmem>>, vector<64x32xf32>
    %c1_100 = arith.constant 1 : index
    %c0_101 = arith.constant 0 : index
    %c0_102 = arith.constant 0 : index
    %c0_103 = arith.constant 0 : index
    %92 = vector.load %arg6[%c1_100, %c0_101, %c0_102, %c0_103] : memref<3x3x32x64xf32, #tpu.memory_space<vmem>>, vector<1x1x32x64xf32>
    %93 = vector.shape_cast %92 : vector<1x1x32x64xf32> to vector<32x64xf32>
    %cst_104 = arith.constant dense<0.000000e+00> : vector<64x64xf32>
    %94 = tpu.matmul %90, %93, %cst_104 {dimension_numbers = #tpu.dot_dimension_numbers<[1], [0], [0], [1], [0, 0, 1, 1], [], []>} : vector<64x32xf32>, vector<32x64xf32>, vector<64x64xf32> -> vector<64x64xf32>
    %c1_105 = arith.constant 1 : index
    %c1_106 = arith.constant 1 : index
    %c0_107 = arith.constant 0 : index
    %c0_108 = arith.constant 0 : index
    %95 = vector.load %arg6[%c1_105, %c1_106, %c0_107, %c0_108] : memref<3x3x32x64xf32, #tpu.memory_space<vmem>>, vector<1x1x32x64xf32>
    %96 = vector.shape_cast %95 : vector<1x1x32x64xf32> to vector<32x64xf32>
    %cst_109 = arith.constant dense<0.000000e+00> : vector<64x64xf32>
    %97 = tpu.matmul %88, %96, %cst_109 {dimension_numbers = #tpu.dot_dimension_numbers<[1], [0], [0], [1], [0, 0, 1, 1], [], []>} : vector<64x32xf32>, vector<32x64xf32>, vector<64x64xf32> -> vector<64x64xf32>
    %98 = arith.addf %94, %97 : vector<64x64xf32>
    %c1_110 = arith.constant 1 : index
    %c2_111 = arith.constant 2 : index
    %c0_112 = arith.constant 0 : index
    %c0_113 = arith.constant 0 : index
    %99 = vector.load %arg6[%c1_110, %c2_111, %c0_112, %c0_113] : memref<3x3x32x64xf32, #tpu.memory_space<vmem>>, vector<1x1x32x64xf32>
    %100 = vector.shape_cast %99 : vector<1x1x32x64xf32> to vector<32x64xf32>
    %cst_114 = arith.constant dense<0.000000e+00> : vector<64x64xf32>
    %101 = tpu.matmul %91, %100, %cst_114 {dimension_numbers = #tpu.dot_dimension_numbers<[1], [0], [0], [1], [0, 0, 1, 1], [], []>} : vector<64x32xf32>, vector<32x64xf32>, vector<64x64xf32> -> vector<64x64xf32>
    %102 = arith.addf %98, %101 : vector<64x64xf32>
    %c1_115 = arith.constant 1 : index
    %c0_116 = arith.constant 0 : index
    %103 = vector.load %arg7[%c1_115, %c0_116] : memref<3x64xf32, #tpu.memory_space<vmem>>, vector<1x64xf32>
    %104 = vector.broadcast %103 : vector<1x64xf32> to vector<64x64xf32>
    %105 = arith.addf %102, %104 : vector<64x64xf32>
    %106 = vector.extract_strided_slice %105 {offsets = [0, 0], sizes = [64, 32], strides = [1, 1]} : vector<64x64xf32> to vector<64x32xf32>
    %107 = arith.negf %106 : vector<64x32xf32>
    %108 = math.exp %107 : vector<64x32xf32>
    %cst_117 = arith.constant 1.000000e+00 : f32
    %109 = vector.broadcast %cst_117 : f32 to vector<64x32xf32>
    %110 = arith.addf %109, %108 : vector<64x32xf32>
    %111 = arith.divf %109, %110 : vector<64x32xf32>
    %112 = vector.extract_strided_slice %105 {offsets = [0, 32], sizes = [64, 32], strides = [1, 1]} : vector<64x64xf32> to vector<64x32xf32>
    %113 = math.tanh %112 : vector<64x32xf32>
    %114 = arith.mulf %111, %113 : vector<64x32xf32>
    %c1_118 = arith.constant 1 : index
    %c0_119 = arith.constant 0 : index
    %c0_120 = arith.constant 0 : index
    %115 = vector.load %arg8[%c1_118, %c0_119, %c0_120] : memref<3x32x32xf32, #tpu.memory_space<vmem>>, vector<1x32x32xf32>
    %116 = vector.shape_cast %115 : vector<1x32x32xf32> to vector<32x32xf32>
    %cst_121 = arith.constant dense<0.000000e+00> : vector<64x32xf32>
    %117 = tpu.matmul %114, %116, %cst_121 {dimension_numbers = #tpu.dot_dimension_numbers<[1], [0], [0], [1], [0, 0, 1, 1], [], []>} : vector<64x32xf32>, vector<32x32xf32>, vector<64x32xf32> -> vector<64x32xf32>
    %c1_122 = arith.constant 1 : index
    %c0_123 = arith.constant 0 : index
    %118 = vector.load %arg9[%c1_122, %c0_123] : memref<3x32xf32, #tpu.memory_space<vmem>>, vector<1x32xf32>
    %119 = vector.broadcast %118 : vector<1x32xf32> to vector<64x32xf32>
    %120 = arith.addf %117, %119 : vector<64x32xf32>
    %121 = arith.addf %60, %120 : vector<64x32xf32>
    %122 = arith.addf %61, %120 : vector<64x32xf32>
    %c16_124 = arith.constant 16 : index
    %c0_125 = arith.constant 0 : index
    %123 = vector.load %arg11[%c16_124, %c0_125] : memref<96x32xf32, #tpu.memory_space<vmem>>, vector<64x32xf32>
    tpu.vector_store %arg11[%c16_124, %c0_125], %121 {strides = array<i32>} : memref<96x32xf32, #tpu.memory_space<vmem>>, vector<64x32xf32>,
    %c15_126 = arith.constant 15 : index
    %c0_127 = arith.constant 0 : index
    %124 = vector.load %arg11[%c15_126, %c0_127] : memref<96x32xf32, #tpu.memory_space<vmem>>, vector<64x32xf32>
    %c17_128 = arith.constant 17 : index
    %c0_129 = arith.constant 0 : index
    %125 = vector.load %arg11[%c17_128, %c0_129] : memref<96x32xf32, #tpu.memory_space<vmem>>, vector<64x32xf32>
    %c7 = arith.constant 7 : index
    %c0_130 = arith.constant 0 : index
    %126 = vector.load %arg11[%c7, %c0_130] : memref<96x32xf32, #tpu.memory_space<vmem>>, vector<64x32xf32>
    %c25 = arith.constant 25 : index
    %c0_131 = arith.constant 0 : index
    %127 = vector.load %arg11[%c25, %c0_131] : memref<96x32xf32, #tpu.memory_space<vmem>>, vector<64x32xf32>
    %c2_132 = arith.constant 2 : index
    %c0_133 = arith.constant 0 : index
    %c0_134 = arith.constant 0 : index
    %c0_135 = arith.constant 0 : index
    %128 = vector.load %arg2[%c2_132, %c0_133, %c0_134, %c0_135] : memref<3x2x32x32xf32, #tpu.memory_space<vmem>>, vector<1x1x32x32xf32>
    %129 = vector.shape_cast %128 : vector<1x1x32x32xf32> to vector<32x32xf32>
    %cst_136 = arith.constant dense<0.000000e+00> : vector<64x32xf32>
    %130 = tpu.matmul %126, %129, %cst_136 {dimension_numbers = #tpu.dot_dimension_numbers<[1], [0], [0], [1], [0, 0, 1, 1], [], []>} : vector<64x32xf32>, vector<32x32xf32>, vector<64x32xf32> -> vector<64x32xf32>
    %c2_137 = arith.constant 2 : index
    %c1_138 = arith.constant 1 : index
    %c0_139 = arith.constant 0 : index
    %c0_140 = arith.constant 0 : index
    %131 = vector.load %arg2[%c2_137, %c1_138, %c0_139, %c0_140] : memref<3x2x32x32xf32, #tpu.memory_space<vmem>>, vector<1x1x32x32xf32>
    %132 = vector.shape_cast %131 : vector<1x1x32x32xf32> to vector<32x32xf32>
    %cst_141 = arith.constant dense<0.000000e+00> : vector<64x32xf32>
    %133 = tpu.matmul %127, %132, %cst_141 {dimension_numbers = #tpu.dot_dimension_numbers<[1], [0], [0], [1], [0, 0, 1, 1], [], []>} : vector<64x32xf32>, vector<32x32xf32>, vector<64x32xf32> -> vector<64x32xf32>
    %134 = arith.addf %130, %133 : vector<64x32xf32>
    %c2_142 = arith.constant 2 : index
    %c0_143 = arith.constant 0 : index
    %c0_144 = arith.constant 0 : index
    %c0_145 = arith.constant 0 : index
    %135 = vector.load %arg3[%c2_142, %c0_143, %c0_144, %c0_145] : memref<3x2x32x32xf32, #tpu.memory_space<vmem>>, vector<1x1x32x32xf32>
    %136 = vector.shape_cast %135 : vector<1x1x32x32xf32> to vector<32x32xf32>
    %cst_146 = arith.constant dense<0.000000e+00> : vector<64x32xf32>
    %137 = tpu.matmul %124, %136, %cst_146 {dimension_numbers = #tpu.dot_dimension_numbers<[1], [0], [0], [1], [0, 0, 1, 1], [], []>} : vector<64x32xf32>, vector<32x32xf32>, vector<64x32xf32> -> vector<64x32xf32>
    %138 = arith.addf %134, %137 : vector<64x32xf32>
    %c2_147 = arith.constant 2 : index
    %c1_148 = arith.constant 1 : index
    %c0_149 = arith.constant 0 : index
    %c0_150 = arith.constant 0 : index
    %139 = vector.load %arg3[%c2_147, %c1_148, %c0_149, %c0_150] : memref<3x2x32x32xf32, #tpu.memory_space<vmem>>, vector<1x1x32x32xf32>
    %140 = vector.shape_cast %139 : vector<1x1x32x32xf32> to vector<32x32xf32>
    %cst_151 = arith.constant dense<0.000000e+00> : vector<64x32xf32>
    %141 = tpu.matmul %125, %140, %cst_151 {dimension_numbers = #tpu.dot_dimension_numbers<[1], [0], [0], [1], [0, 0, 1, 1], [], []>} : vector<64x32xf32>, vector<32x32xf32>, vector<64x32xf32> -> vector<64x32xf32>
    %142 = arith.addf %138, %141 : vector<64x32xf32>
    %c2_152 = arith.constant 2 : index
    %c0_153 = arith.constant 0 : index
    %c0_154 = arith.constant 0 : index
    %143 = vector.load %arg4[%c2_152, %c0_153, %c0_154] : memref<3x32x32xf32, #tpu.memory_space<vmem>>, vector<1x32x32xf32>
    %144 = vector.shape_cast %143 : vector<1x32x32xf32> to vector<32x32xf32>
    %cst_155 = arith.constant dense<0.000000e+00> : vector<64x32xf32>
    %145 = tpu.matmul %121, %144, %cst_155 {dimension_numbers = #tpu.dot_dimension_numbers<[1], [0], [0], [1], [0, 0, 1, 1], [], []>} : vector<64x32xf32>, vector<32x32xf32>, vector<64x32xf32> -> vector<64x32xf32>
    %146 = arith.addf %142, %145 : vector<64x32xf32>
    %c2_156 = arith.constant 2 : index
    %c0_157 = arith.constant 0 : index
    %147 = vector.load %arg5[%c2_156, %c0_157] : memref<3x32xf32, #tpu.memory_space<vmem>>, vector<1x32xf32>
    %148 = vector.broadcast %147 : vector<1x32xf32> to vector<64x32xf32>
    %149 = arith.addf %146, %148 : vector<64x32xf32>
    %c16_158 = arith.constant 16 : index
    %c0_159 = arith.constant 0 : index
    %150 = vector.load %arg11[%c16_158, %c0_159] : memref<96x32xf32, #tpu.memory_space<vmem>>, vector<64x32xf32>
    tpu.vector_store %arg11[%c16_158, %c0_159], %149 {strides = array<i32>} : memref<96x32xf32, #tpu.memory_space<vmem>>, vector<64x32xf32>,
    %c15_160 = arith.constant 15 : index
    %c0_161 = arith.constant 0 : index
    %151 = vector.load %arg11[%c15_160, %c0_161] : memref<96x32xf32, #tpu.memory_space<vmem>>, vector<64x32xf32>
    %c17_162 = arith.constant 17 : index
    %c0_163 = arith.constant 0 : index
    %152 = vector.load %arg11[%c17_162, %c0_163] : memref<96x32xf32, #tpu.memory_space<vmem>>, vector<64x32xf32>
    %c2_164 = arith.constant 2 : index
    %c0_165 = arith.constant 0 : index
    %c0_166 = arith.constant 0 : index
    %c0_167 = arith.constant 0 : index
    %153 = vector.load %arg6[%c2_164, %c0_165, %c0_166, %c0_167] : memref<3x3x32x64xf32, #tpu.memory_space<vmem>>, vector<1x1x32x64xf32>
    %154 = vector.shape_cast %153 : vector<1x1x32x64xf32> to vector<32x64xf32>
    %cst_168 = arith.constant dense<0.000000e+00> : vector<64x64xf32>
    %155 = tpu.matmul %151, %154, %cst_168 {dimension_numbers = #tpu.dot_dimension_numbers<[1], [0], [0], [1], [0, 0, 1, 1], [], []>} : vector<64x32xf32>, vector<32x64xf32>, vector<64x64xf32> -> vector<64x64xf32>
    %c2_169 = arith.constant 2 : index
    %c1_170 = arith.constant 1 : index
    %c0_171 = arith.constant 0 : index
    %c0_172 = arith.constant 0 : index
    %156 = vector.load %arg6[%c2_169, %c1_170, %c0_171, %c0_172] : memref<3x3x32x64xf32, #tpu.memory_space<vmem>>, vector<1x1x32x64xf32>
    %157 = vector.shape_cast %156 : vector<1x1x32x64xf32> to vector<32x64xf32>
    %cst_173 = arith.constant dense<0.000000e+00> : vector<64x64xf32>
    %158 = tpu.matmul %149, %157, %cst_173 {dimension_numbers = #tpu.dot_dimension_numbers<[1], [0], [0], [1], [0, 0, 1, 1], [], []>} : vector<64x32xf32>, vector<32x64xf32>, vector<64x64xf32> -> vector<64x64xf32>
    %159 = arith.addf %155, %158 : vector<64x64xf32>
    %c2_174 = arith.constant 2 : index
    %c2_175 = arith.constant 2 : index
    %c0_176 = arith.constant 0 : index
    %c0_177 = arith.constant 0 : index
    %160 = vector.load %arg6[%c2_174, %c2_175, %c0_176, %c0_177] : memref<3x3x32x64xf32, #tpu.memory_space<vmem>>, vector<1x1x32x64xf32>
    %161 = vector.shape_cast %160 : vector<1x1x32x64xf32> to vector<32x64xf32>
    %cst_178 = arith.constant dense<0.000000e+00> : vector<64x64xf32>
    %162 = tpu.matmul %152, %161, %cst_178 {dimension_numbers = #tpu.dot_dimension_numbers<[1], [0], [0], [1], [0, 0, 1, 1], [], []>} : vector<64x32xf32>, vector<32x64xf32>, vector<64x64xf32> -> vector<64x64xf32>
    %163 = arith.addf %159, %162 : vector<64x64xf32>
    %c2_179 = arith.constant 2 : index
    %c0_180 = arith.constant 0 : index
    %164 = vector.load %arg7[%c2_179, %c0_180] : memref<3x64xf32, #tpu.memory_space<vmem>>, vector<1x64xf32>
    %165 = vector.broadcast %164 : vector<1x64xf32> to vector<64x64xf32>
    %166 = arith.addf %163, %165 : vector<64x64xf32>
    %167 = vector.extract_strided_slice %166 {offsets = [0, 0], sizes = [64, 32], strides = [1, 1]} : vector<64x64xf32> to vector<64x32xf32>
    %168 = arith.negf %167 : vector<64x32xf32>
    %169 = math.exp %168 : vector<64x32xf32>
    %cst_181 = arith.constant 1.000000e+00 : f32
    %170 = vector.broadcast %cst_181 : f32 to vector<64x32xf32>
    %171 = arith.addf %170, %169 : vector<64x32xf32>
    %172 = arith.divf %170, %171 : vector<64x32xf32>
    %173 = vector.extract_strided_slice %166 {offsets = [0, 32], sizes = [64, 32], strides = [1, 1]} : vector<64x64xf32> to vector<64x32xf32>
    %174 = math.tanh %173 : vector<64x32xf32>
    %175 = arith.mulf %172, %174 : vector<64x32xf32>
    %c2_182 = arith.constant 2 : index
    %c0_183 = arith.constant 0 : index
    %c0_184 = arith.constant 0 : index
    %176 = vector.load %arg8[%c2_182, %c0_183, %c0_184] : memref<3x32x32xf32, #tpu.memory_space<vmem>>, vector<1x32x32xf32>
    %177 = vector.shape_cast %176 : vector<1x32x32xf32> to vector<32x32xf32>
    %cst_185 = arith.constant dense<0.000000e+00> : vector<64x32xf32>
    %178 = tpu.matmul %175, %177, %cst_185 {dimension_numbers = #tpu.dot_dimension_numbers<[1], [0], [0], [1], [0, 0, 1, 1], [], []>} : vector<64x32xf32>, vector<32x32xf32>, vector<64x32xf32> -> vector<64x32xf32>
    %c2_186 = arith.constant 2 : index
    %c0_187 = arith.constant 0 : index
    %179 = vector.load %arg9[%c2_186, %c0_187] : memref<3x32xf32, #tpu.memory_space<vmem>>, vector<1x32xf32>
    %180 = vector.broadcast %179 : vector<1x32xf32> to vector<64x32xf32>
    %181 = arith.addf %178, %180 : vector<64x32xf32>
    %182 = arith.addf %122, %181 : vector<64x32xf32>
    %c0_188 = arith.constant 0 : index
    %c0_189 = arith.constant 0 : index
    %c0_190 = arith.constant 0 : index
    %183 = vector.load %arg10[%c0_188, %c0_189, %c0_190] : memref<1x64x32xf32, #tpu.memory_space<vmem>>, vector<1x64x32xf32>
    %184 = vector.shape_cast %183 : vector<1x64x32xf32> to vector<64x32xf32>
    %185 = vector.shape_cast %182 : vector<64x32xf32> to vector<1x64x32xf32>
    tpu.vector_store %arg10[%c0_188, %c0_189, %c0_190], %185 {strides = array<i32>} : memref<1x64x32xf32, #tpu.memory_space<vmem>>, vector<1x64x32xf32>,
    return
  }
  func.func @transform_0(%arg0: i32) -> (i32, i32, i32) {
    %c0_i32 = arith.constant 0 : i32
    %c0_i32_0 = arith.constant 0 : i32
    %c0_i32_1 = arith.constant 0 : i32
    return %arg0, %c0_i32, %c0_i32_0 : i32, i32, i32
  }
  func.func @transform_1(%arg0: i32) -> (i32, i32, i32, i32) {
    %c0_i32 = arith.constant 0 : i32
    %c0_i32_0 = arith.constant 0 : i32
    %c0_i32_1 = arith.constant 0 : i32
    %c0_i32_2 = arith.constant 0 : i32
    %c0_i32_3 = arith.constant 0 : i32
    return %c0_i32, %c0_i32_0, %c0_i32_1, %c0_i32_2 : i32, i32, i32, i32
  }
  func.func @transform_2(%arg0: i32) -> (i32, i32, i32, i32) {
    %c0_i32 = arith.constant 0 : i32
    %c0_i32_0 = arith.constant 0 : i32
    %c0_i32_1 = arith.constant 0 : i32
    %c0_i32_2 = arith.constant 0 : i32
    %c0_i32_3 = arith.constant 0 : i32
    return %c0_i32, %c0_i32_0, %c0_i32_1, %c0_i32_2 : i32, i32, i32, i32
  }
  func.func @transform_3(%arg0: i32) -> (i32, i32, i32) {
    %c0_i32 = arith.constant 0 : i32
    %c0_i32_0 = arith.constant 0 : i32
    %c0_i32_1 = arith.constant 0 : i32
    %c0_i32_2 = arith.constant 0 : i32
    return %c0_i32, %c0_i32_0, %c0_i32_1 : i32, i32, i32
  }
  func.func @transform_4(%arg0: i32) -> (i32, i32) {
    %c0_i32 = arith.constant 0 : i32
    %c0_i32_0 = arith.constant 0 : i32
    %c0_i32_1 = arith.constant 0 : i32
    return %c0_i32, %c0_i32_0 : i32, i32
  }
  func.func @transform_5(%arg0: i32) -> (i32, i32, i32, i32) {
    %c0_i32 = arith.constant 0 : i32
    %c0_i32_0 = arith.constant 0 : i32
    %c0_i32_1 = arith.constant 0 : i32
    %c0_i32_2 = arith.constant 0 : i32
    %c0_i32_3 = arith.constant 0 : i32
    return %c0_i32, %c0_i32_0, %c0_i32_1, %c0_i32_2 : i32, i32, i32, i32
  }
  func.func @transform_6(%arg0: i32) -> (i32, i32) {
    %c0_i32 = arith.constant 0 : i32
    %c0_i32_0 = arith.constant 0 : i32
    %c0_i32_1 = arith.constant 0 : i32
    return %c0_i32, %c0_i32_0 : i32, i32
  }
  func.func @transform_7(%arg0: i32) -> (i32, i32, i32) {
    %c0_i32 = arith.constant 0 : i32
    %c0_i32_0 = arith.constant 0 : i32
    %c0_i32_1 = arith.constant 0 : i32
    %c0_i32_2 = arith.constant 0 : i32
    return %c0_i32, %c0_i32_0, %c0_i32_1 : i32, i32, i32
  }
  func.func @transform_8(%arg0: i32) -> (i32, i32) {
    %c0_i32 = arith.constant 0 : i32
    %c0_i32_0 = arith.constant 0 : i32
    %c0_i32_1 = arith.constant 0 : i32
    return %c0_i32, %c0_i32_0 : i32, i32
  }
  func.func @transform_9(%arg0: i32) -> (i32, i32, i32) {
    %c0_i32 = arith.constant 0 : i32
    %c0_i32_0 = arith.constant 0 : i32
    %c0_i32_1 = arith.constant 0 : i32
    return %arg0, %c0_i32, %c0_i32_0 : i32, i32, i32
  }
}

</mosaic_0001>

<llo_original>
// kernel: tpu_custom_call.1
$region0: #{tpu_custom_call.1}
  #allocation0 [shape = 'u32[]', space=smem, size = 0x4, offset = 0x4, fixed_abs, tag = 'smem constant byte address 0x4 - core index']
  #allocation1 [shape = 'u32[144,128]{1,0:T(1,128)}', space=vmem, size = 0x12000, scoped, tag = 'internal scratch']
  #allocation2 [shape = 'f32[96,32]{1,0:T(8,128)}', space=vmem, size = 0xc000, scoped, tag = 'scratch operand']
  %s0 = inlined_call_operand.vmem [shape: f32[2,64,32], index: 0, kind: input, shape index: {}]
  %s1 = inlined_call_operand.vmem [shape: f32[3,2,32,32], index: 1, kind: input, shape index: {}]
  %s2 = inlined_call_operand.hbm [shape: f32[3,2,32,32], index: 2, kind: input, shape index: {}]
  %s3 = inlined_call_operand.hbm [shape: f32[3,32,32], index: 3, kind: input, shape index: {}]
  %s4 = inlined_call_operand.vmem [shape: f32[3,32], index: 4, kind: input, shape index: {}]
  %s5 = inlined_call_operand.hbm [shape: f32[3,3,32,64], index: 5, kind: input, shape index: {}]
  %s6 = inlined_call_operand.vmem [shape: f32[3,64], index: 6, kind: input, shape index: {}]
  %s7 = inlined_call_operand.hbm [shape: f32[3,32,32], index: 7, kind: input, shape index: {}]
  %s8 = inlined_call_operand.vmem [shape: f32[3,32], index: 8, kind: input, shape index: {}]
  %s9 = inlined_call_operand.vmem [shape: f32[2,64,32], index: 9, kind: output, shape index: {}]
  %s10 = sld [smem:[#allocation0]]
  $region85: #{tpu_custom_call.1} parent=0
    _
  %s12 = ssub.s32 1, %s10
  %s13 = scalar_select 0, %s12, %s10
  $region1: #{tpu_custom_call.1} parent=0
    #allocation3 [shape = 'u8[98304]{0}', space=vmem, size = 0x18000, scoped, tag = 'input window, operand 2, single buffered']
    #allocation4 [shape = 's32[2]{0}', space=sflag, size = 0x8, scoped, tag = 'scoped memory for tpu_custom_call.1']
    #allocation5 [shape = 'u8[49152]{0}', space=vmem, size = 0xc000, scoped, tag = 'input window, operand 3, single buffered']
    #allocation6 [shape = 's32[1]{0}', space=sflag, size = 0x4, scoped, tag = 'scoped memory for tpu_custom_call.1']
    #allocation7 [shape = 'u8[147456]{0}', space=vmem, size = 0x24000, scoped, tag = 'input window, operand 5, single buffered']
    #allocation8 [shape = 'u8[49152]{0}', space=vmem, size = 0xc000, scoped, tag = 'input window, operand 7, single buffered']
    #allocation9 [shape = 's32[1]{0}', space=sflag, size = 0x4, scoped, tag = 'scoped memory for tpu_custom_call.1']
    %14 = vsyncpa [#allocation4], 0
    %15 = vsyncpa [#allocation6], 0
    %16 = vsyncpa [#allocation9], 0
    loop: start=0, step=1, limit=4
    $region2: #{tpu_custom_call.1} parent=1 // loop_pre_header
      _
    $region3: #{tpu_custom_call.1} parent=1 // loop_header
      %s18 = sphi 0, %s22
      %p19 = scmp.ge.s32.totalorder %s18, 4
      %s28 = sphi 0, %s30
      %s31 = sphi 0, %s28
      %s32 = sphi 0, %s31
      %s48 = sphi 0, %s32
      %s52 = sphi 0, %s52
      %s54 = sphi 0, %s52
      %s55 = sphi 0, %s54
      %s69 = sphi 0, %s55
      %s73 = sphi 0, %s73
      %s75 = sphi 0, %s73
      %s76 = sphi 0, %s75
      %s90 = sphi 0, %s76
      %s94 = sphi 0, %s94
      %s96 = sphi 0, %s94
      %s97 = sphi 0, %s96
      %s111 = sphi 0, %s97
      %s115 = sphi 0, %s115
      %s117 = sphi 0, %s115
      %s118 = sphi 0, %s117
      %s132 = sphi 0, %s118
      %s136 = sphi 0, %s136
      %s138 = sphi 0, %s136
      %s139 = sphi 0, %s138
      %s153 = sphi 0, %s139
      %s157 = sphi 0, %s157
      %s159 = sphi 0, %s157
      %s160 = sphi 0, %s159
      %s174 = sphi 0, %s160
      %s178 = sphi 0, %s178
      %s180 = sphi 0, %s178
      %s181 = sphi 0, %s180
      %s195 = sphi 0, %s181
      %s199 = sphi 0, %s199
      %s201 = sphi 0, %s199
      %s202 = sphi 0, %s201
      %s216 = sphi 0, %s202
      %s222 = sphi 0, %s224
      %s225 = sphi 0, %s222
      %s226 = sphi 0, %s225
      %s242 = sphi 0, %s226
    $region4: #{tpu_custom_call.1} parent=1 // loop_header_branch
      %21 = sbr.rel (%p19) target = $region8
    $region5: #{tpu_custom_call.1} parent=1 // loop_body
      %s23 = ssub.s32 %s18, 1
      %s24 = ssub.s32 %s18, 2
      %s25 = sadd.s32 %s18, 1
      %s26 = ssub.s32 %s18, %s25
      %p27 = scmp.eq.s32.totalorder %s26, 0
      %s29 = sadd.s32 %s28, 1
      %s30 = scalar_select %p27, %s28, %s29
      %p33 = pneg %p27
      %p34 = scmp.eq.s32.totalorder %s18, 1
      %p35 = por %p33, %p34
      %p36 = scmp.ne.s32.totalorder %s28, %s31
      %p37 = scmp.eq.s32.totalorder %s18, 0
      %p38 = por %p36, %p37
      %p39 = scmp.ne.s32.totalorder %s28, %s31
      %p40 = scmp.eq.s32.totalorder %s23, 1
      %p41 = por %p39, %p40
      %p42 = scmp.ne.s32.totalorder %s31, %s32
      %p43 = scmp.eq.s32.totalorder %s23, 0
      %p44 = por %p42, %p43
      %p45 = scmp.ne.s32.totalorder %s31, %s32
      %p46 = scmp.eq.s32.totalorder %s24, 1
      %p47 = por %p45, %p46
      %p49 = scmp.ne.s32.totalorder %s32, %s48
      %p50 = scmp.eq.s32.totalorder %s24, 0
      %p51 = por %p49, %p50
      %s53 = sadd.s32 %s52, 1
      %p56 = scmp.eq.s32.totalorder %s18, 1
      %p57 = scmp.ne.s32.totalorder %s52, %s54
      %p58 = scmp.eq.s32.totalorder %s18, 0
      %p59 = por %p57, %p58
      %p60 = scmp.ne.s32.totalorder %s52, %s54
      %p61 = scmp.eq.s32.totalorder %s23, 1
      %p62 = por %p60, %p61
      %p63 = scmp.ne.s32.totalorder %s54, %s55
      %p64 = scmp.eq.s32.totalorder %s23, 0
      %p65 = por %p63, %p64
      %p66 = scmp.ne.s32.totalorder %s54, %s55
      %p67 = scmp.eq.s32.totalorder %s24, 1
      %p68 = por %p66, %p67
      %p70 = scmp.ne.s32.totalorder %s55, %s69
      %p71 = scmp.eq.s32.totalorder %s24, 0
      %p72 = por %p70, %p71
      %s74 = sadd.s32 %s73, 1
      %p77 = scmp.eq.s32.totalorder %s18, 1
      %p78 = scmp.ne.s32.totalorder %s73, %s75
      %p79 = scmp.eq.s32.totalorder %s18, 0
      %p80 = por %p78, %p79
      %p81 = scmp.ne.s32.totalorder %s73, %s75
      %p82 = scmp.eq.s32.totalorder %s23, 1
      %p83 = por %p81, %p82
      %p84 = scmp.ne.s32.totalorder %s75, %s76
      %p85 = scmp.eq.s32.totalorder %s23, 0
      %p86 = por %p84, %p85
      %p87 = scmp.ne.s32.totalorder %s75, %s76
      %p88 = scmp.eq.s32.totalorder %s24, 1
      %p89 = por %p87, %p88
      %p91 = scmp.ne.s32.totalorder %s76, %s90
      %p92 = scmp.eq.s32.totalorder %s24, 0
      %p93 = por %p91, %p92
      %s95 = sadd.s32 %s94, 1
      %p98 = scmp.eq.s32.totalorder %s18, 1
      %p99 = scmp.ne.s32.totalorder %s94, %s96
      %p100 = scmp.eq.s32.totalorder %s18, 0
      %p101 = por %p99, %p100
      %p102 = scmp.ne.s32.totalorder %s94, %s96
      %p103 = scmp.eq.s32.totalorder %s23, 1
      %p104 = por %p102, %p103
      %p105 = scmp.ne.s32.totalorder %s96, %s97
      %p106 = scmp.eq.s32.totalorder %s23, 0
      %p107 = por %p105, %p106
      %p108 = scmp.ne.s32.totalorder %s96, %s97
      %p109 = scmp.eq.s32.totalorder %s24, 1
      %p110 = por %p108, %p109
      %p112 = scmp.ne.s32.totalorder %s97, %s111
      %p113 = scmp.eq.s32.totalorder %s24, 0
      %p114 = por %p112, %p113
      %s116 = sadd.s32 %s115, 1
      %p119 = scmp.eq.s32.totalorder %s18, 1
      %p120 = scmp.ne.s32.totalorder %s115, %s117
      %p121 = scmp.eq.s32.totalorder %s18, 0
      %p122 = por %p120, %p121
      %p123 = scmp.ne.s32.totalorder %s115, %s117
      %p124 = scmp.eq.s32.totalorder %s23, 1
      %p125 = por %p123, %p124
      %p126 = scmp.ne.s32.totalorder %s117, %s118
      %p127 = scmp.eq.s32.totalorder %s23, 0
      %p128 = por %p126, %p127
      %p129 = scmp.ne.s32.totalorder %s117, %s118
      %p130 = scmp.eq.s32.totalorder %s24, 1
      %p131 = por %p129, %p130
      %p133 = scmp.ne.s32.totalorder %s118, %s132
      %p134 = scmp.eq.s32.totalorder %s24, 0
      %p135 = por %p133, %p134
      %s137 = sadd.s32 %s136, 1
      %p140 = scmp.eq.s32.totalorder %s18, 1
      %p141 = scmp.ne.s32.totalorder %s136, %s138
      %p142 = scmp.eq.s32.totalorder %s18, 0
      %p143 = por %p141, %p142
      %p144 = scmp.ne.s32.totalorder %s136, %s138
      %p145 = scmp.eq.s32.totalorder %s23, 1
      %p146 = por %p144, %p145
      %p147 = scmp.ne.s32.totalorder %s138, %s139
      %p148 = scmp.eq.s32.totalorder %s23, 0
      %p149 = por %p147, %p148
      %p150 = scmp.ne.s32.totalorder %s138, %s139
      %p151 = scmp.eq.s32.totalorder %s24, 1
      %p152 = por %p150, %p151
      %p154 = scmp.ne.s32.totalorder %s139, %s153
      %p155 = scmp.eq.s32.totalorder %s24, 0
      %p156 = por %p154, %p155
      %s158 = sadd.s32 %s157, 1
      %p161 = scmp.eq.s32.totalorder %s18, 1
      %p162 = scmp.ne.s32.totalorder %s157, %s159
      %p163 = scmp.eq.s32.totalorder %s18, 0
      %p164 = por %p162, %p163
      %p165 = scmp.ne.s32.totalorder %s157, %s159
      %p166 = scmp.eq.s32.totalorder %s23, 1
      %p167 = por %p165, %p166
      %p168 = scmp.ne.s32.totalorder %s159, %s160
      %p169 = scmp.eq.s32.totalorder %s23, 0
      %p170 = por %p168, %p169
      %p171 = scmp.ne.s32.totalorder %s159, %s160
      %p172 = scmp.eq.s32.totalorder %s24, 1
      %p173 = por %p171, %p172
      %p175 = scmp.ne.s32.totalorder %s160, %s174
      %p176 = scmp.eq.s32.totalorder %s24, 0
      %p177 = por %p175, %p176
      %s179 = sadd.s32 %s178, 1
      %p182 = scmp.eq.s32.totalorder %s18, 1
      %p183 = scmp.ne.s32.totalorder %s178, %s180
      %p184 = scmp.eq.s32.totalorder %s18, 0
      %p185 = por %p183, %p184
      %p186 = scmp.ne.s32.totalorder %s178, %s180
      %p187 = scmp.eq.s32.totalorder %s23, 1
      %p188 = por %p186, %p187
      %p189 = scmp.ne.s32.totalorder %s180, %s181
      %p190 = scmp.eq.s32.totalorder %s23, 0
      %p191 = por %p189, %p190
      %p192 = scmp.ne.s32.totalorder %s180, %s181
      %p193 = scmp.eq.s32.totalorder %s24, 1
      %p194 = por %p192, %p193
      %p196 = scmp.ne.s32.totalorder %s181, %s195
      %p197 = scmp.eq.s32.totalorder %s24, 0
      %p198 = por %p196, %p197
      %s200 = sadd.s32 %s199, 1
      %p203 = scmp.eq.s32.totalorder %s18, 1
      %p204 = scmp.ne.s32.totalorder %s199, %s201
      %p205 = scmp.eq.s32.totalorder %s18, 0
      %p206 = por %p204, %p205
      %p207 = scmp.ne.s32.totalorder %s199, %s201
      %p208 = scmp.eq.s32.totalorder %s23, 1
      %p209 = por %p207, %p208
      %p210 = scmp.ne.s32.totalorder %s201, %s202
      %p211 = scmp.eq.s32.totalorder %s23, 0
      %p212 = por %p210, %p211
      %p213 = scmp.ne.s32.totalorder %s201, %s202
      %p214 = scmp.eq.s32.totalorder %s24, 1
      %p215 = por %p213, %p214
      %p217 = scmp.ne.s32.totalorder %s202, %s216
      %p218 = scmp.eq.s32.totalorder %s24, 0
      %p219 = por %p217, %p218
      %s220 = ssub.s32 %s18, %s25
      %p221 = scmp.eq.s32.totalorder %s220, 0
      %s223 = sadd.s32 %s222, 1
      %s224 = scalar_select %p221, %s222, %s223
      %p227 = pneg %p221
      %p228 = scmp.eq.s32.totalorder %s18, 1
      %p229 = por %p227, %p228
      %p230 = scmp.ne.s32.totalorder %s222, %s225
      %p231 = scmp.eq.s32.totalorder %s18, 0
      %p232 = por %p230, %p231
      %p233 = scmp.ne.s32.totalorder %s222, %s225
      %p234 = scmp.eq.s32.totalorder %s23, 1
      %p235 = por %p233, %p234
      %p236 = scmp.ne.s32.totalorder %s225, %s226
      %p237 = scmp.eq.s32.totalorder %s23, 0
      %p238 = por %p236, %p237
      %p239 = scmp.ne.s32.totalorder %s225, %s226
      %p240 = scmp.eq.s32.totalorder %s24, 1
      %p241 = por %p239, %p240
      %p243 = scmp.ne.s32.totalorder %s226, %s242
      %p244 = scmp.eq.s32.totalorder %s24, 0
      %p245 = por %p243, %p244
      %p246 = scmp.le.s32.totalorder 1, %s18
      %p247 = scmp.lt.s32.totalorder %s18, 3
      %p248 = pnand %p246, %p247
      %p249 = pneg %p248
      // Predicated region
      $region9: #{tpu_custom_call.1} parent=5 // pred_check
        _
      $region10: #{tpu_custom_call.1} parent=5 // pred_check_branch
        %251 = sbr.rel (%p248) target = $region12
      $region11: #{tpu_custom_call.1} parent=5 // pred_region
        %s252 = ssub.s32 %s18, 1
        // Predicated region
        $region13: #{tpu_custom_call.1} parent=11 // pred_check
          %p253 = pneg %p65
        $region14: #{tpu_custom_call.1} parent=11 // pred_check_branch
          %255 = sbr.rel (%p253) target = $region16
        $region15: #{tpu_custom_call.1} parent=11 // pred_region
          _
        $region16: #{tpu_custom_call.1} parent=11 // pred_fallthru
          _
        // Predicated region
        $region17: #{tpu_custom_call.1} parent=11 // pred_check
          %p256 = pneg %p86
        $region18: #{tpu_custom_call.1} parent=11 // pred_check_branch
          %258 = sbr.rel (%p256) target = $region20
        $region19: #{tpu_custom_call.1} parent=11 // pred_region
          %s260 = ssub.s32 3072, 3072
          %261 = vsyncadd [#allocation4], %s260
          %s262 = sshll.u32 [#allocation3], 4
          %s263 = int_to_ptr.vmem [resolvable:$true] %s262
          %268 = dma.hbm_to_vmem [thread:$0]  %s2, 3072, %s263, [#allocation4], 128, 128, 8
        $region20: #{tpu_custom_call.1} parent=11 // pred_fallthru
          _
        // Predicated region
        $region21: #{tpu_custom_call.1} parent=11 // pred_check
          %p269 = pneg %p107
        $region22: #{tpu_custom_call.1} parent=11 // pred_check_branch
          %271 = sbr.rel (%p269) target = $region24
        $region23: #{tpu_custom_call.1} parent=11 // pred_region
          %s273 = ssub.s32 1536, 1536
          %274 = vsyncadd [#allocation6], %s273
          %s275 = sshll.u32 [#allocation5], 4
          %s276 = int_to_ptr.vmem [resolvable:$true] %s275
          %281 = dma.hbm_to_vmem [thread:$0]  %s3, 1536, %s276, [#allocation6], 128, 128, 8
        $region24: #{tpu_custom_call.1} parent=11 // pred_fallthru
          _
        // Predicated region
        $region25: #{tpu_custom_call.1} parent=11 // pred_check
          %p282 = pneg %p128
        $region26: #{tpu_custom_call.1} parent=11 // pred_check_branch
          %284 = sbr.rel (%p282) target = $region28
        $region27: #{tpu_custom_call.1} parent=11 // pred_region
          _
        $region28: #{tpu_custom_call.1} parent=11 // pred_fallthru
          _
        // Predicated region
        $region29: #{tpu_custom_call.1} parent=11 // pred_check
          %p285 = pneg %p149
        $region30: #{tpu_custom_call.1} parent=11 // pred_check_branch
          %287 = sbr.rel (%p285) target = $region32
        $region31: #{tpu_custom_call.1} parent=11 // pred_region
          %s289 = ssub.s32 4608, 4608
          %290 = vsyncadd [#allocation6], %s289
          %s291 = sshll.u32 [#allocation7], 4
          %s292 = int_to_ptr.vmem [resolvable:$true] %s291
          %297 = dma.hbm_to_vmem [thread:$0]  %s5, 4608, %s292, [#allocation6], 128, 128, 8
        $region32: #{tpu_custom_call.1} parent=11 // pred_fallthru
          _
        // Predicated region
        $region33: #{tpu_custom_call.1} parent=11 // pred_check
          %p298 = pneg %p170
        $region34: #{tpu_custom_call.1} parent=11 // pred_check_branch
          %300 = sbr.rel (%p298) target = $region36
        $region35: #{tpu_custom_call.1} parent=11 // pred_region
          _
        $region36: #{tpu_custom_call.1} parent=11 // pred_fallthru
          _
        // Predicated region
        $region37: #{tpu_custom_call.1} parent=11 // pred_check
          %p301 = pneg %p191
        $region38: #{tpu_custom_call.1} parent=11 // pred_check_branch
          %303 = sbr.rel (%p301) target = $region40
        $region39: #{tpu_custom_call.1} parent=11 // pred_region
          %s305 = ssub.s32 1536, 1536
          %306 = vsyncadd [#allocation9], %s305
          %s307 = sshll.u32 [#allocation8], 4
          %s308 = int_to_ptr.vmem [resolvable:$true] %s307
          %313 = dma.hbm_to_vmem [thread:$0]  %s7, 1536, %s308, [#allocation9], 128, 128, 8
        $region40: #{tpu_custom_call.1} parent=11 // pred_fallthru
          _
        // Predicated region
        $region41: #{tpu_custom_call.1} parent=11 // pred_check
          %p314 = pneg %p212
        $region42: #{tpu_custom_call.1} parent=11 // pred_check_branch
          %316 = sbr.rel (%p314) target = $region44
        $region43: #{tpu_custom_call.1} parent=11 // pred_region
          _
        $region44: #{tpu_custom_call.1} parent=11 // pred_fallthru
          _
      $region12: #{tpu_custom_call.1} parent=5 // pred_fallthru
        _
      %p317 = scmp.lt.s32.totalorder %s18, 2
      // Predicated region
      $region45: #{tpu_custom_call.1} parent=5 // pred_check
        %p318 = pneg %p317
      $region46: #{tpu_custom_call.1} parent=5 // pred_check_branch
        %320 = sbr.rel (%p318) target = $region48
      $region47: #{tpu_custom_call.1} parent=5 // pred_region
        // Predicated region
        $region49: #{tpu_custom_call.1} parent=47 // pred_check
          %p321 = pneg %p38
        $region50: #{tpu_custom_call.1} parent=47 // pred_check_branch
          %323 = sbr.rel (%p321) target = $region52
        $region51: #{tpu_custom_call.1} parent=47 // pred_region
          %p324 = scmp.lt.s32.totalorder %s18, 1
          %s325 = scalar_select %p324, %s18, 1
          %s326 = smul.addr %s325, 8
          %s327 = smul.addr %s326, 8
          %s328 = scalar_lea.vmem %s0, %s327
        $region52: #{tpu_custom_call.1} parent=47 // pred_fallthru
          _
      $region48: #{tpu_custom_call.1} parent=5 // pred_fallthru
        _
      %p329 = scmp.le.s32.totalorder 1, %s18
      %p330 = scmp.lt.s32.totalorder %s18, 3
      %p331 = pnand %p329, %p330
      %p332 = pneg %p331
      // Predicated region
      $region53: #{tpu_custom_call.1} parent=5 // pred_check
        _
      $region54: #{tpu_custom_call.1} parent=5 // pred_check_branch
        %334 = sbr.rel (%p331) target = $region56
      $region55: #{tpu_custom_call.1} parent=5 // pred_region
        %s335 = ssub.s32 %s18, 1
        // Predicated region
        $region57: #{tpu_custom_call.1} parent=55 // pred_check
          %p336 = pneg %p86
        $region58: #{tpu_custom_call.1} parent=55 // pred_check_branch
          %338 = sbr.rel (%p336) target = $region60
        $region59: #{tpu_custom_call.1} parent=55 // pred_region
          %339 = dma.done [#allocation4], 3072
        $region60: #{tpu_custom_call.1} parent=55 // pred_fallthru
          _
        // Predicated region
        $region61: #{tpu_custom_call.1} parent=55 // pred_check
          %p340 = pneg %p107
        $region62: #{tpu_custom_call.1} parent=55 // pred_check_branch
          %342 = sbr.rel (%p340) target = $region64
        $region63: #{tpu_custom_call.1} parent=55 // pred_region
          %343 = dma.done [#allocation6], 1536
        $region64: #{tpu_custom_call.1} parent=55 // pred_fallthru
          _
        // Predicated region
        $region65: #{tpu_custom_call.1} parent=55 // pred_check
          %p344 = pneg %p149
        $region66: #{tpu_custom_call.1} parent=55 // pred_check_branch
          %346 = sbr.rel (%p344) target = $region68
        $region67: #{tpu_custom_call.1} parent=55 // pred_region
          %347 = dma.done [#allocation6], 4608
        $region68: #{tpu_custom_call.1} parent=55 // pred_fallthru
          _
        // Predicated region
        $region69: #{tpu_custom_call.1} parent=55 // pred_check
          %p348 = pneg %p191
        $region70: #{tpu_custom_call.1} parent=55 // pred_check_branch
          %350 = sbr.rel (%p348) target = $region72
        $region71: #{tpu_custom_call.1} parent=55 // pred_region
          %351 = dma.done [#allocation9], 1536
        $region72: #{tpu_custom_call.1} parent=55 // pred_fallthru
          _
        %p352 = scmp.lt.s32.totalorder %s23, 1
        %s353 = scalar_select %p352, %s23, 1
        %s354 = smul.addr %s353, 8
        %s355 = smul.addr %s354, 8
        %s356 = scalar_lea.vmem %s0, %s355
        %p357 = pneg %p44
        %p358 = pneg %p41
        %p359 = pneg %p65
        %p360 = pneg %p62
        %p361 = pneg %p86
        %p362 = pneg %p83
        %p363 = pneg %p107
        %p364 = pneg %p104
        %p365 = pneg %p128
        %p366 = pneg %p125
        %p367 = pneg %p149
        %p368 = pneg %p146
        %p369 = pneg %p170
        %p370 = pneg %p167
        %p371 = pneg %p191
        %p372 = pneg %p188
        %p373 = pneg %p212
        %p374 = pneg %p209
        %p375 = pneg %p238
        %p376 = pneg %p235
        %p377 = scmp.lt.s32.totalorder %s23, 1
        %s378 = scalar_select %p377, %s23, 1
        %s379 = smul.addr %s378, 8
        %s380 = smul.addr %s379, 8
        %s381 = scalar_lea.vmem %s9, %s380
        %p382 = scmp.lt.s32.totalorder %s23, 1
        %s383 = scalar_select %p382, %s23, 1
        %s384 = smul.addr %s383, 8
        %s385 = smul.addr %s384, 8
        %s386 = scalar_lea.vmem %s0, %s385
        %p387 = scmp.lt.s32.totalorder %s23, 1
        %s388 = scalar_select %p387, %s23, 1
        %s389 = smul.addr %s388, 8
        %s390 = smul.addr %s389, 8
        %s391 = scalar_lea.vmem %s9, %s390
        %vm392 = vcmask 261120
        %393 = vst.msk [vmem:[#allocation2] sm:$0xff] %vm392, 0.0
        %394 = vst.msk [vmem:[#allocation2 + $0x8] sm:$0xff] %vm392, 0.0
        %395 = vst.msk [vmem:[#allocation2 + $0x10] sm:$0xff] %vm392, 0.0
        %396 = vst.msk [vmem:[#allocation2 + $0x18] sm:$0xff] %vm392, 0.0
        %397 = vst.msk [vmem:[#allocation2 + $0x20] sm:$0xff] %vm392, 0.0
        %398 = vst.msk [vmem:[#allocation2 + $0x28] sm:$0xff] %vm392, 0.0
        %399 = vst.msk [vmem:[#allocation2 + $0x30] sm:$0xff] %vm392, 0.0
        %400 = vst.msk [vmem:[#allocation2 + $0x38] sm:$0xff] %vm392, 0.0
        %401 = vst.msk [vmem:[#allocation2 + $0x40] sm:$0xff] %vm392, 0.0
        %402 = vst.msk [vmem:[#allocation2 + $0x48] sm:$0xff] %vm392, 0.0
        %403 = vst.msk [vmem:[#allocation2 + $0x50] sm:$0xff] %vm392, 0.0
        %404 = vst.msk [vmem:[#allocation2 + $0x58] sm:$0xff] %vm392, 0.0
        %v405 = vld [vmem:[%s386] sm:$0xff]
        %v406 = vld [vmem:[%s386 + $0x8] sm:$0xff]
        %v407 = vld [vmem:[%s386 + $0x10] sm:$0xff]
        %v408 = vld [vmem:[%s386 + $0x18] sm:$0xff]
        %v409 = vld [vmem:[%s386 + $0x20] sm:$0xff]
        %v410 = vld [vmem:[%s386 + $0x28] sm:$0xff]
        %v411 = vld [vmem:[%s386 + $0x30] sm:$0xff]
        %v412 = vld [vmem:[%s386 + $0x38] sm:$0xff]
        %413 = vst.msk [vmem:[#allocation2 + $0x10] sm:$0xff] %vm392, %v405
        %414 = vst.msk [vmem:[#allocation2 + $0x18] sm:$0xff] %vm392, %v406
        %415 = vst.msk [vmem:[#allocation2 + $0x20] sm:$0xff] %vm392, %v407
        %416 = vst.msk [vmem:[#allocation2 + $0x28] sm:$0xff] %vm392, %v408
        %417 = vst.msk [vmem:[#allocation2 + $0x30] sm:$0xff] %vm392, %v409
        %418 = vst.msk [vmem:[#allocation2 + $0x38] sm:$0xff] %vm392, %v410
        %419 = vst.msk [vmem:[#allocation2 + $0x40] sm:$0xff] %vm392, %v411
        %420 = vst.msk [vmem:[#allocation2 + $0x48] sm:$0xff] %vm392, %v412
        %v421 = vld [vmem:[#allocation2 + $0xf] sm:$0xff]
        %v422 = vld [vmem:[#allocation2 + $0x17] sm:$0xff]
        %v423 = vld [vmem:[#allocation2 + $0x1f] sm:$0xff]
        %v424 = vld [vmem:[#allocation2 + $0x27] sm:$0xff]
        %v425 = vld [vmem:[#allocation2 + $0x2f] sm:$0xff]
        %v426 = vld [vmem:[#allocation2 + $0x37] sm:$0xff]
        %v427 = vld [vmem:[#allocation2 + $0x3f] sm:$0xff]
        %v428 = vld [vmem:[#allocation2 + $0x47] sm:$0xff]
        %v429 = vld [vmem:[#allocation2 + $0x11] sm:$0xff]
        %v430 = vld [vmem:[#allocation2 + $0x19] sm:$0xff]
        %v431 = vld [vmem:[#allocation2 + $0x21] sm:$0xff]
        %v432 = vld [vmem:[#allocation2 + $0x29] sm:$0xff]
        %v433 = vld [vmem:[#allocation2 + $0x31] sm:$0xff]
        %v434 = vld [vmem:[#allocation2 + $0x39] sm:$0xff]
        %v435 = vld [vmem:[#allocation2 + $0x41] sm:$0xff]
        %v436 = vld [vmem:[#allocation2 + $0x49] sm:$0xff]
        %v437 = vld [vmem:[%s1] sm:$0xff]
        %v438 = vld [vmem:[%s1 + $0x8] sm:$0xff]
        %v439 = vld [vmem:[%s1 + $0x10] sm:$0xff]
        %v440 = vld [vmem:[%s1 + $0x18] sm:$0xff]
        %v441 = vld [vmem:[#allocation3] sm:$0xff]
        %v442 = vld [vmem:[#allocation3 + $0x8] sm:$0xff]
        %v443 = vld [vmem:[#allocation3 + $0x10] sm:$0xff]
        %v444 = vld [vmem:[#allocation3 + $0x18] sm:$0xff]
        %v445 = vadd.f32 %v437, %v441
        %v446 = vadd.f32 %v438, %v442
        %v447 = vadd.f32 %v439, %v443
        %v448 = vadd.f32 %v440, %v444
        %s449 = scalar_lea.vmem %s1, 32
        %v450 = vld [vmem:[%s449] sm:$0xff]
        %v451 = vld [vmem:[%s449 + $0x8] sm:$0xff]
        %v452 = vld [vmem:[%s449 + $0x10] sm:$0xff]
        %v453 = vld [vmem:[%s449 + $0x18] sm:$0xff]
        %s454 = scalar_lea.vmem [#allocation3], 32
        %v455 = vld [vmem:[%s454] sm:$0xff]
        %v456 = vld [vmem:[%s454 + $0x8] sm:$0xff]
        %v457 = vld [vmem:[%s454 + $0x10] sm:$0xff]
        %v458 = vld [vmem:[%s454 + $0x18] sm:$0xff]
        %v459 = vadd.f32 %v450, %v455
        %v460 = vadd.f32 %v451, %v456
        %v461 = vadd.f32 %v452, %v457
        %v462 = vadd.f32 %v453, %v458
        %v464 = vsel %vm392, %v429, 0
        %v467 = vsel %vm392, %v430, 0
        %v470 = vsel %vm392, %v431, 0
        %v473 = vsel %vm392, %v432, 0
        %v476 = vsel %vm392, %v433, 0
        %v479 = vsel %vm392, %v434, 0
        %v482 = vsel %vm392, %v435, 0
        %v485 = vsel %vm392, %v436, 0
        %487 = vmatprep.subr.mxu0 0.0
        %488 = vmatpush1.msra.mxu0 %v459
        %489 = vmatprep.subr.mxu0 0.0
        %490 = vmatpush1.msra.mxu0 %v460
        %491 = vmatprep.subr.mxu0 0.0
        %492 = vmatpush1.msra.mxu0 %v461
        %493 = vmatprep.subr.mxu0 0.0
        %494 = vmatpush1.msra.mxu0 %v462
        %495 = vmatprep.subr.mxu0 0.0
        %496 = vmatpush1.msra.mxu0 0.0
        %497 = vmatprep.subr.mxu0 0.0
        %498 = vmatpush1.msra.mxu0 0.0
        %499 = vmatprep.subr.mxu0 0.0
        %500 = vmatpush1.msra.mxu0 0.0
        %501 = vmatprep.subr.mxu0 0.0
        %502 = vmatpush1.msra.mxu0 0.0
        %503 = vmatprep.subr.mxu0 0.0
        %504 = vmatpush1.msra.mxu0 0.0
        %505 = vmatprep.subr.mxu0 0.0
        %506 = vmatpush1.msra.mxu0 0.0
        %507 = vmatprep.subr.mxu0 0.0
        %508 = vmatpush1.msra.mxu0 0.0
        %509 = vmatprep.subr.mxu0 0.0
        %510 = vmatpush1.msra.mxu0 0.0
        %511 = vmatprep.subr.mxu0 0.0
        %512 = vmatpush1.msra.mxu0 0.0
        %513 = vmatprep.subr.mxu0 0.0
        %514 = vmatpush1.msra.mxu0 0.0
        %515 = vmatprep.subr.mxu0 0.0
        %516 = vmatpush1.msra.mxu0 0.0
        %517 = vmatprep.subr.mxu0 0.0
        %518 = vmatpush1.msra.mxu0 0.0
        %519 = vmatprep.subr.mxu0 0.0
        %520 = vmatpush1.msra.mxu0 0.0
        %521 = vmatprep.subr.mxu0 0.0
        %522 = vmatpush1.msra.mxu0 0.0
        %523 = vmatprep.subr.mxu0 0.0
        %524 = vmatpush1.msra.mxu0 0.0
        %525 = vmatprep.subr.mxu0 0.0
        %526 = vmatpush1.msra.mxu0 0.0
        %527 = vmatprep.subr.mxu0 0.0
        %528 = vmatpush1.msra.mxu0 0.0
        %529 = vmatprep.subr.mxu0 0.0
        %530 = vmatpush1.msra.mxu0 0.0
        %531 = vmatprep.subr.mxu0 0.0
        %532 = vmatpush1.msra.mxu0 0.0
        %533 = vmatprep.subr.mxu0 0.0
        %534 = vmatpush1.msra.mxu0 0.0
        %535 = vmatprep.subr.mxu0 0.0
        %536 = vmatpush1.msra.mxu0 0.0
        %537 = vmatprep.subr.mxu0 0.0
        %538 = vmatpush1.msra.mxu0 0.0
        %539 = vmatprep.subr.mxu0 0.0
        %540 = vmatpush1.msra.mxu0 0.0
        %541 = vmatprep.subr.mxu0 0.0
        %542 = vmatpush1.msra.mxu0 0.0
        %543 = vmatprep.subr.mxu0 0.0
        %544 = vmatpush1.msra.mxu0 0.0
        %545 = vmatprep.subr.mxu0 0.0
        %546 = vmatpush1.msra.mxu0 0.0
        %547 = vmatprep.subr.mxu0 0.0
        %548 = vmatpush1.msra.mxu0 0.0
        %549 = vmatprep.subr.mxu0 0.0
        %550 = vmatpush1.msra.mxu0 0.0
        %551 = vmatprep.mubr.f32.mxu0 0.0
        %552 = vmatmul.mubr.f32.gmra.mrb[0].mxu0 %v464
        %v553 = vpop.f32.mrb[0].mxu0
        %v554 = vadd.f32 0.0, %v553
        %v555 = vpop.f32.mrb[0].mxu0
        %556 = vmatprep.mubr.f32.mxu0 0.0
        %557 = vmatmul.mubr.f32.gmra.mrb[0].mxu0 %v467
        %v558 = vpop.f32.mrb[0].mxu0
        %v559 = vadd.f32 0.0, %v558
        %v560 = vpop.f32.mrb[0].mxu0
        %561 = vmatprep.mubr.f32.mxu0 0.0
        %562 = vmatmul.mubr.f32.gmra.mrb[0].mxu0 %v470
        %v563 = vpop.f32.mrb[0].mxu0
        %v564 = vadd.f32 0.0, %v563
        %v565 = vpop.f32.mrb[0].mxu0
        %566 = vmatprep.mubr.f32.mxu0 0.0
        %567 = vmatmul.mubr.f32.gmra.mrb[0].mxu0 %v473
        %v568 = vpop.f32.mrb[0].mxu0
        %v569 = vadd.f32 0.0, %v568
        %v570 = vpop.f32.mrb[0].mxu0
        %571 = vmatprep.mubr.f32.mxu0 0.0
        %572 = vmatmul.mubr.f32.gmra.mrb[0].mxu0 %v476
        %v573 = vpop.f32.mrb[0].mxu0
        %v574 = vadd.f32 0.0, %v573
        %v575 = vpop.f32.mrb[0].mxu0
        %576 = vmatprep.mubr.f32.mxu0 0.0
        %577 = vmatmul.mubr.f32.gmra.mrb[0].mxu0 %v479
        %v578 = vpop.f32.mrb[0].mxu0
        %v579 = vadd.f32 0.0, %v578
        %v580 = vpop.f32.mrb[0].mxu0
        %581 = vmatprep.mubr.f32.mxu0 0.0
        %582 = vmatmul.mubr.f32.gmra.mrb[0].mxu0 %v482
        %v583 = vpop.f32.mrb[0].mxu0
        %v584 = vadd.f32 0.0, %v583
        %v585 = vpop.f32.mrb[0].mxu0
        %586 = vmatprep.mubr.f32.mxu0 0.0
        %587 = vmatmul.mubr.f32.gmra.mrb[0].mxu0 %v485
        %v588 = vpop.f32.mrb[0].mxu0
        %v589 = vadd.f32 0.0, %v588
        %v590 = vpop.f32.mrb[0].mxu0
        %591 = vdwg.mxu0
        %v593 = vsel %vm392, %v421, 0
        %v596 = vsel %vm392, %v422, 0
        %v599 = vsel %vm392, %v423, 0
        %v602 = vsel %vm392, %v424, 0
        %v605 = vsel %vm392, %v425, 0
        %v608 = vsel %vm392, %v426, 0
        %v611 = vsel %vm392, %v427, 0
        %v614 = vsel %vm392, %v428, 0
        %616 = vmatprep.subr.mxu0 0.0
        %617 = vmatpush1.msra.mxu0 %v445
        %618 = vmatprep.subr.mxu0 0.0
        %619 = vmatpush1.msra.mxu0 %v446
        %620 = vmatprep.subr.mxu0 0.0
        %621 = vmatpush1.msra.mxu0 %v447
        %622 = vmatprep.subr.mxu0 0.0
        %623 = vmatpush1.msra.mxu0 %v448
        %624 = vmatprep.subr.mxu0 0.0
        %625 = vmatpush1.msra.mxu0 0.0
        %626 = vmatprep.subr.mxu0 0.0
        %627 = vmatpush1.msra.mxu0 0.0
        %628 = vmatprep.subr.mxu0 0.0
        %629 = vmatpush1.msra.mxu0 0.0
        %630 = vmatprep.subr.mxu0 0.0
        %631 = vmatpush1.msra.mxu0 0.0
        %632 = vmatprep.subr.mxu0 0.0
        %633 = vmatpush1.msra.mxu0 0.0
        %634 = vmatprep.subr.mxu0 0.0
        %635 = vmatpush1.msra.mxu0 0.0
        %636 = vmatprep.subr.mxu0 0.0
        %637 = vmatpush1.msra.mxu0 0.0
        %638 = vmatprep.subr.mxu0 0.0
        %639 = vmatpush1.msra.mxu0 0.0
        %640 = vmatprep.subr.mxu0 0.0
        %641 = vmatpush1.msra.mxu0 0.0
        %642 = vmatprep.subr.mxu0 0.0
        %643 = vmatpush1.msra.mxu0 0.0
        %644 = vmatprep.subr.mxu0 0.0
        %645 = vmatpush1.msra.mxu0 0.0
        %646 = vmatprep.subr.mxu0 0.0
        %647 = vmatpush1.msra.mxu0 0.0
        %648 = vmatprep.subr.mxu0 0.0
        %649 = vmatpush1.msra.mxu0 0.0
        %650 = vmatprep.subr.mxu0 0.0
        %651 = vmatpush1.msra.mxu0 0.0
        %652 = vmatprep.subr.mxu0 0.0
        %653 = vmatpush1.msra.mxu0 0.0
        %654 = vmatprep.subr.mxu0 0.0
        %655 = vmatpush1.msra.mxu0 0.0
        %656 = vmatprep.subr.mxu0 0.0
        %657 = vmatpush1.msra.mxu0 0.0
        %658 = vmatprep.subr.mxu0 0.0
        %659 = vmatpush1.msra.mxu0 0.0
        %660 = vmatprep.subr.mxu0 0.0
        %661 = vmatpush1.msra.mxu0 0.0
        %662 = vmatprep.subr.mxu0 0.0
        %663 = vmatpush1.msra.mxu0 0.0
        %664 = vmatprep.subr.mxu0 0.0
        %665 = vmatpush1.msra.mxu0 0.0
        %666 = vmatprep.subr.mxu0 0.0
        %667 = vmatpush1.msra.mxu0 0.0
        %668 = vmatprep.subr.mxu0 0.0
        %669 = vmatpush1.msra.mxu0 0.0
        %670 = vmatprep.subr.mxu0 0.0
        %671 = vmatpush1.msra.mxu0 0.0
        %672 = vmatprep.subr.mxu0 0.0
        %673 = vmatpush1.msra.mxu0 0.0
        %674 = vmatprep.subr.mxu0 0.0
        %675 = vmatpush1.msra.mxu0 0.0
        %676 = vmatprep.subr.mxu0 0.0
        %677 = vmatpush1.msra.mxu0 0.0
        %678 = vmatprep.subr.mxu0 0.0
        %679 = vmatpush1.msra.mxu0 0.0
        %680 = vmatprep.mubr.f32.mxu0 0.0
        %681 = vmatmul.mubr.f32.gmra.mrb[0].mxu0 %v593
        %v682 = vpop.f32.mrb[0].mxu0
        %v683 = vadd.f32 %v554, %v682
        %v684 = vpop.f32.mrb[0].mxu0
        %685 = vmatprep.mubr.f32.mxu0 0.0
        %686 = vmatmul.mubr.f32.gmra.mrb[0].mxu0 %v596
        %v687 = vpop.f32.mrb[0].mxu0
        %v688 = vadd.f32 %v559, %v687
        %v689 = vpop.f32.mrb[0].mxu0
        %690 = vmatprep.mubr.f32.mxu0 0.0
        %691 = vmatmul.mubr.f32.gmra.mrb[0].mxu0 %v599
        %v692 = vpop.f32.mrb[0].mxu0
        %v693 = vadd.f32 %v564, %v692
        %v694 = vpop.f32.mrb[0].mxu0
        %695 = vmatprep.mubr.f32.mxu0 0.0
        %696 = vmatmul.mubr.f32.gmra.mrb[0].mxu0 %v602
        %v697 = vpop.f32.mrb[0].mxu0
        %v698 = vadd.f32 %v569, %v697
        %v699 = vpop.f32.mrb[0].mxu0
        %700 = vmatprep.mubr.f32.mxu0 0.0
        %701 = vmatmul.mubr.f32.gmra.mrb[0].mxu0 %v605
        %v702 = vpop.f32.mrb[0].mxu0
        %v703 = vadd.f32 %v574, %v702
        %v704 = vpop.f32.mrb[0].mxu0
        %705 = vmatprep.mubr.f32.mxu0 0.0
        %706 = vmatmul.mubr.f32.gmra.mrb[0].mxu0 %v608
        %v707 = vpop.f32.mrb[0].mxu0
        %v708 = vadd.f32 %v579, %v707
        %v709 = vpop.f32.mrb[0].mxu0
        %710 = vmatprep.mubr.f32.mxu0 0.0
        %711 = vmatmul.mubr.f32.gmra.mrb[0].mxu0 %v611
        %v712 = vpop.f32.mrb[0].mxu0
        %v713 = vadd.f32 %v584, %v712
        %v714 = vpop.f32.mrb[0].mxu0
        %715 = vmatprep.mubr.f32.mxu0 0.0
        %716 = vmatmul.mubr.f32.gmra.mrb[0].mxu0 %v614
        %v717 = vpop.f32.mrb[0].mxu0
        %v718 = vadd.f32 %v589, %v717
        %v719 = vpop.f32.mrb[0].mxu0
        %720 = vdwg.mxu0
        %v721 = vld [vmem:[#allocation5] sm:$0xff]
        %v722 = vld [vmem:[#allocation5 + $0x8] sm:$0xff]
        %v723 = vld [vmem:[#allocation5 + $0x10] sm:$0xff]
        %v724 = vld [vmem:[#allocation5 + $0x18] sm:$0xff]
        %v726 = vsel %vm392, %v405, 0
        %v729 = vsel %vm392, %v406, 0
        %v732 = vsel %vm392, %v407, 0
        %v735 = vsel %vm392, %v408, 0
        %v738 = vsel %vm392, %v409, 0
        %v741 = vsel %vm392, %v410, 0
        %v744 = vsel %vm392, %v411, 0
        %v747 = vsel %vm392, %v412, 0
        %749 = vmatprep.subr.mxu0 0.0
        %750 = vmatpush1.msra.mxu0 %v721
        %751 = vmatprep.subr.mxu0 0.0
        %752 = vmatpush1.msra.mxu0 %v722
        %753 = vmatprep.subr.mxu0 0.0
        %754 = vmatpush1.msra.mxu0 %v723
        %755 = vmatprep.subr.mxu0 0.0
        %756 = vmatpush1.msra.mxu0 %v724
        %757 = vmatprep.subr.mxu0 0.0
        %758 = vmatpush1.msra.mxu0 0.0
        %759 = vmatprep.subr.mxu0 0.0
        %760 = vmatpush1.msra.mxu0 0.0
        %761 = vmatprep.subr.mxu0 0.0
        %762 = vmatpush1.msra.mxu0 0.0
        %763 = vmatprep.subr.mxu0 0.0
        %764 = vmatpush1.msra.mxu0 0.0
        %765 = vmatprep.subr.mxu0 0.0
        %766 = vmatpush1.msra.mxu0 0.0
        %767 = vmatprep.subr.mxu0 0.0
        %768 = vmatpush1.msra.mxu0 0.0
        %769 = vmatprep.subr.mxu0 0.0
        %770 = vmatpush1.msra.mxu0 0.0
        %771 = vmatprep.subr.mxu0 0.0
        %772 = vmatpush1.msra.mxu0 0.0
        %773 = vmatprep.subr.mxu0 0.0
        %774 = vmatpush1.msra.mxu0 0.0
        %775 = vmatprep.subr.mxu0 0.0
        %776 = vmatpush1.msra.mxu0 0.0
        %777 = vmatprep.subr.mxu0 0.0
        %778 = vmatpush1.msra.mxu0 0.0
        %779 = vmatprep.subr.mxu0 0.0
        %780 = vmatpush1.msra.mxu0 0.0
        %781 = vmatprep.subr.mxu0 0.0
        %782 = vmatpush1.msra.mxu0 0.0
        %783 = vmatprep.subr.mxu0 0.0
        %784 = vmatpush1.msra.mxu0 0.0
        %785 = vmatprep.subr.mxu0 0.0
        %786 = vmatpush1.msra.mxu0 0.0
        %787 = vmatprep.subr.mxu0 0.0
        %788 = vmatpush1.msra.mxu0 0.0
        %789 = vmatprep.subr.mxu0 0.0
        %790 = vmatpush1.msra.mxu0 0.0
        %791 = vmatprep.subr.mxu0 0.0
        %792 = vmatpush1.msra.mxu0 0.0
        %793 = vmatprep.subr.mxu0 0.0
        %794 = vmatpush1.msra.mxu0 0.0
        %795 = vmatprep.subr.mxu0 0.0
        %796 = vmatpush1.msra.mxu0 0.0
        %797 = vmatprep.subr.mxu0 0.0
        %798 = vmatpush1.msra.mxu0 0.0
        %799 = vmatprep.subr.mxu0 0.0
        %800 = vmatpush1.msra.mxu0 0.0
        %801 = vmatprep.subr.mxu0 0.0
        %802 = vmatpush1.msra.mxu0 0.0
        %803 = vmatprep.subr.mxu0 0.0
        %804 = vmatpush1.msra.mxu0 0.0
        %805 = vmatprep.subr.mxu0 0.0
        %806 = vmatpush1.msra.mxu0 0.0
        %807 = vmatprep.subr.mxu0 0.0
        %808 = vmatpush1.msra.mxu0 0.0
        %809 = vmatprep.subr.mxu0 0.0
        %810 = vmatpush1.msra.mxu0 0.0
        %811 = vmatprep.subr.mxu0 0.0
        %812 = vmatpush1.msra.mxu0 0.0
        %813 = vmatprep.mubr.f32.mxu0 0.0
        %814 = vmatmul.mubr.f32.gmra.mrb[0].mxu0 %v726
        %v815 = vpop.f32.mrb[0].mxu0
        %v816 = vadd.f32 0.0, %v815
        %v817 = vpop.f32.mrb[0].mxu0
        %818 = vmatprep.mubr.f32.mxu0 0.0
        %819 = vmatmul.mubr.f32.gmra.mrb[0].mxu0 %v729
        %v820 = vpop.f32.mrb[0].mxu0
        %v821 = vadd.f32 0.0, %v820
        %v822 = vpop.f32.mrb[0].mxu0
        %823 = vmatprep.mubr.f32.mxu0 0.0
        %824 = vmatmul.mubr.f32.gmra.mrb[0].mxu0 %v732
        %v825 = vpop.f32.mrb[0].mxu0
        %v826 = vadd.f32 0.0, %v825
        %v827 = vpop.f32.mrb[0].mxu0
        %828 = vmatprep.mubr.f32.mxu0 0.0
        %829 = vmatmul.mubr.f32.gmra.mrb[0].mxu0 %v735
        %v830 = vpop.f32.mrb[0].mxu0
        %v831 = vadd.f32 0.0, %v830
        %v832 = vpop.f32.mrb[0].mxu0
        %833 = vmatprep.mubr.f32.mxu0 0.0
        %834 = vmatmul.mubr.f32.gmra.mrb[0].mxu0 %v738
        %v835 = vpop.f32.mrb[0].mxu0
        %v836 = vadd.f32 0.0, %v835
        %v837 = vpop.f32.mrb[0].mxu0
        %838 = vmatprep.mubr.f32.mxu0 0.0
        %839 = vmatmul.mubr.f32.gmra.mrb[0].mxu0 %v741
        %v840 = vpop.f32.mrb[0].mxu0
        %v841 = vadd.f32 0.0, %v840
        %v842 = vpop.f32.mrb[0].mxu0
        %843 = vmatprep.mubr.f32.mxu0 0.0
        %844 = vmatmul.mubr.f32.gmra.mrb[0].mxu0 %v744
        %v845 = vpop.f32.mrb[0].mxu0
        %v846 = vadd.f32 0.0, %v845
        %v847 = vpop.f32.mrb[0].mxu0
        %848 = vmatprep.mubr.f32.mxu0 0.0
        %849 = vmatmul.mubr.f32.gmra.mrb[0].mxu0 %v747
        %v850 = vpop.f32.mrb[0].mxu0
        %v851 = vadd.f32 0.0, %v850
        %v852 = vpop.f32.mrb[0].mxu0
        %853 = vdwg.mxu0
        %v854 = vadd.f32 %v683, %v816
        %v855 = vadd.f32 %v688, %v821
        %v856 = vadd.f32 %v693, %v826
        %v857 = vadd.f32 %v698, %v831
        %v858 = vadd.f32 %v703, %v836
        %v859 = vadd.f32 %v708, %v841
        %v860 = vadd.f32 %v713, %v846
        %v861 = vadd.f32 %v718, %v851
        %v862 = vld [vmem:[%s4] sm:$0x1]
        %v863 = vlaneseq
        %v864 = vshrl.u32 %v863, 7
        %v865 = vsub.s32 0, %v864
        %v866 = vrot.slane %v862, %v865
        %v867 = vadd.f32 %v854, %v866
        %v868 = vadd.f32 %v855, %v866
        %v869 = vadd.f32 %v856, %v866
        %v870 = vadd.f32 %v857, %v866
        %v871 = vadd.f32 %v858, %v866
        %v872 = vadd.f32 %v859, %v866
        %v873 = vadd.f32 %v860, %v866
        %v874 = vadd.f32 %v861, %v866
        %875 = vst.msk [vmem:[#allocation2 + $0x10] sm:$0xff] %vm392, %v867
        %876 = vst.msk [vmem:[#allocation2 + $0x18] sm:$0xff] %vm392, %v868
        %877 = vst.msk [vmem:[#allocation2 + $0x20] sm:$0xff] %vm392, %v869
        %878 = vst.msk [vmem:[#allocation2 + $0x28] sm:$0xff] %vm392, %v870
        %879 = vst.msk [vmem:[#allocation2 + $0x30] sm:$0xff] %vm392, %v871
        %880 = vst.msk [vmem:[#allocation2 + $0x38] sm:$0xff] %vm392, %v872
        %881 = vst.msk [vmem:[#allocation2 + $0x40] sm:$0xff] %vm392, %v873
        %882 = vst.msk [vmem:[#allocation2 + $0x48] sm:$0xff] %vm392, %v874
        %v883 = vld [vmem:[#allocation2 + $0xf] sm:$0xff]
        %v884 = vld [vmem:[#allocation2 + $0x17] sm:$0xff]
        %v885 = vld [vmem:[#allocation2 + $0x1f] sm:$0xff]
        %v886 = vld [vmem:[#allocation2 + $0x27] sm:$0xff]
        %v887 = vld [vmem:[#allocation2 + $0x2f] sm:$0xff]
        %v888 = vld [vmem:[#allocation2 + $0x37] sm:$0xff]
        %v889 = vld [vmem:[#allocation2 + $0x3f] sm:$0xff]
        %v890 = vld [vmem:[#allocation2 + $0x47] sm:$0xff]
        %v891 = vld [vmem:[#allocation2 + $0x11] sm:$0xff]
        %v892 = vld [vmem:[#allocation2 + $0x19] sm:$0xff]
        %v893 = vld [vmem:[#allocation2 + $0x21] sm:$0xff]
        %v894 = vld [vmem:[#allocation2 + $0x29] sm:$0xff]
        %v895 = vld [vmem:[#allocation2 + $0x31] sm:$0xff]
        %v896 = vld [vmem:[#allocation2 + $0x39] sm:$0xff]
        %v897 = vld [vmem:[#allocation2 + $0x41] sm:$0xff]
        %v898 = vld [vmem:[#allocation2 + $0x49] sm:$0xff]
        %v899 = vld [vmem:[#allocation7] sm:$0xff]
        %v900 = vld [vmem:[#allocation7 + $0x8] sm:$0xff]
        %v901 = vld [vmem:[#allocation7 + $0x10] sm:$0xff]
        %v902 = vld [vmem:[#allocation7 + $0x18] sm:$0xff]
        %s903 = scalar_lea.vmem [#allocation7], 32
        %v904 = vld [vmem:[%s903] sm:$0xff]
        %v905 = vld [vmem:[%s903 + $0x8] sm:$0xff]
        %v906 = vld [vmem:[%s903 + $0x10] sm:$0xff]
        %v907 = vld [vmem:[%s903 + $0x18] sm:$0xff]
        %v909 = vsel %vm392, %v867, 0
        %v912 = vsel %vm392, %v868, 0
        %v915 = vsel %vm392, %v869, 0
        %v918 = vsel %vm392, %v870, 0
        %v921 = vsel %vm392, %v871, 0
        %v924 = vsel %vm392, %v872, 0
        %v927 = vsel %vm392, %v873, 0
        %v930 = vsel %vm392, %v874, 0
        %932 = vmatprep.subr.mxu0 0.0
        %933 = vmatpush1.msra.mxu0 %v904
        %934 = vmatprep.subr.mxu0 0.0
        %935 = vmatpush1.msra.mxu0 %v905
        %936 = vmatprep.subr.mxu0 0.0
        %937 = vmatpush1.msra.mxu0 %v906
        %938 = vmatprep.subr.mxu0 0.0
        %939 = vmatpush1.msra.mxu0 %v907
        %940 = vmatprep.subr.mxu0 0.0
        %941 = vmatpush1.msra.mxu0 0.0
        %942 = vmatprep.subr.mxu0 0.0
        %943 = vmatpush1.msra.mxu0 0.0
        %944 = vmatprep.subr.mxu0 0.0
        %945 = vmatpush1.msra.mxu0 0.0
        %946 = vmatprep.subr.mxu0 0.0
        %947 = vmatpush1.msra.mxu0 0.0
        %948 = vmatprep.subr.mxu0 0.0
        %949 = vmatpush1.msra.mxu0 0.0
        %950 = vmatprep.subr.mxu0 0.0
        %951 = vmatpush1.msra.mxu0 0.0
        %952 = vmatprep.subr.mxu0 0.0
        %953 = vmatpush1.msra.mxu0 0.0
        %954 = vmatprep.subr.mxu0 0.0
        %955 = vmatpush1.msra.mxu0 0.0
        %956 = vmatprep.subr.mxu0 0.0
        %957 = vmatpush1.msra.mxu0 0.0
        %958 = vmatprep.subr.mxu0 0.0
        %959 = vmatpush1.msra.mxu0 0.0
        %960 = vmatprep.subr.mxu0 0.0
        %961 = vmatpush1.msra.mxu0 0.0
        %962 = vmatprep.subr.mxu0 0.0
        %963 = vmatpush1.msra.mxu0 0.0
        %964 = vmatprep.subr.mxu0 0.0
        %965 = vmatpush1.msra.mxu0 0.0
        %966 = vmatprep.subr.mxu0 0.0
        %967 = vmatpush1.msra.mxu0 0.0
        %968 = vmatprep.subr.mxu0 0.0
        %969 = vmatpush1.msra.mxu0 0.0
        %970 = vmatprep.subr.mxu0 0.0
        %971 = vmatpush1.msra.mxu0 0.0
        %972 = vmatprep.subr.mxu0 0.0
        %973 = vmatpush1.msra.mxu0 0.0
        %974 = vmatprep.subr.mxu0 0.0
        %975 = vmatpush1.msra.mxu0 0.0
        %976 = vmatprep.subr.mxu0 0.0
        %977 = vmatpush1.msra.mxu0 0.0
        %978 = vmatprep.subr.mxu0 0.0
        %979 = vmatpush1.msra.mxu0 0.0
        %980 = vmatprep.subr.mxu0 0.0
        %981 = vmatpush1.msra.mxu0 0.0
        %982 = vmatprep.subr.mxu0 0.0
        %983 = vmatpush1.msra.mxu0 0.0
        %984 = vmatprep.subr.mxu0 0.0
        %985 = vmatpush1.msra.mxu0 0.0
        %986 = vmatprep.subr.mxu0 0.0
        %987 = vmatpush1.msra.mxu0 0.0
        %988 = vmatprep.subr.mxu0 0.0
        %989 = vmatpush1.msra.mxu0 0.0
        %990 = vmatprep.subr.mxu0 0.0
        %991 = vmatpush1.msra.mxu0 0.0
        %992 = vmatprep.subr.mxu0 0.0
        %993 = vmatpush1.msra.mxu0 0.0
        %994 = vmatprep.subr.mxu0 0.0
        %995 = vmatpush1.msra.mxu0 0.0
        %996 = vmatprep.mubr.f32.mxu0 0.0
        %997 = vmatmul.mubr.f32.gmra.mrb[0].mxu0 %v909
        %v998 = vpop.f32.mrb[0].mxu0
        %v999 = vadd.f32 0.0, %v998
        %v1000 = vpop.f32.mrb[0].mxu0
        %1001 = vmatprep.mubr.f32.mxu0 0.0
        %1002 = vmatmul.mubr.f32.gmra.mrb[0].mxu0 %v912
        %v1003 = vpop.f32.mrb[0].mxu0
        %v1004 = vadd.f32 0.0, %v1003
        %v1005 = vpop.f32.mrb[0].mxu0
        %1006 = vmatprep.mubr.f32.mxu0 0.0
        %1007 = vmatmul.mubr.f32.gmra.mrb[0].mxu0 %v915
        %v1008 = vpop.f32.mrb[0].mxu0
        %v1009 = vadd.f32 0.0, %v1008
        %v1010 = vpop.f32.mrb[0].mxu0
        %1011 = vmatprep.mubr.f32.mxu0 0.0
        %1012 = vmatmul.mubr.f32.gmra.mrb[0].mxu0 %v918
        %v1013 = vpop.f32.mrb[0].mxu0
        %v1014 = vadd.f32 0.0, %v1013
        %v1015 = vpop.f32.mrb[0].mxu0
        %1016 = vmatprep.mubr.f32.mxu0 0.0
        %1017 = vmatmul.mubr.f32.gmra.mrb[0].mxu0 %v921
        %v1018 = vpop.f32.mrb[0].mxu0
        %v1019 = vadd.f32 0.0, %v1018
        %v1020 = vpop.f32.mrb[0].mxu0
        %1021 = vmatprep.mubr.f32.mxu0 0.0
        %1022 = vmatmul.mubr.f32.gmra.mrb[0].mxu0 %v924
        %v1023 = vpop.f32.mrb[0].mxu0
        %v1024 = vadd.f32 0.0, %v1023
        %v1025 = vpop.f32.mrb[0].mxu0
        %1026 = vmatprep.mubr.f32.mxu0 0.0
        %1027 = vmatmul.mubr.f32.gmra.mrb[0].mxu0 %v927
        %v1028 = vpop.f32.mrb[0].mxu0
        %v1029 = vadd.f32 0.0, %v1028
        %v1030 = vpop.f32.mrb[0].mxu0
        %1031 = vmatprep.mubr.f32.mxu0 0.0
        %1032 = vmatmul.mubr.f32.gmra.mrb[0].mxu0 %v930
        %v1033 = vpop.f32.mrb[0].mxu0
        %v1034 = vadd.f32 0.0, %v1033
        %v1035 = vpop.f32.mrb[0].mxu0
        %1036 = vdwg.mxu0
        %v1038 = vsel %vm392, %v883, 0
        %v1041 = vsel %vm392, %v884, 0
        %v1044 = vsel %vm392, %v885, 0
        %v1047 = vsel %vm392, %v886, 0
        %v1050 = vsel %vm392, %v887, 0
        %v1053 = vsel %vm392, %v888, 0
        %v1056 = vsel %vm392, %v889, 0
        %v1059 = vsel %vm392, %v890, 0
        %1061 = vmatprep.subr.mxu0 0.0
        %1062 = vmatpush1.msra.mxu0 %v899
        %1063 = vmatprep.subr.mxu0 0.0
        %1064 = vmatpush1.msra.mxu0 %v900
        %1065 = vmatprep.subr.mxu0 0.0
        %1066 = vmatpush1.msra.mxu0 %v901
        %1067 = vmatprep.subr.mxu0 0.0
        %1068 = vmatpush1.msra.mxu0 %v902
        %1069 = vmatprep.subr.mxu0 0.0
        %1070 = vmatpush1.msra.mxu0 0.0
        %1071 = vmatprep.subr.mxu0 0.0
        %1072 = vmatpush1.msra.mxu0 0.0
        %1073 = vmatprep.subr.mxu0 0.0
        %1074 = vmatpush1.msra.mxu0 0.0
        %1075 = vmatprep.subr.mxu0 0.0
        %1076 = vmatpush1.msra.mxu0 0.0
        %1077 = vmatprep.subr.mxu0 0.0
        %1078 = vmatpush1.msra.mxu0 0.0
        %1079 = vmatprep.subr.mxu0 0.0
        %1080 = vmatpush1.msra.mxu0 0.0
        %1081 = vmatprep.subr.mxu0 0.0
        %1082 = vmatpush1.msra.mxu0 0.0
        %1083 = vmatprep.subr.mxu0 0.0
        %1084 = vmatpush1.msra.mxu0 0.0
        %1085 = vmatprep.subr.mxu0 0.0
        %1086 = vmatpush1.msra.mxu0 0.0
        %1087 = vmatprep.subr.mxu0 0.0
        %1088 = vmatpush1.msra.mxu0 0.0
        %1089 = vmatprep.subr.mxu0 0.0
        %1090 = vmatpush1.msra.mxu0 0.0
        %1091 = vmatprep.subr.mxu0 0.0
        %1092 = vmatpush1.msra.mxu0 0.0
        %1093 = vmatprep.subr.mxu0 0.0
        %1094 = vmatpush1.msra.mxu0 0.0
        %1095 = vmatprep.subr.mxu0 0.0
        %1096 = vmatpush1.msra.mxu0 0.0
        %1097 = vmatprep.subr.mxu0 0.0
        %1098 = vmatpush1.msra.mxu0 0.0
        %1099 = vmatprep.subr.mxu0 0.0
        %1100 = vmatpush1.msra.mxu0 0.0
        %1101 = vmatprep.subr.mxu0 0.0
        %1102 = vmatpush1.msra.mxu0 0.0
        %1103 = vmatprep.subr.mxu0 0.0
        %1104 = vmatpush1.msra.mxu0 0.0
        %1105 = vmatprep.subr.mxu0 0.0
        %1106 = vmatpush1.msra.mxu0 0.0
        %1107 = vmatprep.subr.mxu0 0.0
        %1108 = vmatpush1.msra.mxu0 0.0
        %1109 = vmatprep.subr.mxu0 0.0
        %1110 = vmatpush1.msra.mxu0 0.0
        %1111 = vmatprep.subr.mxu0 0.0
        %1112 = vmatpush1.msra.mxu0 0.0
        %1113 = vmatprep.subr.mxu0 0.0
        %1114 = vmatpush1.msra.mxu0 0.0
        %1115 = vmatprep.subr.mxu0 0.0
        %1116 = vmatpush1.msra.mxu0 0.0
        %1117 = vmatprep.subr.mxu0 0.0
        %1118 = vmatpush1.msra.mxu0 0.0
        %1119 = vmatprep.subr.mxu0 0.0
        %1120 = vmatpush1.msra.mxu0 0.0
        %1121 = vmatprep.subr.mxu0 0.0
        %1122 = vmatpush1.msra.mxu0 0.0
        %1123 = vmatprep.subr.mxu0 0.0
        %1124 = vmatpush1.msra.mxu0 0.0
        %1125 = vmatprep.mubr.f32.mxu0 0.0
        %1126 = vmatmul.mubr.f32.gmra.mrb[0].mxu0 %v1038
        %v1127 = vpop.f32.mrb[0].mxu0
        %v1128 = vadd.f32 %v999, %v1127
        %v1129 = vpop.f32.mrb[0].mxu0
        %1130 = vmatprep.mubr.f32.mxu0 0.0
        %1131 = vmatmul.mubr.f32.gmra.mrb[0].mxu0 %v1041
        %v1132 = vpop.f32.mrb[0].mxu0
        %v1133 = vadd.f32 %v1004, %v1132
        %v1134 = vpop.f32.mrb[0].mxu0
        %1135 = vmatprep.mubr.f32.mxu0 0.0
        %1136 = vmatmul.mubr.f32.gmra.mrb[0].mxu0 %v1044
        %v1137 = vpop.f32.mrb[0].mxu0
        %v1138 = vadd.f32 %v1009, %v1137
        %v1139 = vpop.f32.mrb[0].mxu0
        %1140 = vmatprep.mubr.f32.mxu0 0.0
        %1141 = vmatmul.mubr.f32.gmra.mrb[0].mxu0 %v1047
        %v1142 = vpop.f32.mrb[0].mxu0
        %v1143 = vadd.f32 %v1014, %v1142
        %v1144 = vpop.f32.mrb[0].mxu0
        %1145 = vmatprep.mubr.f32.mxu0 0.0
        %1146 = vmatmul.mubr.f32.gmra.mrb[0].mxu0 %v1050
        %v1147 = vpop.f32.mrb[0].mxu0
        %v1148 = vadd.f32 %v1019, %v1147
        %v1149 = vpop.f32.mrb[0].mxu0
        %1150 = vmatprep.mubr.f32.mxu0 0.0
        %1151 = vmatmul.mubr.f32.gmra.mrb[0].mxu0 %v1053
        %v1152 = vpop.f32.mrb[0].mxu0
        %v1153 = vadd.f32 %v1024, %v1152
        %v1154 = vpop.f32.mrb[0].mxu0
        %1155 = vmatprep.mubr.f32.mxu0 0.0
        %1156 = vmatmul.mubr.f32.gmra.mrb[0].mxu0 %v1056
        %v1157 = vpop.f32.mrb[0].mxu0
        %v1158 = vadd.f32 %v1029, %v1157
        %v1159 = vpop.f32.mrb[0].mxu0
        %1160 = vmatprep.mubr.f32.mxu0 0.0
        %1161 = vmatmul.mubr.f32.gmra.mrb[0].mxu0 %v1059
        %v1162 = vpop.f32.mrb[0].mxu0
        %v1163 = vadd.f32 %v1034, %v1162
        %v1164 = vpop.f32.mrb[0].mxu0
        %1165 = vdwg.mxu0
        %s1166 = scalar_lea.vmem [#allocation7], 64
        %v1167 = vld [vmem:[%s1166] sm:$0xff]
        %v1168 = vld [vmem:[%s1166 + $0x8] sm:$0xff]
        %v1169 = vld [vmem:[%s1166 + $0x10] sm:$0xff]
        %v1170 = vld [vmem:[%s1166 + $0x18] sm:$0xff]
        %v1172 = vsel %vm392, %v891, 0
        %v1175 = vsel %vm392, %v892, 0
        %v1178 = vsel %vm392, %v893, 0
        %v1181 = vsel %vm392, %v894, 0
        %v1184 = vsel %vm392, %v895, 0
        %v1187 = vsel %vm392, %v896, 0
        %v1190 = vsel %vm392, %v897, 0
        %v1193 = vsel %vm392, %v898, 0
        %1195 = vmatprep.subr.mxu0 0.0
        %1196 = vmatpush1.msra.mxu0 %v1167
        %1197 = vmatprep.subr.mxu0 0.0
        %1198 = vmatpush1.msra.mxu0 %v1168
        %1199 = vmatprep.subr.mxu0 0.0
        %1200 = vmatpush1.msra.mxu0 %v1169
        %1201 = vmatprep.subr.mxu0 0.0
        %1202 = vmatpush1.msra.mxu0 %v1170
        %1203 = vmatprep.subr.mxu0 0.0
        %1204 = vmatpush1.msra.mxu0 0.0
        %1205 = vmatprep.subr.mxu0 0.0
        %1206 = vmatpush1.msra.mxu0 0.0
        %1207 = vmatprep.subr.mxu0 0.0
        %1208 = vmatpush1.msra.mxu0 0.0
        %1209 = vmatprep.subr.mxu0 0.0
        %1210 = vmatpush1.msra.mxu0 0.0
        %1211 = vmatprep.subr.mxu0 0.0
        %1212 = vmatpush1.msra.mxu0 0.0
        %1213 = vmatprep.subr.mxu0 0.0
        %1214 = vmatpush1.msra.mxu0 0.0
        %1215 = vmatprep.subr.mxu0 0.0
        %1216 = vmatpush1.msra.mxu0 0.0
        %1217 = vmatprep.subr.mxu0 0.0
        %1218 = vmatpush1.msra.mxu0 0.0
        %1219 = vmatprep.subr.mxu0 0.0
        %1220 = vmatpush1.msra.mxu0 0.0
        %1221 = vmatprep.subr.mxu0 0.0
        %1222 = vmatpush1.msra.mxu0 0.0
        %1223 = vmatprep.subr.mxu0 0.0
        %1224 = vmatpush1.msra.mxu0 0.0
        %1225 = vmatprep.subr.mxu0 0.0
        %1226 = vmatpush1.msra.mxu0 0.0
        %1227 = vmatprep.subr.mxu0 0.0
        %1228 = vmatpush1.msra.mxu0 0.0
        %1229 = vmatprep.subr.mxu0 0.0
        %1230 = vmatpush1.msra.mxu0 0.0
        %1231 = vmatprep.subr.mxu0 0.0
        %1232 = vmatpush1.msra.mxu0 0.0
        %1233 = vmatprep.subr.mxu0 0.0
        %1234 = vmatpush1.msra.mxu0 0.0
        %1235 = vmatprep.subr.mxu0 0.0
        %1236 = vmatpush1.msra.mxu0 0.0
        %1237 = vmatprep.subr.mxu0 0.0
        %1238 = vmatpush1.msra.mxu0 0.0
        %1239 = vmatprep.subr.mxu0 0.0
        %1240 = vmatpush1.msra.mxu0 0.0
        %1241 = vmatprep.subr.mxu0 0.0
        %1242 = vmatpush1.msra.mxu0 0.0
        %1243 = vmatprep.subr.mxu0 0.0
        %1244 = vmatpush1.msra.mxu0 0.0
        %1245 = vmatprep.subr.mxu0 0.0
        %1246 = vmatpush1.msra.mxu0 0.0
        %1247 = vmatprep.subr.mxu0 0.0
        %1248 = vmatpush1.msra.mxu0 0.0
        %1249 = vmatprep.subr.mxu0 0.0
        %1250 = vmatpush1.msra.mxu0 0.0
        %1251 = vmatprep.subr.mxu0 0.0
        %1252 = vmatpush1.msra.mxu0 0.0
        %1253 = vmatprep.subr.mxu0 0.0
        %1254 = vmatpush1.msra.mxu0 0.0
        %1255 = vmatprep.subr.mxu0 0.0
        %1256 = vmatpush1.msra.mxu0 0.0
        %1257 = vmatprep.subr.mxu0 0.0
        %1258 = vmatpush1.msra.mxu0 0.0
        %1259 = vmatprep.mubr.f32.mxu0 0.0
        %1260 = vmatmul.mubr.f32.gmra.mrb[0].mxu0 %v1172
        %v1261 = vpop.f32.mrb[0].mxu0
        %v1262 = vadd.f32 0.0, %v1261
        %v1263 = vpop.f32.mrb[0].mxu0
        %1264 = vmatprep.mubr.f32.mxu0 0.0
        %1265 = vmatmul.mubr.f32.gmra.mrb[0].mxu0 %v1175
        %v1266 = vpop.f32.mrb[0].mxu0
        %v1267 = vadd.f32 0.0, %v1266
        %v1268 = vpop.f32.mrb[0].mxu0
        %1269 = vmatprep.mubr.f32.mxu0 0.0
        %1270 = vmatmul.mubr.f32.gmra.mrb[0].mxu0 %v1178
        %v1271 = vpop.f32.mrb[0].mxu0
        %v1272 = vadd.f32 0.0, %v1271
        %v1273 = vpop.f32.mrb[0].mxu0
        %1274 = vmatprep.mubr.f32.mxu0 0.0
        %1275 = vmatmul.mubr.f32.gmra.mrb[0].mxu0 %v1181
        %v1276 = vpop.f32.mrb[0].mxu0
        %v1277 = vadd.f32 0.0, %v1276
        %v1278 = vpop.f32.mrb[0].mxu0
        %1279 = vmatprep.mubr.f32.mxu0 0.0
        %1280 = vmatmul.mubr.f32.gmra.mrb[0].mxu0 %v1184
        %v1281 = vpop.f32.mrb[0].mxu0
        %v1282 = vadd.f32 0.0, %v1281
        %v1283 = vpop.f32.mrb[0].mxu0
        %1284 = vmatprep.mubr.f32.mxu0 0.0
        %1285 = vmatmul.mubr.f32.gmra.mrb[0].mxu0 %v1187
        %v1286 = vpop.f32.mrb[0].mxu0
        %v1287 = vadd.f32 0.0, %v1286
        %v1288 = vpop.f32.mrb[0].mxu0
        %1289 = vmatprep.mubr.f32.mxu0 0.0
        %1290 = vmatmul.mubr.f32.gmra.mrb[0].mxu0 %v1190
        %v1291 = vpop.f32.mrb[0].mxu0
        %v1292 = vadd.f32 0.0, %v1291
        %v1293 = vpop.f32.mrb[0].mxu0
        %1294 = vmatprep.mubr.f32.mxu0 0.0
        %1295 = vmatmul.mubr.f32.gmra.mrb[0].mxu0 %v1193
        %v1296 = vpop.f32.mrb[0].mxu0
        %v1297 = vadd.f32 0.0, %v1296
        %v1298 = vpop.f32.mrb[0].mxu0
        %1299 = vdwg.mxu0
        %v1300 = vadd.f32 %v1128, %v1262
        %v1301 = vadd.f32 %v1133, %v1267
        %v1302 = vadd.f32 %v1138, %v1272
        %v1303 = vadd.f32 %v1143, %v1277
        %v1304 = vadd.f32 %v1148, %v1282
        %v1305 = vadd.f32 %v1153, %v1287
        %v1306 = vadd.f32 %v1158, %v1292
        %v1307 = vadd.f32 %v1163, %v1297
        %v1308 = vld [vmem:[%s6] sm:$0x1]
        %v1309 = vlaneseq
        %v1310 = vshrl.u32 %v1309, 7
        %v1311 = vsub.s32 0, %v1310
        %v1312 = vrot.slane %v1308, %v1311
        %v1313 = vadd.f32 %v1300, %v1312
        %v1314 = vadd.f32 %v1301, %v1312
        %v1315 = vadd.f32 %v1302, %v1312
        %v1316 = vadd.f32 %v1303, %v1312
        %v1317 = vadd.f32 %v1304, %v1312
        %v1318 = vadd.f32 %v1305, %v1312
        %v1319 = vadd.f32 %v1306, %v1312
        %v1320 = vadd.f32 %v1307, %v1312
        %v1321 = vxor.u32 %v1313, 2147483648
        %v1322 = vxor.u32 %v1314, 2147483648
        %v1323 = vxor.u32 %v1315, 2147483648
        %v1324 = vxor.u32 %v1316, 2147483648
        %v1325 = vxor.u32 %v1317, 2147483648
        %v1326 = vxor.u32 %v1318, 2147483648
        %v1327 = vxor.u32 %v1319, 2147483648
        %v1328 = vxor.u32 %v1320, 2147483648
        %v1329 = vmul.f32 %v1321, 1.442695
        %v1330 = vpow.pop %v1329
        %v1331 = vmul.f32 %v1322, 1.442695
        %v1332 = vpow.pop %v1331
        %v1333 = vmul.f32 %v1323, 1.442695
        %v1334 = vpow.pop %v1333
        %v1335 = vmul.f32 %v1324, 1.442695
        %v1336 = vpow.pop %v1335
        %v1337 = vmul.f32 %v1325, 1.442695
        %v1338 = vpow.pop %v1337
        %v1339 = vmul.f32 %v1326, 1.442695
        %v1340 = vpow.pop %v1339
        %v1341 = vmul.f32 %v1327, 1.442695
        %v1342 = vpow.pop %v1341
        %v1343 = vmul.f32 %v1328, 1.442695
        %v1344 = vpow.pop %v1343
        %v1345 = vadd.f32 %v1330, 1.0
        %v1346 = vadd.f32 %v1332, 1.0
        %v1347 = vadd.f32 %v1334, 1.0
        %v1348 = vadd.f32 %v1336, 1.0
        %v1349 = vadd.f32 %v1338, 1.0
        %v1350 = vadd.f32 %v1340, 1.0
        %v1351 = vadd.f32 %v1342, 1.0
        %v1352 = vadd.f32 %v1344, 1.0
        %v1353 = vrcp.pop %v1345
        %v1354 = vmul.f32 1.0, %v1353
        %v1355 = vrcp.pop %v1346
        %v1356 = vmul.f32 1.0, %v1355
        %v1357 = vrcp.pop %v1347
        %v1358 = vmul.f32 1.0, %v1357
        %v1359 = vrcp.pop %v1348
        %v1360 = vmul.f32 1.0, %v1359
        %v1361 = vrcp.pop %v1349
        %v1362 = vmul.f32 1.0, %v1361
        %v1363 = vrcp.pop %v1350
        %v1364 = vmul.f32 1.0, %v1363
        %v1365 = vrcp.pop %v1351
        %v1366 = vmul.f32 1.0, %v1365
        %v1367 = vrcp.pop %v1352
        %v1368 = vmul.f32 1.0, %v1367
        %v1369 = vtanh.pop %v1313
        %v1370 = vtanh.pop %v1314
        %v1371 = vtanh.pop %v1315
        %v1372 = vtanh.pop %v1316
        %v1373 = vtanh.pop %v1317
        %v1374 = vtanh.pop %v1318
        %v1375 = vtanh.pop %v1319
        %v1376 = vtanh.pop %v1320
        %1385 = vrot.lane.b32.xlu0 %v1369, 96
        %v1386 = vpop.permute.xlu0 %1385
        %1387 = vrot.lane.b32.xlu0 %v1370, 96
        %v1388 = vpop.permute.xlu0 %1387
        %1389 = vrot.lane.b32.xlu0 %v1371, 96
        %v1390 = vpop.permute.xlu0 %1389
        %1391 = vrot.lane.b32.xlu0 %v1372, 96
        %v1392 = vpop.permute.xlu0 %1391
        %1393 = vrot.lane.b32.xlu0 %v1373, 96
        %v1394 = vpop.permute.xlu0 %1393
        %1395 = vrot.lane.b32.xlu0 %v1374, 96
        %v1396 = vpop.permute.xlu0 %1395
        %1397 = vrot.lane.b32.xlu0 %v1375, 96
        %v1398 = vpop.permute.xlu0 %1397
        %1399 = vrot.lane.b32.xlu0 %v1376, 96
        %v1400 = vpop.permute.xlu0 %1399
        %v1409 = vmul.f32 %v1354, %v1386
        %v1410 = vmul.f32 %v1356, %v1388
        %v1411 = vmul.f32 %v1358, %v1390
        %v1412 = vmul.f32 %v1360, %v1392
        %v1413 = vmul.f32 %v1362, %v1394
        %v1414 = vmul.f32 %v1364, %v1396
        %v1415 = vmul.f32 %v1366, %v1398
        %v1416 = vmul.f32 %v1368, %v1400
        %v1417 = vld [vmem:[#allocation8] sm:$0xff]
        %v1418 = vld [vmem:[#allocation8 + $0x8] sm:$0xff]
        %v1419 = vld [vmem:[#allocation8 + $0x10] sm:$0xff]
        %v1420 = vld [vmem:[#allocation8 + $0x18] sm:$0xff]
        %v1421 = vld [vmem:[%s8] sm:$0x1]
        %v1422 = vlaneseq
        %v1423 = vshrl.u32 %v1422, 7
        %v1424 = vsub.s32 0, %v1423
        %v1425 = vrot.slane %v1421, %v1424
        %v1427 = vsel %vm392, %v1409, 0
        %v1430 = vsel %vm392, %v1410, 0
        %v1433 = vsel %vm392, %v1411, 0
        %v1436 = vsel %vm392, %v1412, 0
        %v1439 = vsel %vm392, %v1413, 0
        %v1442 = vsel %vm392, %v1414, 0
        %v1445 = vsel %vm392, %v1415, 0
        %v1448 = vsel %vm392, %v1416, 0
        %1450 = vmatprep.subr.mxu0 0.0
        %1451 = vmatpush1.msra.mxu0 %v1417
        %1452 = vmatprep.subr.mxu0 0.0
        %1453 = vmatpush1.msra.mxu0 %v1418
        %1454 = vmatprep.subr.mxu0 0.0
        %1455 = vmatpush1.msra.mxu0 %v1419
        %1456 = vmatprep.subr.mxu0 0.0
        %1457 = vmatpush1.msra.mxu0 %v1420
        %1458 = vmatprep.subr.mxu0 0.0
        %1459 = vmatpush1.msra.mxu0 0.0
        %1460 = vmatprep.subr.mxu0 0.0
        %1461 = vmatpush1.msra.mxu0 0.0
        %1462 = vmatprep.subr.mxu0 0.0
        %1463 = vmatpush1.msra.mxu0 0.0
        %1464 = vmatprep.subr.mxu0 0.0
        %1465 = vmatpush1.msra.mxu0 0.0
        %1466 = vmatprep.subr.mxu0 0.0
        %1467 = vmatpush1.msra.mxu0 0.0
        %1468 = vmatprep.subr.mxu0 0.0
        %1469 = vmatpush1.msra.mxu0 0.0
        %1470 = vmatprep.subr.mxu0 0.0
        %1471 = vmatpush1.msra.mxu0 0.0
        %1472 = vmatprep.subr.mxu0 0.0
        %1473 = vmatpush1.msra.mxu0 0.0
        %1474 = vmatprep.subr.mxu0 0.0
        %1475 = vmatpush1.msra.mxu0 0.0
        %1476 = vmatprep.subr.mxu0 0.0
        %1477 = vmatpush1.msra.mxu0 0.0
        %1478 = vmatprep.subr.mxu0 0.0
        %1479 = vmatpush1.msra.mxu0 0.0
        %1480 = vmatprep.subr.mxu0 0.0
        %1481 = vmatpush1.msra.mxu0 0.0
        %1482 = vmatprep.subr.mxu0 0.0
        %1483 = vmatpush1.msra.mxu0 0.0
        %1484 = vmatprep.subr.mxu0 0.0
        %1485 = vmatpush1.msra.mxu0 0.0
        %1486 = vmatprep.subr.mxu0 0.0
        %1487 = vmatpush1.msra.mxu0 0.0
        %1488 = vmatprep.subr.mxu0 0.0
        %1489 = vmatpush1.msra.mxu0 0.0
        %1490 = vmatprep.subr.mxu0 0.0
        %1491 = vmatpush1.msra.mxu0 0.0
        %1492 = vmatprep.subr.mxu0 0.0
        %1493 = vmatpush1.msra.mxu0 0.0
        %1494 = vmatprep.subr.mxu0 0.0
        %1495 = vmatpush1.msra.mxu0 0.0
        %1496 = vmatprep.subr.mxu0 0.0
        %1497 = vmatpush1.msra.mxu0 0.0
        %1498 = vmatprep.subr.mxu0 0.0
        %1499 = vmatpush1.msra.mxu0 0.0
        %1500 = vmatprep.subr.mxu0 0.0
        %1501 = vmatpush1.msra.mxu0 0.0
        %1502 = vmatprep.subr.mxu0 0.0
        %1503 = vmatpush1.msra.mxu0 0.0
        %1504 = vmatprep.subr.mxu0 0.0
        %1505 = vmatpush1.msra.mxu0 0.0
        %1506 = vmatprep.subr.mxu0 0.0
        %1507 = vmatpush1.msra.mxu0 0.0
        %1508 = vmatprep.subr.mxu0 0.0
        %1509 = vmatpush1.msra.mxu0 0.0
        %1510 = vmatprep.subr.mxu0 0.0
        %1511 = vmatpush1.msra.mxu0 0.0
        %1512 = vmatprep.subr.mxu0 0.0
        %1513 = vmatpush1.msra.mxu0 0.0
        %1514 = vmatprep.mubr.f32.mxu0 0.0
        %1515 = vmatmul.mubr.f32.gmra.mrb[0].mxu0 %v1427
        %v1516 = vpop.f32.mrb[0].mxu0
        %v1517 = vadd.f32 %v1425, %v1516
        %v1518 = vpop.f32.mrb[0].mxu0
        %1519 = vmatprep.mubr.f32.mxu0 0.0
        %1520 = vmatmul.mubr.f32.gmra.mrb[0].mxu0 %v1430
        %v1521 = vpop.f32.mrb[0].mxu0
        %v1522 = vadd.f32 %v1425, %v1521
        %v1523 = vpop.f32.mrb[0].mxu0
        %1524 = vmatprep.mubr.f32.mxu0 0.0
        %1525 = vmatmul.mubr.f32.gmra.mrb[0].mxu0 %v1433
        %v1526 = vpop.f32.mrb[0].mxu0
        %v1527 = vadd.f32 %v1425, %v1526
        %v1528 = vpop.f32.mrb[0].mxu0
        %1529 = vmatprep.mubr.f32.mxu0 0.0
        %1530 = vmatmul.mubr.f32.gmra.mrb[0].mxu0 %v1436
        %v1531 = vpop.f32.mrb[0].mxu0
        %v1532 = vadd.f32 %v1425, %v1531
        %v1533 = vpop.f32.mrb[0].mxu0
        %1534 = vmatprep.mubr.f32.mxu0 0.0
        %1535 = vmatmul.mubr.f32.gmra.mrb[0].mxu0 %v1439
        %v1536 = vpop.f32.mrb[0].mxu0
        %v1537 = vadd.f32 %v1425, %v1536
        %v1538 = vpop.f32.mrb[0].mxu0
        %1539 = vmatprep.mubr.f32.mxu0 0.0
        %1540 = vmatmul.mubr.f32.gmra.mrb[0].mxu0 %v1442
        %v1541 = vpop.f32.mrb[0].mxu0
        %v1542 = vadd.f32 %v1425, %v1541
        %v1543 = vpop.f32.mrb[0].mxu0
        %1544 = vmatprep.mubr.f32.mxu0 0.0
        %1545 = vmatmul.mubr.f32.gmra.mrb[0].mxu0 %v1445
        %v1546 = vpop.f32.mrb[0].mxu0
        %v1547 = vadd.f32 %v1425, %v1546
        %v1548 = vpop.f32.mrb[0].mxu0
        %1549 = vmatprep.mubr.f32.mxu0 0.0
        %1550 = vmatmul.mubr.f32.gmra.mrb[0].mxu0 %v1448
        %v1551 = vpop.f32.mrb[0].mxu0
        %v1552 = vadd.f32 %v1425, %v1551
        %v1553 = vpop.f32.mrb[0].mxu0
        %1554 = vdwg.mxu0
        %v1555 = vadd.f32 %v405, %v1517
        %v1556 = vadd.f32 %v406, %v1522
        %v1557 = vadd.f32 %v407, %v1527
        %v1558 = vadd.f32 %v408, %v1532
        %v1559 = vadd.f32 %v409, %v1537
        %v1560 = vadd.f32 %v410, %v1542
        %v1561 = vadd.f32 %v411, %v1547
        %v1562 = vadd.f32 %v412, %v1552
        %v1563 = vadd.f32 %v1517, 0.0
        %v1564 = vadd.f32 %v1522, 0.0
        %v1565 = vadd.f32 %v1527, 0.0
        %v1566 = vadd.f32 %v1532, 0.0
        %v1567 = vadd.f32 %v1537, 0.0
        %v1568 = vadd.f32 %v1542, 0.0
        %v1569 = vadd.f32 %v1547, 0.0
        %v1570 = vadd.f32 %v1552, 0.0
        %1571 = vst.msk [vmem:[#allocation2 + $0x10] sm:$0xff] %vm392, %v1555
        %1572 = vst.msk [vmem:[#allocation2 + $0x18] sm:$0xff] %vm392, %v1556
        %1573 = vst.msk [vmem:[#allocation2 + $0x20] sm:$0xff] %vm392, %v1557
        %1574 = vst.msk [vmem:[#allocation2 + $0x28] sm:$0xff] %vm392, %v1558
        %1575 = vst.msk [vmem:[#allocation2 + $0x30] sm:$0xff] %vm392, %v1559
        %1576 = vst.msk [vmem:[#allocation2 + $0x38] sm:$0xff] %vm392, %v1560
        %1577 = vst.msk [vmem:[#allocation2 + $0x40] sm:$0xff] %vm392, %v1561
        %1578 = vst.msk [vmem:[#allocation2 + $0x48] sm:$0xff] %vm392, %v1562
        %v1579 = vld [vmem:[#allocation2 + $0xf] sm:$0xff]
        %v1580 = vld [vmem:[#allocation2 + $0x17] sm:$0xff]
        %v1581 = vld [vmem:[#allocation2 + $0x1f] sm:$0xff]
        %v1582 = vld [vmem:[#allocation2 + $0x27] sm:$0xff]
        %v1583 = vld [vmem:[#allocation2 + $0x2f] sm:$0xff]
        %v1584 = vld [vmem:[#allocation2 + $0x37] sm:$0xff]
        %v1585 = vld [vmem:[#allocation2 + $0x3f] sm:$0xff]
        %v1586 = vld [vmem:[#allocation2 + $0x47] sm:$0xff]
        %v1587 = vld [vmem:[#allocation2 + $0x11] sm:$0xff]
        %v1588 = vld [vmem:[#allocation2 + $0x19] sm:$0xff]
        %v1589 = vld [vmem:[#allocation2 + $0x21] sm:$0xff]
        %v1590 = vld [vmem:[#allocation2 + $0x29] sm:$0xff]
        %v1591 = vld [vmem:[#allocation2 + $0x31] sm:$0xff]
        %v1592 = vld [vmem:[#allocation2 + $0x39] sm:$0xff]
        %v1593 = vld [vmem:[#allocation2 + $0x41] sm:$0xff]
        %v1594 = vld [vmem:[#allocation2 + $0x49] sm:$0xff]
        %v1595 = vld [vmem:[#allocation2 + $0xd] sm:$0xff]
        %v1596 = vld [vmem:[#allocation2 + $0x15] sm:$0xff]
        %v1597 = vld [vmem:[#allocation2 + $0x1d] sm:$0xff]
        %v1598 = vld [vmem:[#allocation2 + $0x25] sm:$0xff]
        %v1599 = vld [vmem:[#allocation2 + $0x2d] sm:$0xff]
        %v1600 = vld [vmem:[#allocation2 + $0x35] sm:$0xff]
        %v1601 = vld [vmem:[#allocation2 + $0x3d] sm:$0xff]
        %v1602 = vld [vmem:[#allocation2 + $0x45] sm:$0xff]
        %v1603 = vld [vmem:[#allocation2 + $0x13] sm:$0xff]
        %v1604 = vld [vmem:[#allocation2 + $0x1b] sm:$0xff]
        %v1605 = vld [vmem:[#allocation2 + $0x23] sm:$0xff]
        %v1606 = vld [vmem:[#allocation2 + $0x2b] sm:$0xff]
        %v1607 = vld [vmem:[#allocation2 + $0x33] sm:$0xff]
        %v1608 = vld [vmem:[#allocation2 + $0x3b] sm:$0xff]
        %v1609 = vld [vmem:[#allocation2 + $0x43] sm:$0xff]
        %v1610 = vld [vmem:[#allocation2 + $0x4b] sm:$0xff]
        %s1611 = scalar_lea.vmem %s1, 64
        %v1612 = vld [vmem:[%s1611] sm:$0xff]
        %v1613 = vld [vmem:[%s1611 + $0x8] sm:$0xff]
        %v1614 = vld [vmem:[%s1611 + $0x10] sm:$0xff]
        %v1615 = vld [vmem:[%s1611 + $0x18] sm:$0xff]
        %s1616 = scalar_lea.vmem %s1, 96
        %v1617 = vld [vmem:[%s1616] sm:$0xff]
        %v1618 = vld [vmem:[%s1616 + $0x8] sm:$0xff]
        %v1619 = vld [vmem:[%s1616 + $0x10] sm:$0xff]
        %v1620 = vld [vmem:[%s1616 + $0x18] sm:$0xff]
        %v1622 = vsel %vm392, %v1603, 0
        %v1625 = vsel %vm392, %v1604, 0
        %v1628 = vsel %vm392, %v1605, 0
        %v1631 = vsel %vm392, %v1606, 0
        %v1634 = vsel %vm392, %v1607, 0
        %v1637 = vsel %vm392, %v1608, 0
        %v1640 = vsel %vm392, %v1609, 0
        %v1643 = vsel %vm392, %v1610, 0
        %1645 = vmatprep.subr.mxu0 0.0
        %1646 = vmatpush1.msra.mxu0 %v1617
        %1647 = vmatprep.subr.mxu0 0.0
        %1648 = vmatpush1.msra.mxu0 %v1618
        %1649 = vmatprep.subr.mxu0 0.0
        %1650 = vmatpush1.msra.mxu0 %v1619
        %1651 = vmatprep.subr.mxu0 0.0
        %1652 = vmatpush1.msra.mxu0 %v1620
        %1653 = vmatprep.subr.mxu0 0.0
        %1654 = vmatpush1.msra.mxu0 0.0
        %1655 = vmatprep.subr.mxu0 0.0
        %1656 = vmatpush1.msra.mxu0 0.0
        %1657 = vmatprep.subr.mxu0 0.0
        %1658 = vmatpush1.msra.mxu0 0.0
        %1659 = vmatprep.subr.mxu0 0.0
        %1660 = vmatpush1.msra.mxu0 0.0
        %1661 = vmatprep.subr.mxu0 0.0
        %1662 = vmatpush1.msra.mxu0 0.0
        %1663 = vmatprep.subr.mxu0 0.0
        %1664 = vmatpush1.msra.mxu0 0.0
        %1665 = vmatprep.subr.mxu0 0.0
        %1666 = vmatpush1.msra.mxu0 0.0
        %1667 = vmatprep.subr.mxu0 0.0
        %1668 = vmatpush1.msra.mxu0 0.0
        %1669 = vmatprep.subr.mxu0 0.0
        %1670 = vmatpush1.msra.mxu0 0.0
        %1671 = vmatprep.subr.mxu0 0.0
        %1672 = vmatpush1.msra.mxu0 0.0
        %1673 = vmatprep.subr.mxu0 0.0
        %1674 = vmatpush1.msra.mxu0 0.0
        %1675 = vmatprep.subr.mxu0 0.0
        %1676 = vmatpush1.msra.mxu0 0.0
        %1677 = vmatprep.subr.mxu0 0.0
        %1678 = vmatpush1.msra.mxu0 0.0
        %1679 = vmatprep.subr.mxu0 0.0
        %1680 = vmatpush1.msra.mxu0 0.0
        %1681 = vmatprep.subr.mxu0 0.0
        %1682 = vmatpush1.msra.mxu0 0.0
        %1683 = vmatprep.subr.mxu0 0.0
        %1684 = vmatpush1.msra.mxu0 0.0
        %1685 = vmatprep.subr.mxu0 0.0
        %1686 = vmatpush1.msra.mxu0 0.0
        %1687 = vmatprep.subr.mxu0 0.0
        %1688 = vmatpush1.msra.mxu0 0.0
        %1689 = vmatprep.subr.mxu0 0.0
        %1690 = vmatpush1.msra.mxu0 0.0
        %1691 = vmatprep.subr.mxu0 0.0
        %1692 = vmatpush1.msra.mxu0 0.0
        %1693 = vmatprep.subr.mxu0 0.0
        %1694 = vmatpush1.msra.mxu0 0.0
        %1695 = vmatprep.subr.mxu0 0.0
        %1696 = vmatpush1.msra.mxu0 0.0
        %1697 = vmatprep.subr.mxu0 0.0
        %1698 = vmatpush1.msra.mxu0 0.0
        %1699 = vmatprep.subr.mxu0 0.0
        %1700 = vmatpush1.msra.mxu0 0.0
        %1701 = vmatprep.subr.mxu0 0.0
        %1702 = vmatpush1.msra.mxu0 0.0
        %1703 = vmatprep.subr.mxu0 0.0
        %1704 = vmatpush1.msra.mxu0 0.0
        %1705 = vmatprep.subr.mxu0 0.0
        %1706 = vmatpush1.msra.mxu0 0.0
        %1707 = vmatprep.subr.mxu0 0.0
        %1708 = vmatpush1.msra.mxu0 0.0
        %1709 = vmatprep.mubr.f32.mxu0 0.0
        %1710 = vmatmul.mubr.f32.gmra.mrb[0].mxu0 %v1622
        %v1711 = vpop.f32.mrb[0].mxu0
        %v1712 = vadd.f32 0.0, %v1711
        %v1713 = vpop.f32.mrb[0].mxu0
        %1714 = vmatprep.mubr.f32.mxu0 0.0
        %1715 = vmatmul.mubr.f32.gmra.mrb[0].mxu0 %v1625
        %v1716 = vpop.f32.mrb[0].mxu0
        %v1717 = vadd.f32 0.0, %v1716
        %v1718 = vpop.f32.mrb[0].mxu0
        %1719 = vmatprep.mubr.f32.mxu0 0.0
        %1720 = vmatmul.mubr.f32.gmra.mrb[0].mxu0 %v1628
        %v1721 = vpop.f32.mrb[0].mxu0
        %v1722 = vadd.f32 0.0, %v1721
        %v1723 = vpop.f32.mrb[0].mxu0
        %1724 = vmatprep.mubr.f32.mxu0 0.0
        %1725 = vmatmul.mubr.f32.gmra.mrb[0].mxu0 %v1631
        %v1726 = vpop.f32.mrb[0].mxu0
        %v1727 = vadd.f32 0.0, %v1726
        %v1728 = vpop.f32.mrb[0].mxu0
        %1729 = vmatprep.mubr.f32.mxu0 0.0
        %1730 = vmatmul.mubr.f32.gmra.mrb[0].mxu0 %v1634
        %v1731 = vpop.f32.mrb[0].mxu0
        %v1732 = vadd.f32 0.0, %v1731
        %v1733 = vpop.f32.mrb[0].mxu0
        %1734 = vmatprep.mubr.f32.mxu0 0.0
        %1735 = vmatmul.mubr.f32.gmra.mrb[0].mxu0 %v1637
        %v1736 = vpop.f32.mrb[0].mxu0
        %v1737 = vadd.f32 0.0, %v1736
        %v1738 = vpop.f32.mrb[0].mxu0
        %1739 = vmatprep.mubr.f32.mxu0 0.0
        %1740 = vmatmul.mubr.f32.gmra.mrb[0].mxu0 %v1640
        %v1741 = vpop.f32.mrb[0].mxu0
        %v1742 = vadd.f32 0.0, %v1741
        %v1743 = vpop.f32.mrb[0].mxu0
        %1744 = vmatprep.mubr.f32.mxu0 0.0
        %1745 = vmatmul.mubr.f32.gmra.mrb[0].mxu0 %v1643
        %v1746 = vpop.f32.mrb[0].mxu0
        %v1747 = vadd.f32 0.0, %v1746
        %v1748 = vpop.f32.mrb[0].mxu0
        %1749 = vdwg.mxu0
        %v1751 = vsel %vm392, %v1595, 0
        %v1754 = vsel %vm392, %v1596, 0
        %v1757 = vsel %vm392, %v1597, 0
        %v1760 = vsel %vm392, %v1598, 0
        %v1763 = vsel %vm392, %v1599, 0
        %v1766 = vsel %vm392, %v1600, 0
        %v1769 = vsel %vm392, %v1601, 0
        %v1772 = vsel %vm392, %v1602, 0
        %1774 = vmatprep.subr.mxu0 0.0
        %1775 = vmatpush1.msra.mxu0 %v1612
        %1776 = vmatprep.subr.mxu0 0.0
        %1777 = vmatpush1.msra.mxu0 %v1613
        %1778 = vmatprep.subr.mxu0 0.0
        %1779 = vmatpush1.msra.mxu0 %v1614
        %1780 = vmatprep.subr.mxu0 0.0
        %1781 = vmatpush1.msra.mxu0 %v1615
        %1782 = vmatprep.subr.mxu0 0.0
        %1783 = vmatpush1.msra.mxu0 0.0
        %1784 = vmatprep.subr.mxu0 0.0
        %1785 = vmatpush1.msra.mxu0 0.0
        %1786 = vmatprep.subr.mxu0 0.0
        %1787 = vmatpush1.msra.mxu0 0.0
        %1788 = vmatprep.subr.mxu0 0.0
        %1789 = vmatpush1.msra.mxu0 0.0
        %1790 = vmatprep.subr.mxu0 0.0
        %1791 = vmatpush1.msra.mxu0 0.0
        %1792 = vmatprep.subr.mxu0 0.0
        %1793 = vmatpush1.msra.mxu0 0.0
        %1794 = vmatprep.subr.mxu0 0.0
        %1795 = vmatpush1.msra.mxu0 0.0
        %1796 = vmatprep.subr.mxu0 0.0
        %1797 = vmatpush1.msra.mxu0 0.0
        %1798 = vmatprep.subr.mxu0 0.0
        %1799 = vmatpush1.msra.mxu0 0.0
        %1800 = vmatprep.subr.mxu0 0.0
        %1801 = vmatpush1.msra.mxu0 0.0
        %1802 = vmatprep.subr.mxu0 0.0
        %1803 = vmatpush1.msra.mxu0 0.0
        %1804 = vmatprep.subr.mxu0 0.0
        %1805 = vmatpush1.msra.mxu0 0.0
        %1806 = vmatprep.subr.mxu0 0.0
        %1807 = vmatpush1.msra.mxu0 0.0
        %1808 = vmatprep.subr.mxu0 0.0
        %1809 = vmatpush1.msra.mxu0 0.0
        %1810 = vmatprep.subr.mxu0 0.0
        %1811 = vmatpush1.msra.mxu0 0.0
        %1812 = vmatprep.subr.mxu0 0.0
        %1813 = vmatpush1.msra.mxu0 0.0
        %1814 = vmatprep.subr.mxu0 0.0
        %1815 = vmatpush1.msra.mxu0 0.0
        %1816 = vmatprep.subr.mxu0 0.0
        %1817 = vmatpush1.msra.mxu0 0.0
        %1818 = vmatprep.subr.mxu0 0.0
        %1819 = vmatpush1.msra.mxu0 0.0
        %1820 = vmatprep.subr.mxu0 0.0
        %1821 = vmatpush1.msra.mxu0 0.0
        %1822 = vmatprep.subr.mxu0 0.0
        %1823 = vmatpush1.msra.mxu0 0.0
        %1824 = vmatprep.subr.mxu0 0.0
        %1825 = vmatpush1.msra.mxu0 0.0
        %1826 = vmatprep.subr.mxu0 0.0
        %1827 = vmatpush1.msra.mxu0 0.0
        %1828 = vmatprep.subr.mxu0 0.0
        %1829 = vmatpush1.msra.mxu0 0.0
        %1830 = vmatprep.subr.mxu0 0.0
        %1831 = vmatpush1.msra.mxu0 0.0
        %1832 = vmatprep.subr.mxu0 0.0
        %1833 = vmatpush1.msra.mxu0 0.0
        %1834 = vmatprep.subr.mxu0 0.0
        %1835 = vmatpush1.msra.mxu0 0.0
        %1836 = vmatprep.subr.mxu0 0.0
        %1837 = vmatpush1.msra.mxu0 0.0
        %1838 = vmatprep.mubr.f32.mxu0 0.0
        %1839 = vmatmul.mubr.f32.gmra.mrb[0].mxu0 %v1751
        %v1840 = vpop.f32.mrb[0].mxu0
        %v1841 = vadd.f32 %v1712, %v1840
        %v1842 = vpop.f32.mrb[0].mxu0
        %1843 = vmatprep.mubr.f32.mxu0 0.0
        %1844 = vmatmul.mubr.f32.gmra.mrb[0].mxu0 %v1754
        %v1845 = vpop.f32.mrb[0].mxu0
        %v1846 = vadd.f32 %v1717, %v1845
        %v1847 = vpop.f32.mrb[0].mxu0
        %1848 = vmatprep.mubr.f32.mxu0 0.0
        %1849 = vmatmul.mubr.f32.gmra.mrb[0].mxu0 %v1757
        %v1850 = vpop.f32.mrb[0].mxu0
        %v1851 = vadd.f32 %v1722, %v1850
        %v1852 = vpop.f32.mrb[0].mxu0
        %1853 = vmatprep.mubr.f32.mxu0 0.0
        %1854 = vmatmul.mubr.f32.gmra.mrb[0].mxu0 %v1760
        %v1855 = vpop.f32.mrb[0].mxu0
        %v1856 = vadd.f32 %v1727, %v1855
        %v1857 = vpop.f32.mrb[0].mxu0
        %1858 = vmatprep.mubr.f32.mxu0 0.0
        %1859 = vmatmul.mubr.f32.gmra.mrb[0].mxu0 %v1763
        %v1860 = vpop.f32.mrb[0].mxu0
        %v1861 = vadd.f32 %v1732, %v1860
        %v1862 = vpop.f32.mrb[0].mxu0
        %1863 = vmatprep.mubr.f32.mxu0 0.0
        %1864 = vmatmul.mubr.f32.gmra.mrb[0].mxu0 %v1766
        %v1865 = vpop.f32.mrb[0].mxu0
        %v1866 = vadd.f32 %v1737, %v1865
        %v1867 = vpop.f32.mrb[0].mxu0
        %1868 = vmatprep.mubr.f32.mxu0 0.0
        %1869 = vmatmul.mubr.f32.gmra.mrb[0].mxu0 %v1769
        %v1870 = vpop.f32.mrb[0].mxu0
        %v1871 = vadd.f32 %v1742, %v1870
        %v1872 = vpop.f32.mrb[0].mxu0
        %1873 = vmatprep.mubr.f32.mxu0 0.0
        %1874 = vmatmul.mubr.f32.gmra.mrb[0].mxu0 %v1772
        %v1875 = vpop.f32.mrb[0].mxu0
        %v1876 = vadd.f32 %v1747, %v1875
        %v1877 = vpop.f32.mrb[0].mxu0
        %1878 = vdwg.mxu0
        %s1879 = scalar_lea.vmem [#allocation3], 64
        %v1880 = vld [vmem:[%s1879] sm:$0xff]
        %v1881 = vld [vmem:[%s1879 + $0x8] sm:$0xff]
        %v1882 = vld [vmem:[%s1879 + $0x10] sm:$0xff]
        %v1883 = vld [vmem:[%s1879 + $0x18] sm:$0xff]
        %v1885 = vsel %vm392, %v1579, 0
        %v1888 = vsel %vm392, %v1580, 0
        %v1891 = vsel %vm392, %v1581, 0
        %v1894 = vsel %vm392, %v1582, 0
        %v1897 = vsel %vm392, %v1583, 0
        %v1900 = vsel %vm392, %v1584, 0
        %v1903 = vsel %vm392, %v1585, 0
        %v1906 = vsel %vm392, %v1586, 0
        %1908 = vmatprep.subr.mxu0 0.0
        %1909 = vmatpush1.msra.mxu0 %v1880
        %1910 = vmatprep.subr.mxu0 0.0
        %1911 = vmatpush1.msra.mxu0 %v1881
        %1912 = vmatprep.subr.mxu0 0.0
        %1913 = vmatpush1.msra.mxu0 %v1882
        %1914 = vmatprep.subr.mxu0 0.0
        %1915 = vmatpush1.msra.mxu0 %v1883
        %1916 = vmatprep.subr.mxu0 0.0
        %1917 = vmatpush1.msra.mxu0 0.0
        %1918 = vmatprep.subr.mxu0 0.0
        %1919 = vmatpush1.msra.mxu0 0.0
        %1920 = vmatprep.subr.mxu0 0.0
        %1921 = vmatpush1.msra.mxu0 0.0
        %1922 = vmatprep.subr.mxu0 0.0
        %1923 = vmatpush1.msra.mxu0 0.0
        %1924 = vmatprep.subr.mxu0 0.0
        %1925 = vmatpush1.msra.mxu0 0.0
        %1926 = vmatprep.subr.mxu0 0.0
        %1927 = vmatpush1.msra.mxu0 0.0
        %1928 = vmatprep.subr.mxu0 0.0
        %1929 = vmatpush1.msra.mxu0 0.0
        %1930 = vmatprep.subr.mxu0 0.0
        %1931 = vmatpush1.msra.mxu0 0.0
        %1932 = vmatprep.subr.mxu0 0.0
        %1933 = vmatpush1.msra.mxu0 0.0
        %1934 = vmatprep.subr.mxu0 0.0
        %1935 = vmatpush1.msra.mxu0 0.0
        %1936 = vmatprep.subr.mxu0 0.0
        %1937 = vmatpush1.msra.mxu0 0.0
        %1938 = vmatprep.subr.mxu0 0.0
        %1939 = vmatpush1.msra.mxu0 0.0
        %1940 = vmatprep.subr.mxu0 0.0
        %1941 = vmatpush1.msra.mxu0 0.0
        %1942 = vmatprep.subr.mxu0 0.0
        %1943 = vmatpush1.msra.mxu0 0.0
        %1944 = vmatprep.subr.mxu0 0.0
        %1945 = vmatpush1.msra.mxu0 0.0
        %1946 = vmatprep.subr.mxu0 0.0
        %1947 = vmatpush1.msra.mxu0 0.0
        %1948 = vmatprep.subr.mxu0 0.0
        %1949 = vmatpush1.msra.mxu0 0.0
        %1950 = vmatprep.subr.mxu0 0.0
        %1951 = vmatpush1.msra.mxu0 0.0
        %1952 = vmatprep.subr.mxu0 0.0
        %1953 = vmatpush1.msra.mxu0 0.0
        %1954 = vmatprep.subr.mxu0 0.0
        %1955 = vmatpush1.msra.mxu0 0.0
        %1956 = vmatprep.subr.mxu0 0.0
        %1957 = vmatpush1.msra.mxu0 0.0
        %1958 = vmatprep.subr.mxu0 0.0
        %1959 = vmatpush1.msra.mxu0 0.0
        %1960 = vmatprep.subr.mxu0 0.0
        %1961 = vmatpush1.msra.mxu0 0.0
        %1962 = vmatprep.subr.mxu0 0.0
        %1963 = vmatpush1.msra.mxu0 0.0
        %1964 = vmatprep.subr.mxu0 0.0
        %1965 = vmatpush1.msra.mxu0 0.0
        %1966 = vmatprep.subr.mxu0 0.0
        %1967 = vmatpush1.msra.mxu0 0.0
        %1968 = vmatprep.subr.mxu0 0.0
        %1969 = vmatpush1.msra.mxu0 0.0
        %1970 = vmatprep.subr.mxu0 0.0
        %1971 = vmatpush1.msra.mxu0 0.0
        %1972 = vmatprep.mubr.f32.mxu0 0.0
        %1973 = vmatmul.mubr.f32.gmra.mrb[0].mxu0 %v1885
        %v1974 = vpop.f32.mrb[0].mxu0
        %v1975 = vadd.f32 0.0, %v1974
        %v1976 = vpop.f32.mrb[0].mxu0
        %1977 = vmatprep.mubr.f32.mxu0 0.0
        %1978 = vmatmul.mubr.f32.gmra.mrb[0].mxu0 %v1888
        %v1979 = vpop.f32.mrb[0].mxu0
        %v1980 = vadd.f32 0.0, %v1979
        %v1981 = vpop.f32.mrb[0].mxu0
        %1982 = vmatprep.mubr.f32.mxu0 0.0
        %1983 = vmatmul.mubr.f32.gmra.mrb[0].mxu0 %v1891
        %v1984 = vpop.f32.mrb[0].mxu0
        %v1985 = vadd.f32 0.0, %v1984
        %v1986 = vpop.f32.mrb[0].mxu0
        %1987 = vmatprep.mubr.f32.mxu0 0.0
        %1988 = vmatmul.mubr.f32.gmra.mrb[0].mxu0 %v1894
        %v1989 = vpop.f32.mrb[0].mxu0
        %v1990 = vadd.f32 0.0, %v1989
        %v1991 = vpop.f32.mrb[0].mxu0
        %1992 = vmatprep.mubr.f32.mxu0 0.0
        %1993 = vmatmul.mubr.f32.gmra.mrb[0].mxu0 %v1897
        %v1994 = vpop.f32.mrb[0].mxu0
        %v1995 = vadd.f32 0.0, %v1994
        %v1996 = vpop.f32.mrb[0].mxu0
        %1997 = vmatprep.mubr.f32.mxu0 0.0
        %1998 = vmatmul.mubr.f32.gmra.mrb[0].mxu0 %v1900
        %v1999 = vpop.f32.mrb[0].mxu0
        %v2000 = vadd.f32 0.0, %v1999
        %v2001 = vpop.f32.mrb[0].mxu0
        %2002 = vmatprep.mubr.f32.mxu0 0.0
        %2003 = vmatmul.mubr.f32.gmra.mrb[0].mxu0 %v1903
        %v2004 = vpop.f32.mrb[0].mxu0
        %v2005 = vadd.f32 0.0, %v2004
        %v2006 = vpop.f32.mrb[0].mxu0
        %2007 = vmatprep.mubr.f32.mxu0 0.0
        %2008 = vmatmul.mubr.f32.gmra.mrb[0].mxu0 %v1906
        %v2009 = vpop.f32.mrb[0].mxu0
        %v2010 = vadd.f32 0.0, %v2009
        %v2011 = vpop.f32.mrb[0].mxu0
        %2012 = vdwg.mxu0
        %v2013 = vadd.f32 %v1841, %v1975
        %v2014 = vadd.f32 %v1846, %v1980
        %v2015 = vadd.f32 %v1851, %v1985
        %v2016 = vadd.f32 %v1856, %v1990
        %v2017 = vadd.f32 %v1861, %v1995
        %v2018 = vadd.f32 %v1866, %v2000
        %v2019 = vadd.f32 %v1871, %v2005
        %v2020 = vadd.f32 %v1876, %v2010
        %s2021 = scalar_lea.vmem [#allocation3], 96
        %v2022 = vld [vmem:[%s2021] sm:$0xff]
        %v2023 = vld [vmem:[%s2021 + $0x8] sm:$0xff]
        %v2024 = vld [vmem:[%s2021 + $0x10] sm:$0xff]
        %v2025 = vld [vmem:[%s2021 + $0x18] sm:$0xff]
        %v2027 = vsel %vm392, %v1587, 0
        %v2030 = vsel %vm392, %v1588, 0
        %v2033 = vsel %vm392, %v1589, 0
        %v2036 = vsel %vm392, %v1590, 0
        %v2039 = vsel %vm392, %v1591, 0
        %v2042 = vsel %vm392, %v1592, 0
        %v2045 = vsel %vm392, %v1593, 0
        %v2048 = vsel %vm392, %v1594, 0
        %2050 = vmatprep.subr.mxu0 0.0
        %2051 = vmatpush1.msra.mxu0 %v2022
        %2052 = vmatprep.subr.mxu0 0.0
        %2053 = vmatpush1.msra.mxu0 %v2023
        %2054 = vmatprep.subr.mxu0 0.0
        %2055 = vmatpush1.msra.mxu0 %v2024
        %2056 = vmatprep.subr.mxu0 0.0
        %2057 = vmatpush1.msra.mxu0 %v2025
        %2058 = vmatprep.subr.mxu0 0.0
        %2059 = vmatpush1.msra.mxu0 0.0
        %2060 = vmatprep.subr.mxu0 0.0
        %2061 = vmatpush1.msra.mxu0 0.0
        %2062 = vmatprep.subr.mxu0 0.0
        %2063 = vmatpush1.msra.mxu0 0.0
        %2064 = vmatprep.subr.mxu0 0.0
        %2065 = vmatpush1.msra.mxu0 0.0
        %2066 = vmatprep.subr.mxu0 0.0
        %2067 = vmatpush1.msra.mxu0 0.0
        %2068 = vmatprep.subr.mxu0 0.0
        %2069 = vmatpush1.msra.mxu0 0.0
        %2070 = vmatprep.subr.mxu0 0.0
        %2071 = vmatpush1.msra.mxu0 0.0
        %2072 = vmatprep.subr.mxu0 0.0
        %2073 = vmatpush1.msra.mxu0 0.0
        %2074 = vmatprep.subr.mxu0 0.0
        %2075 = vmatpush1.msra.mxu0 0.0
        %2076 = vmatprep.subr.mxu0 0.0
        %2077 = vmatpush1.msra.mxu0 0.0
        %2078 = vmatprep.subr.mxu0 0.0
        %2079 = vmatpush1.msra.mxu0 0.0
        %2080 = vmatprep.subr.mxu0 0.0
        %2081 = vmatpush1.msra.mxu0 0.0
        %2082 = vmatprep.subr.mxu0 0.0
        %2083 = vmatpush1.msra.mxu0 0.0
        %2084 = vmatprep.subr.mxu0 0.0
        %2085 = vmatpush1.msra.mxu0 0.0
        %2086 = vmatprep.subr.mxu0 0.0
        %2087 = vmatpush1.msra.mxu0 0.0
        %2088 = vmatprep.subr.mxu0 0.0
        %2089 = vmatpush1.msra.mxu0 0.0
        %2090 = vmatprep.subr.mxu0 0.0
        %2091 = vmatpush1.msra.mxu0 0.0
        %2092 = vmatprep.subr.mxu0 0.0
        %2093 = vmatpush1.msra.mxu0 0.0
        %2094 = vmatprep.subr.mxu0 0.0
        %2095 = vmatpush1.msra.mxu0 0.0
        %2096 = vmatprep.subr.mxu0 0.0
        %2097 = vmatpush1.msra.mxu0 0.0
        %2098 = vmatprep.subr.mxu0 0.0
        %2099 = vmatpush1.msra.mxu0 0.0
        %2100 = vmatprep.subr.mxu0 0.0
        %2101 = vmatpush1.msra.mxu0 0.0
        %2102 = vmatprep.subr.mxu0 0.0
        %2103 = vmatpush1.msra.mxu0 0.0
        %2104 = vmatprep.subr.mxu0 0.0
        %2105 = vmatpush1.msra.mxu0 0.0
        %2106 = vmatprep.subr.mxu0 0.0
        %2107 = vmatpush1.msra.mxu0 0.0
        %2108 = vmatprep.subr.mxu0 0.0
        %2109 = vmatpush1.msra.mxu0 0.0
        %2110 = vmatprep.subr.mxu0 0.0
        %2111 = vmatpush1.msra.mxu0 0.0
        %2112 = vmatprep.subr.mxu0 0.0
        %2113 = vmatpush1.msra.mxu0 0.0
        %2114 = vmatprep.mubr.f32.mxu0 0.0
        %2115 = vmatmul.mubr.f32.gmra.mrb[0].mxu0 %v2027
        %v2116 = vpop.f32.mrb[0].mxu0
        %v2117 = vadd.f32 0.0, %v2116
        %v2118 = vpop.f32.mrb[0].mxu0
        %2119 = vmatprep.mubr.f32.mxu0 0.0
        %2120 = vmatmul.mubr.f32.gmra.mrb[0].mxu0 %v2030
        %v2121 = vpop.f32.mrb[0].mxu0
        %v2122 = vadd.f32 0.0, %v2121
        %v2123 = vpop.f32.mrb[0].mxu0
        %2124 = vmatprep.mubr.f32.mxu0 0.0
        %2125 = vmatmul.mubr.f32.gmra.mrb[0].mxu0 %v2033
        %v2126 = vpop.f32.mrb[0].mxu0
        %v2127 = vadd.f32 0.0, %v2126
        %v2128 = vpop.f32.mrb[0].mxu0
        %2129 = vmatprep.mubr.f32.mxu0 0.0
        %2130 = vmatmul.mubr.f32.gmra.mrb[0].mxu0 %v2036
        %v2131 = vpop.f32.mrb[0].mxu0
        %v2132 = vadd.f32 0.0, %v2131
        %v2133 = vpop.f32.mrb[0].mxu0
        %2134 = vmatprep.mubr.f32.mxu0 0.0
        %2135 = vmatmul.mubr.f32.gmra.mrb[0].mxu0 %v2039
        %v2136 = vpop.f32.mrb[0].mxu0
        %v2137 = vadd.f32 0.0, %v2136
        %v2138 = vpop.f32.mrb[0].mxu0
        %2139 = vmatprep.mubr.f32.mxu0 0.0
        %2140 = vmatmul.mubr.f32.gmra.mrb[0].mxu0 %v2042
        %v2141 = vpop.f32.mrb[0].mxu0
        %v2142 = vadd.f32 0.0, %v2141
        %v2143 = vpop.f32.mrb[0].mxu0
        %2144 = vmatprep.mubr.f32.mxu0 0.0
        %2145 = vmatmul.mubr.f32.gmra.mrb[0].mxu0 %v2045
        %v2146 = vpop.f32.mrb[0].mxu0
        %v2147 = vadd.f32 0.0, %v2146
        %v2148 = vpop.f32.mrb[0].mxu0
        %2149 = vmatprep.mubr.f32.mxu0 0.0
        %2150 = vmatmul.mubr.f32.gmra.mrb[0].mxu0 %v2048
        %v2151 = vpop.f32.mrb[0].mxu0
        %v2152 = vadd.f32 0.0, %v2151
        %v2153 = vpop.f32.mrb[0].mxu0
        %2154 = vdwg.mxu0
        %v2155 = vadd.f32 %v2013, %v2117
        %v2156 = vadd.f32 %v2014, %v2122
        %v2157 = vadd.f32 %v2015, %v2127
        %v2158 = vadd.f32 %v2016, %v2132
        %v2159 = vadd.f32 %v2017, %v2137
        %v2160 = vadd.f32 %v2018, %v2142
        %v2161 = vadd.f32 %v2019, %v2147
        %v2162 = vadd.f32 %v2020, %v2152
        %s2163 = scalar_lea.vmem [#allocation5], 32
        %v2164 = vld [vmem:[%s2163] sm:$0xff]
        %v2165 = vld [vmem:[%s2163 + $0x8] sm:$0xff]
        %v2166 = vld [vmem:[%s2163 + $0x10] sm:$0xff]
        %v2167 = vld [vmem:[%s2163 + $0x18] sm:$0xff]
        %v2169 = vsel %vm392, %v1555, 0
        %v2172 = vsel %vm392, %v1556, 0
        %v2175 = vsel %vm392, %v1557, 0
        %v2178 = vsel %vm392, %v1558, 0
        %v2181 = vsel %vm392, %v1559, 0
        %v2184 = vsel %vm392, %v1560, 0
        %v2187 = vsel %vm392, %v1561, 0
        %v2190 = vsel %vm392, %v1562, 0
        %2192 = vmatprep.subr.mxu0 0.0
        %2193 = vmatpush1.msra.mxu0 %v2164
        %2194 = vmatprep.subr.mxu0 0.0
        %2195 = vmatpush1.msra.mxu0 %v2165
        %2196 = vmatprep.subr.mxu0 0.0
        %2197 = vmatpush1.msra.mxu0 %v2166
        %2198 = vmatprep.subr.mxu0 0.0
        %2199 = vmatpush1.msra.mxu0 %v2167
        %2200 = vmatprep.subr.mxu0 0.0
        %2201 = vmatpush1.msra.mxu0 0.0
        %2202 = vmatprep.subr.mxu0 0.0
        %2203 = vmatpush1.msra.mxu0 0.0
        %2204 = vmatprep.subr.mxu0 0.0
        %2205 = vmatpush1.msra.mxu0 0.0
        %2206 = vmatprep.subr.mxu0 0.0
        %2207 = vmatpush1.msra.mxu0 0.0
        %2208 = vmatprep.subr.mxu0 0.0
        %2209 = vmatpush1.msra.mxu0 0.0
        %2210 = vmatprep.subr.mxu0 0.0
        %2211 = vmatpush1.msra.mxu0 0.0
        %2212 = vmatprep.subr.mxu0 0.0
        %2213 = vmatpush1.msra.mxu0 0.0
        %2214 = vmatprep.subr.mxu0 0.0
        %2215 = vmatpush1.msra.mxu0 0.0
        %2216 = vmatprep.subr.mxu0 0.0
        %2217 = vmatpush1.msra.mxu0 0.0
        %2218 = vmatprep.subr.mxu0 0.0
        %2219 = vmatpush1.msra.mxu0 0.0
        %2220 = vmatprep.subr.mxu0 0.0
        %2221 = vmatpush1.msra.mxu0 0.0
        %2222 = vmatprep.subr.mxu0 0.0
        %2223 = vmatpush1.msra.mxu0 0.0
        %2224 = vmatprep.subr.mxu0 0.0
        %2225 = vmatpush1.msra.mxu0 0.0
        %2226 = vmatprep.subr.mxu0 0.0
        %2227 = vmatpush1.msra.mxu0 0.0
        %2228 = vmatprep.subr.mxu0 0.0
        %2229 = vmatpush1.msra.mxu0 0.0
        %2230 = vmatprep.subr.mxu0 0.0
        %2231 = vmatpush1.msra.mxu0 0.0
        %2232 = vmatprep.subr.mxu0 0.0
        %2233 = vmatpush1.msra.mxu0 0.0
        %2234 = vmatprep.subr.mxu0 0.0
        %2235 = vmatpush1.msra.mxu0 0.0
        %2236 = vmatprep.subr.mxu0 0.0
        %2237 = vmatpush1.msra.mxu0 0.0
        %2238 = vmatprep.subr.mxu0 0.0
        %2239 = vmatpush1.msra.mxu0 0.0
        %2240 = vmatprep.subr.mxu0 0.0
        %2241 = vmatpush1.msra.mxu0 0.0
        %2242 = vmatprep.subr.mxu0 0.0
        %2243 = vmatpush1.msra.mxu0 0.0
        %2244 = vmatprep.subr.mxu0 0.0
        %2245 = vmatpush1.msra.mxu0 0.0
        %2246 = vmatprep.subr.mxu0 0.0
        %2247 = vmatpush1.msra.mxu0 0.0
        %2248 = vmatprep.subr.mxu0 0.0
        %2249 = vmatpush1.msra.mxu0 0.0
        %2250 = vmatprep.subr.mxu0 0.0
        %2251 = vmatpush1.msra.mxu0 0.0
        %2252 = vmatprep.subr.mxu0 0.0
        %2253 = vmatpush1.msra.mxu0 0.0
        %2254 = vmatprep.subr.mxu0 0.0
        %2255 = vmatpush1.msra.mxu0 0.0
        %2256 = vmatprep.mubr.f32.mxu0 0.0
        %2257 = vmatmul.mubr.f32.gmra.mrb[0].mxu0 %v2169
        %v2258 = vpop.f32.mrb[0].mxu0
        %v2259 = vadd.f32 0.0, %v2258
        %v2260 = vpop.f32.mrb[0].mxu0
        %2261 = vmatprep.mubr.f32.mxu0 0.0
        %2262 = vmatmul.mubr.f32.gmra.mrb[0].mxu0 %v2172
        %v2263 = vpop.f32.mrb[0].mxu0
        %v2264 = vadd.f32 0.0, %v2263
        %v2265 = vpop.f32.mrb[0].mxu0
        %2266 = vmatprep.mubr.f32.mxu0 0.0
        %2267 = vmatmul.mubr.f32.gmra.mrb[0].mxu0 %v2175
        %v2268 = vpop.f32.mrb[0].mxu0
        %v2269 = vadd.f32 0.0, %v2268
        %v2270 = vpop.f32.mrb[0].mxu0
        %2271 = vmatprep.mubr.f32.mxu0 0.0
        %2272 = vmatmul.mubr.f32.gmra.mrb[0].mxu0 %v2178
        %v2273 = vpop.f32.mrb[0].mxu0
        %v2274 = vadd.f32 0.0, %v2273
        %v2275 = vpop.f32.mrb[0].mxu0
        %2276 = vmatprep.mubr.f32.mxu0 0.0
        %2277 = vmatmul.mubr.f32.gmra.mrb[0].mxu0 %v2181
        %v2278 = vpop.f32.mrb[0].mxu0
        %v2279 = vadd.f32 0.0, %v2278
        %v2280 = vpop.f32.mrb[0].mxu0
        %2281 = vmatprep.mubr.f32.mxu0 0.0
        %2282 = vmatmul.mubr.f32.gmra.mrb[0].mxu0 %v2184
        %v2283 = vpop.f32.mrb[0].mxu0
        %v2284 = vadd.f32 0.0, %v2283
        %v2285 = vpop.f32.mrb[0].mxu0
        %2286 = vmatprep.mubr.f32.mxu0 0.0
        %2287 = vmatmul.mubr.f32.gmra.mrb[0].mxu0 %v2187
        %v2288 = vpop.f32.mrb[0].mxu0
        %v2289 = vadd.f32 0.0, %v2288
        %v2290 = vpop.f32.mrb[0].mxu0
        %2291 = vmatprep.mubr.f32.mxu0 0.0
        %2292 = vmatmul.mubr.f32.gmra.mrb[0].mxu0 %v2190
        %v2293 = vpop.f32.mrb[0].mxu0
        %v2294 = vadd.f32 0.0, %v2293
        %v2295 = vpop.f32.mrb[0].mxu0
        %2296 = vdwg.mxu0
        %v2297 = vadd.f32 %v2155, %v2259
        %v2298 = vadd.f32 %v2156, %v2264
        %v2299 = vadd.f32 %v2157, %v2269
        %v2300 = vadd.f32 %v2158, %v2274
        %v2301 = vadd.f32 %v2159, %v2279
        %v2302 = vadd.f32 %v2160, %v2284
        %v2303 = vadd.f32 %v2161, %v2289
        %v2304 = vadd.f32 %v2162, %v2294
        %v2305 = vld [vmem:[%s4 + $0x1] sm:$0x1]
        %v2306 = vlaneseq
        %v2307 = vshrl.u32 %v2306, 7
        %v2308 = vsub.s32 0, %v2307
        %v2309 = vrot.slane %v2305, %v2308
        %v2310 = vadd.f32 %v2297, %v2309
        %v2311 = vadd.f32 %v2298, %v2309
        %v2312 = vadd.f32 %v2299, %v2309
        %v2313 = vadd.f32 %v2300, %v2309
        %v2314 = vadd.f32 %v2301, %v2309
        %v2315 = vadd.f32 %v2302, %v2309
        %v2316 = vadd.f32 %v2303, %v2309
        %v2317 = vadd.f32 %v2304, %v2309
        %2318 = vst.msk [vmem:[#allocation2 + $0x10] sm:$0xff] %vm392, %v2310
        %2319 = vst.msk [vmem:[#allocation2 + $0x18] sm:$0xff] %vm392, %v2311
        %2320 = vst.msk [vmem:[#allocation2 + $0x20] sm:$0xff] %vm392, %v2312
        %2321 = vst.msk [vmem:[#allocation2 + $0x28] sm:$0xff] %vm392, %v2313
        %2322 = vst.msk [vmem:[#allocation2 + $0x30] sm:$0xff] %vm392, %v2314
        %2323 = vst.msk [vmem:[#allocation2 + $0x38] sm:$0xff] %vm392, %v2315
        %2324 = vst.msk [vmem:[#allocation2 + $0x40] sm:$0xff] %vm392, %v2316
        %2325 = vst.msk [vmem:[#allocation2 + $0x48] sm:$0xff] %vm392, %v2317
        %v2326 = vld [vmem:[#allocation2 + $0xf] sm:$0xff]
        %v2327 = vld [vmem:[#allocation2 + $0x17] sm:$0xff]
        %v2328 = vld [vmem:[#allocation2 + $0x1f] sm:$0xff]
        %v2329 = vld [vmem:[#allocation2 + $0x27] sm:$0xff]
        %v2330 = vld [vmem:[#allocation2 + $0x2f] sm:$0xff]
        %v2331 = vld [vmem:[#allocation2 + $0x37] sm:$0xff]
        %v2332 = vld [vmem:[#allocation2 + $0x3f] sm:$0xff]
        %v2333 = vld [vmem:[#allocation2 + $0x47] sm:$0xff]
        %v2334 = vld [vmem:[#allocation2 + $0x11] sm:$0xff]
        %v2335 = vld [vmem:[#allocation2 + $0x19] sm:$0xff]
        %v2336 = vld [vmem:[#allocation2 + $0x21] sm:$0xff]
        %v2337 = vld [vmem:[#allocation2 + $0x29] sm:$0xff]
        %v2338 = vld [vmem:[#allocation2 + $0x31] sm:$0xff]
        %v2339 = vld [vmem:[#allocation2 + $0x39] sm:$0xff]
        %v2340 = vld [vmem:[#allocation2 + $0x41] sm:$0xff]
        %v2341 = vld [vmem:[#allocation2 + $0x49] sm:$0xff]
        %s2342 = scalar_lea.vmem [#allocation7], 96
        %v2343 = vld [vmem:[%s2342] sm:$0xff]
        %v2344 = vld [vmem:[%s2342 + $0x8] sm:$0xff]
        %v2345 = vld [vmem:[%s2342 + $0x10] sm:$0xff]
        %v2346 = vld [vmem:[%s2342 + $0x18] sm:$0xff]
        %s2347 = scalar_lea.vmem [#allocation7], 128
        %v2348 = vld [vmem:[%s2347] sm:$0xff]
        %v2349 = vld [vmem:[%s2347 + $0x8] sm:$0xff]
        %v2350 = vld [vmem:[%s2347 + $0x10] sm:$0xff]
        %v2351 = vld [vmem:[%s2347 + $0x18] sm:$0xff]
        %v2353 = vsel %vm392, %v2310, 0
        %v2356 = vsel %vm392, %v2311, 0
        %v2359 = vsel %vm392, %v2312, 0
        %v2362 = vsel %vm392, %v2313, 0
        %v2365 = vsel %vm392, %v2314, 0
        %v2368 = vsel %vm392, %v2315, 0
        %v2371 = vsel %vm392, %v2316, 0
        %v2374 = vsel %vm392, %v2317, 0
        %2376 = vmatprep.subr.mxu0 0.0
        %2377 = vmatpush1.msra.mxu0 %v2348
        %2378 = vmatprep.subr.mxu0 0.0
        %2379 = vmatpush1.msra.mxu0 %v2349
        %2380 = vmatprep.subr.mxu0 0.0
        %2381 = vmatpush1.msra.mxu0 %v2350
        %2382 = vmatprep.subr.mxu0 0.0
        %2383 = vmatpush1.msra.mxu0 %v2351
        %2384 = vmatprep.subr.mxu0 0.0
        %2385 = vmatpush1.msra.mxu0 0.0
        %2386 = vmatprep.subr.mxu0 0.0
        %2387 = vmatpush1.msra.mxu0 0.0
        %2388 = vmatprep.subr.mxu0 0.0
        %2389 = vmatpush1.msra.mxu0 0.0
        %2390 = vmatprep.subr.mxu0 0.0
        %2391 = vmatpush1.msra.mxu0 0.0
        %2392 = vmatprep.subr.mxu0 0.0
        %2393 = vmatpush1.msra.mxu0 0.0
        %2394 = vmatprep.subr.mxu0 0.0
        %2395 = vmatpush1.msra.mxu0 0.0
        %2396 = vmatprep.subr.mxu0 0.0
        %2397 = vmatpush1.msra.mxu0 0.0
        %2398 = vmatprep.subr.mxu0 0.0
        %2399 = vmatpush1.msra.mxu0 0.0
        %2400 = vmatprep.subr.mxu0 0.0
        %2401 = vmatpush1.msra.mxu0 0.0
        %2402 = vmatprep.subr.mxu0 0.0
        %2403 = vmatpush1.msra.mxu0 0.0
        %2404 = vmatprep.subr.mxu0 0.0
        %2405 = vmatpush1.msra.mxu0 0.0
        %2406 = vmatprep.subr.mxu0 0.0
        %2407 = vmatpush1.msra.mxu0 0.0
        %2408 = vmatprep.subr.mxu0 0.0
        %2409 = vmatpush1.msra.mxu0 0.0
        %2410 = vmatprep.subr.mxu0 0.0
        %2411 = vmatpush1.msra.mxu0 0.0
        %2412 = vmatprep.subr.mxu0 0.0
        %2413 = vmatpush1.msra.mxu0 0.0
        %2414 = vmatprep.subr.mxu0 0.0
        %2415 = vmatpush1.msra.mxu0 0.0
        %2416 = vmatprep.subr.mxu0 0.0
        %2417 = vmatpush1.msra.mxu0 0.0
        %2418 = vmatprep.subr.mxu0 0.0
        %2419 = vmatpush1.msra.mxu0 0.0
        %2420 = vmatprep.subr.mxu0 0.0
        %2421 = vmatpush1.msra.mxu0 0.0
        %2422 = vmatprep.subr.mxu0 0.0
        %2423 = vmatpush1.msra.mxu0 0.0
        %2424 = vmatprep.subr.mxu0 0.0
        %2425 = vmatpush1.msra.mxu0 0.0
        %2426 = vmatprep.subr.mxu0 0.0
        %2427 = vmatpush1.msra.mxu0 0.0
        %2428 = vmatprep.subr.mxu0 0.0
        %2429 = vmatpush1.msra.mxu0 0.0
        %2430 = vmatprep.subr.mxu0 0.0
        %2431 = vmatpush1.msra.mxu0 0.0
        %2432 = vmatprep.subr.mxu0 0.0
        %2433 = vmatpush1.msra.mxu0 0.0
        %2434 = vmatprep.subr.mxu0 0.0
        %2435 = vmatpush1.msra.mxu0 0.0
        %2436 = vmatprep.subr.mxu0 0.0
        %2437 = vmatpush1.msra.mxu0 0.0
        %2438 = vmatprep.subr.mxu0 0.0
        %2439 = vmatpush1.msra.mxu0 0.0
        %2440 = vmatprep.mubr.f32.mxu0 0.0
        %2441 = vmatmul.mubr.f32.gmra.mrb[0].mxu0 %v2353
        %v2442 = vpop.f32.mrb[0].mxu0
        %v2443 = vadd.f32 0.0, %v2442
        %v2444 = vpop.f32.mrb[0].mxu0
        %2445 = vmatprep.mubr.f32.mxu0 0.0
        %2446 = vmatmul.mubr.f32.gmra.mrb[0].mxu0 %v2356
        %v2447 = vpop.f32.mrb[0].mxu0
        %v2448 = vadd.f32 0.0, %v2447
        %v2449 = vpop.f32.mrb[0].mxu0
        %2450 = vmatprep.mubr.f32.mxu0 0.0
        %2451 = vmatmul.mubr.f32.gmra.mrb[0].mxu0 %v2359
        %v2452 = vpop.f32.mrb[0].mxu0
        %v2453 = vadd.f32 0.0, %v2452
        %v2454 = vpop.f32.mrb[0].mxu0
        %2455 = vmatprep.mubr.f32.mxu0 0.0
        %2456 = vmatmul.mubr.f32.gmra.mrb[0].mxu0 %v2362
        %v2457 = vpop.f32.mrb[0].mxu0
        %v2458 = vadd.f32 0.0, %v2457
        %v2459 = vpop.f32.mrb[0].mxu0
        %2460 = vmatprep.mubr.f32.mxu0 0.0
        %2461 = vmatmul.mubr.f32.gmra.mrb[0].mxu0 %v2365
        %v2462 = vpop.f32.mrb[0].mxu0
        %v2463 = vadd.f32 0.0, %v2462
        %v2464 = vpop.f32.mrb[0].mxu0
        %2465 = vmatprep.mubr.f32.mxu0 0.0
        %2466 = vmatmul.mubr.f32.gmra.mrb[0].mxu0 %v2368
        %v2467 = vpop.f32.mrb[0].mxu0
        %v2468 = vadd.f32 0.0, %v2467
        %v2469 = vpop.f32.mrb[0].mxu0
        %2470 = vmatprep.mubr.f32.mxu0 0.0
        %2471 = vmatmul.mubr.f32.gmra.mrb[0].mxu0 %v2371
        %v2472 = vpop.f32.mrb[0].mxu0
        %v2473 = vadd.f32 0.0, %v2472
        %v2474 = vpop.f32.mrb[0].mxu0
        %2475 = vmatprep.mubr.f32.mxu0 0.0
        %2476 = vmatmul.mubr.f32.gmra.mrb[0].mxu0 %v2374
        %v2477 = vpop.f32.mrb[0].mxu0
        %v2478 = vadd.f32 0.0, %v2477
        %v2479 = vpop.f32.mrb[0].mxu0
        %2480 = vdwg.mxu0
        %v2482 = vsel %vm392, %v2326, 0
        %v2485 = vsel %vm392, %v2327, 0
        %v2488 = vsel %vm392, %v2328, 0
        %v2491 = vsel %vm392, %v2329, 0
        %v2494 = vsel %vm392, %v2330, 0
        %v2497 = vsel %vm392, %v2331, 0
        %v2500 = vsel %vm392, %v2332, 0
        %v2503 = vsel %vm392, %v2333, 0
        %2505 = vmatprep.subr.mxu0 0.0
        %2506 = vmatpush1.msra.mxu0 %v2343
        %2507 = vmatprep.subr.mxu0 0.0
        %2508 = vmatpush1.msra.mxu0 %v2344
        %2509 = vmatprep.subr.mxu0 0.0
        %2510 = vmatpush1.msra.mxu0 %v2345
        %2511 = vmatprep.subr.mxu0 0.0
        %2512 = vmatpush1.msra.mxu0 %v2346
        %2513 = vmatprep.subr.mxu0 0.0
        %2514 = vmatpush1.msra.mxu0 0.0
        %2515 = vmatprep.subr.mxu0 0.0
        %2516 = vmatpush1.msra.mxu0 0.0
        %2517 = vmatprep.subr.mxu0 0.0
        %2518 = vmatpush1.msra.mxu0 0.0
        %2519 = vmatprep.subr.mxu0 0.0
        %2520 = vmatpush1.msra.mxu0 0.0
        %2521 = vmatprep.subr.mxu0 0.0
        %2522 = vmatpush1.msra.mxu0 0.0
        %2523 = vmatprep.subr.mxu0 0.0
        %2524 = vmatpush1.msra.mxu0 0.0
        %2525 = vmatprep.subr.mxu0 0.0
        %2526 = vmatpush1.msra.mxu0 0.0
        %2527 = vmatprep.subr.mxu0 0.0
        %2528 = vmatpush1.msra.mxu0 0.0
        %2529 = vmatprep.subr.mxu0 0.0
        %2530 = vmatpush1.msra.mxu0 0.0
        %2531 = vmatprep.subr.mxu0 0.0
        %2532 = vmatpush1.msra.mxu0 0.0
        %2533 = vmatprep.subr.mxu0 0.0
        %2534 = vmatpush1.msra.mxu0 0.0
        %2535 = vmatprep.subr.mxu0 0.0
        %2536 = vmatpush1.msra.mxu0 0.0
        %2537 = vmatprep.subr.mxu0 0.0
        %2538 = vmatpush1.msra.mxu0 0.0
        %2539 = vmatprep.subr.mxu0 0.0
        %2540 = vmatpush1.msra.mxu0 0.0
        %2541 = vmatprep.subr.mxu0 0.0
        %2542 = vmatpush1.msra.mxu0 0.0
        %2543 = vmatprep.subr.mxu0 0.0
        %2544 = vmatpush1.msra.mxu0 0.0
        %2545 = vmatprep.subr.mxu0 0.0
        %2546 = vmatpush1.msra.mxu0 0.0
        %2547 = vmatprep.subr.mxu0 0.0
        %2548 = vmatpush1.msra.mxu0 0.0
        %2549 = vmatprep.subr.mxu0 0.0
        %2550 = vmatpush1.msra.mxu0 0.0
        %2551 = vmatprep.subr.mxu0 0.0
        %2552 = vmatpush1.msra.mxu0 0.0
        %2553 = vmatprep.subr.mxu0 0.0
        %2554 = vmatpush1.msra.mxu0 0.0
        %2555 = vmatprep.subr.mxu0 0.0
        %2556 = vmatpush1.msra.mxu0 0.0
        %2557 = vmatprep.subr.mxu0 0.0
        %2558 = vmatpush1.msra.mxu0 0.0
        %2559 = vmatprep.subr.mxu0 0.0
        %2560 = vmatpush1.msra.mxu0 0.0
        %2561 = vmatprep.subr.mxu0 0.0
        %2562 = vmatpush1.msra.mxu0 0.0
        %2563 = vmatprep.subr.mxu0 0.0
        %2564 = vmatpush1.msra.mxu0 0.0
        %2565 = vmatprep.subr.mxu0 0.0
        %2566 = vmatpush1.msra.mxu0 0.0
        %2567 = vmatprep.subr.mxu0 0.0
        %2568 = vmatpush1.msra.mxu0 0.0
        %2569 = vmatprep.mubr.f32.mxu0 0.0
        %2570 = vmatmul.mubr.f32.gmra.mrb[0].mxu0 %v2482
        %v2571 = vpop.f32.mrb[0].mxu0
        %v2572 = vadd.f32 %v2443, %v2571
        %v2573 = vpop.f32.mrb[0].mxu0
        %2574 = vmatprep.mubr.f32.mxu0 0.0
        %2575 = vmatmul.mubr.f32.gmra.mrb[0].mxu0 %v2485
        %v2576 = vpop.f32.mrb[0].mxu0
        %v2577 = vadd.f32 %v2448, %v2576
        %v2578 = vpop.f32.mrb[0].mxu0
        %2579 = vmatprep.mubr.f32.mxu0 0.0
        %2580 = vmatmul.mubr.f32.gmra.mrb[0].mxu0 %v2488
        %v2581 = vpop.f32.mrb[0].mxu0
        %v2582 = vadd.f32 %v2453, %v2581
        %v2583 = vpop.f32.mrb[0].mxu0
        %2584 = vmatprep.mubr.f32.mxu0 0.0
        %2585 = vmatmul.mubr.f32.gmra.mrb[0].mxu0 %v2491
        %v2586 = vpop.f32.mrb[0].mxu0
        %v2587 = vadd.f32 %v2458, %v2586
        %v2588 = vpop.f32.mrb[0].mxu0
        %2589 = vmatprep.mubr.f32.mxu0 0.0
        %2590 = vmatmul.mubr.f32.gmra.mrb[0].mxu0 %v2494
        %v2591 = vpop.f32.mrb[0].mxu0
        %v2592 = vadd.f32 %v2463, %v2591
        %v2593 = vpop.f32.mrb[0].mxu0
        %2594 = vmatprep.mubr.f32.mxu0 0.0
        %2595 = vmatmul.mubr.f32.gmra.mrb[0].mxu0 %v2497
        %v2596 = vpop.f32.mrb[0].mxu0
        %v2597 = vadd.f32 %v2468, %v2596
        %v2598 = vpop.f32.mrb[0].mxu0
        %2599 = vmatprep.mubr.f32.mxu0 0.0
        %2600 = vmatmul.mubr.f32.gmra.mrb[0].mxu0 %v2500
        %v2601 = vpop.f32.mrb[0].mxu0
        %v2602 = vadd.f32 %v2473, %v2601
        %v2603 = vpop.f32.mrb[0].mxu0
        %2604 = vmatprep.mubr.f32.mxu0 0.0
        %2605 = vmatmul.mubr.f32.gmra.mrb[0].mxu0 %v2503
        %v2606 = vpop.f32.mrb[0].mxu0
        %v2607 = vadd.f32 %v2478, %v2606
        %v2608 = vpop.f32.mrb[0].mxu0
        %2609 = vdwg.mxu0
        %s2610 = scalar_lea.vmem [#allocation7], 160
        %v2611 = vld [vmem:[%s2610] sm:$0xff]
        %v2612 = vld [vmem:[%s2610 + $0x8] sm:$0xff]
        %v2613 = vld [vmem:[%s2610 + $0x10] sm:$0xff]
        %v2614 = vld [vmem:[%s2610 + $0x18] sm:$0xff]
        %v2616 = vsel %vm392, %v2334, 0
        %v2619 = vsel %vm392, %v2335, 0
        %v2622 = vsel %vm392, %v2336, 0
        %v2625 = vsel %vm392, %v2337, 0
        %v2628 = vsel %vm392, %v2338, 0
        %v2631 = vsel %vm392, %v2339, 0
        %v2634 = vsel %vm392, %v2340, 0
        %v2637 = vsel %vm392, %v2341, 0
        %2639 = vmatprep.subr.mxu0 0.0
        %2640 = vmatpush1.msra.mxu0 %v2611
        %2641 = vmatprep.subr.mxu0 0.0
        %2642 = vmatpush1.msra.mxu0 %v2612
        %2643 = vmatprep.subr.mxu0 0.0
        %2644 = vmatpush1.msra.mxu0 %v2613
        %2645 = vmatprep.subr.mxu0 0.0
        %2646 = vmatpush1.msra.mxu0 %v2614
        %2647 = vmatprep.subr.mxu0 0.0
        %2648 = vmatpush1.msra.mxu0 0.0
        %2649 = vmatprep.subr.mxu0 0.0
        %2650 = vmatpush1.msra.mxu0 0.0
        %2651 = vmatprep.subr.mxu0 0.0
        %2652 = vmatpush1.msra.mxu0 0.0
        %2653 = vmatprep.subr.mxu0 0.0
        %2654 = vmatpush1.msra.mxu0 0.0
        %2655 = vmatprep.subr.mxu0 0.0
        %2656 = vmatpush1.msra.mxu0 0.0
        %2657 = vmatprep.subr.mxu0 0.0
        %2658 = vmatpush1.msra.mxu0 0.0
        %2659 = vmatprep.subr.mxu0 0.0
        %2660 = vmatpush1.msra.mxu0 0.0
        %2661 = vmatprep.subr.mxu0 0.0
        %2662 = vmatpush1.msra.mxu0 0.0
        %2663 = vmatprep.subr.mxu0 0.0
        %2664 = vmatpush1.msra.mxu0 0.0
        %2665 = vmatprep.subr.mxu0 0.0
        %2666 = vmatpush1.msra.mxu0 0.0
        %2667 = vmatprep.subr.mxu0 0.0
        %2668 = vmatpush1.msra.mxu0 0.0
        %2669 = vmatprep.subr.mxu0 0.0
        %2670 = vmatpush1.msra.mxu0 0.0
        %2671 = vmatprep.subr.mxu0 0.0
        %2672 = vmatpush1.msra.mxu0 0.0
        %2673 = vmatprep.subr.mxu0 0.0
        %2674 = vmatpush1.msra.mxu0 0.0
        %2675 = vmatprep.subr.mxu0 0.0
        %2676 = vmatpush1.msra.mxu0 0.0
        %2677 = vmatprep.subr.mxu0 0.0
        %2678 = vmatpush1.msra.mxu0 0.0
        %2679 = vmatprep.subr.mxu0 0.0
        %2680 = vmatpush1.msra.mxu0 0.0
        %2681 = vmatprep.subr.mxu0 0.0
        %2682 = vmatpush1.msra.mxu0 0.0
        %2683 = vmatprep.subr.mxu0 0.0
        %2684 = vmatpush1.msra.mxu0 0.0
        %2685 = vmatprep.subr.mxu0 0.0
        %2686 = vmatpush1.msra.mxu0 0.0
        %2687 = vmatprep.subr.mxu0 0.0
        %2688 = vmatpush1.msra.mxu0 0.0
        %2689 = vmatprep.subr.mxu0 0.0
        %2690 = vmatpush1.msra.mxu0 0.0
        %2691 = vmatprep.subr.mxu0 0.0
        %2692 = vmatpush1.msra.mxu0 0.0
        %2693 = vmatprep.subr.mxu0 0.0
        %2694 = vmatpush1.msra.mxu0 0.0
        %2695 = vmatprep.subr.mxu0 0.0
        %2696 = vmatpush1.msra.mxu0 0.0
        %2697 = vmatprep.subr.mxu0 0.0
        %2698 = vmatpush1.msra.mxu0 0.0
        %2699 = vmatprep.subr.mxu0 0.0
        %2700 = vmatpush1.msra.mxu0 0.0
        %2701 = vmatprep.subr.mxu0 0.0
        %2702 = vmatpush1.msra.mxu0 0.0
        %2703 = vmatprep.mubr.f32.mxu0 0.0
        %2704 = vmatmul.mubr.f32.gmra.mrb[0].mxu0 %v2616
        %v2705 = vpop.f32.mrb[0].mxu0
        %v2706 = vadd.f32 0.0, %v2705
        %v2707 = vpop.f32.mrb[0].mxu0
        %2708 = vmatprep.mubr.f32.mxu0 0.0
        %2709 = vmatmul.mubr.f32.gmra.mrb[0].mxu0 %v2619
        %v2710 = vpop.f32.mrb[0].mxu0
        %v2711 = vadd.f32 0.0, %v2710
        %v2712 = vpop.f32.mrb[0].mxu0
        %2713 = vmatprep.mubr.f32.mxu0 0.0
        %2714 = vmatmul.mubr.f32.gmra.mrb[0].mxu0 %v2622
        %v2715 = vpop.f32.mrb[0].mxu0
        %v2716 = vadd.f32 0.0, %v2715
        %v2717 = vpop.f32.mrb[0].mxu0
        %2718 = vmatprep.mubr.f32.mxu0 0.0
        %2719 = vmatmul.mubr.f32.gmra.mrb[0].mxu0 %v2625
        %v2720 = vpop.f32.mrb[0].mxu0
        %v2721 = vadd.f32 0.0, %v2720
        %v2722 = vpop.f32.mrb[0].mxu0
        %2723 = vmatprep.mubr.f32.mxu0 0.0
        %2724 = vmatmul.mubr.f32.gmra.mrb[0].mxu0 %v2628
        %v2725 = vpop.f32.mrb[0].mxu0
        %v2726 = vadd.f32 0.0, %v2725
        %v2727 = vpop.f32.mrb[0].mxu0
        %2728 = vmatprep.mubr.f32.mxu0 0.0
        %2729 = vmatmul.mubr.f32.gmra.mrb[0].mxu0 %v2631
        %v2730 = vpop.f32.mrb[0].mxu0
        %v2731 = vadd.f32 0.0, %v2730
        %v2732 = vpop.f32.mrb[0].mxu0
        %2733 = vmatprep.mubr.f32.mxu0 0.0
        %2734 = vmatmul.mubr.f32.gmra.mrb[0].mxu0 %v2634
        %v2735 = vpop.f32.mrb[0].mxu0
        %v2736 = vadd.f32 0.0, %v2735
        %v2737 = vpop.f32.mrb[0].mxu0
        %2738 = vmatprep.mubr.f32.mxu0 0.0
        %2739 = vmatmul.mubr.f32.gmra.mrb[0].mxu0 %v2637
        %v2740 = vpop.f32.mrb[0].mxu0
        %v2741 = vadd.f32 0.0, %v2740
        %v2742 = vpop.f32.mrb[0].mxu0
        %2743 = vdwg.mxu0
        %v2744 = vadd.f32 %v2572, %v2706
        %v2745 = vadd.f32 %v2577, %v2711
        %v2746 = vadd.f32 %v2582, %v2716
        %v2747 = vadd.f32 %v2587, %v2721
        %v2748 = vadd.f32 %v2592, %v2726
        %v2749 = vadd.f32 %v2597, %v2731
        %v2750 = vadd.f32 %v2602, %v2736
        %v2751 = vadd.f32 %v2607, %v2741
        %v2752 = vld [vmem:[%s6 + $0x1] sm:$0x1]
        %v2753 = vlaneseq
        %v2754 = vshrl.u32 %v2753, 7
        %v2755 = vsub.s32 0, %v2754
        %v2756 = vrot.slane %v2752, %v2755
        %v2757 = vadd.f32 %v2744, %v2756
        %v2758 = vadd.f32 %v2745, %v2756
        %v2759 = vadd.f32 %v2746, %v2756
        %v2760 = vadd.f32 %v2747, %v2756
        %v2761 = vadd.f32 %v2748, %v2756
        %v2762 = vadd.f32 %v2749, %v2756
        %v2763 = vadd.f32 %v2750, %v2756
        %v2764 = vadd.f32 %v2751, %v2756
        %v2765 = vxor.u32 %v2757, 2147483648
        %v2766 = vxor.u32 %v2758, 2147483648
        %v2767 = vxor.u32 %v2759, 2147483648
        %v2768 = vxor.u32 %v2760, 2147483648
        %v2769 = vxor.u32 %v2761, 2147483648
        %v2770 = vxor.u32 %v2762, 2147483648
        %v2771 = vxor.u32 %v2763, 2147483648
        %v2772 = vxor.u32 %v2764, 2147483648
        %v2773 = vmul.f32 %v2765, 1.442695
        %v2774 = vpow.pop %v2773
        %v2775 = vmul.f32 %v2766, 1.442695
        %v2776 = vpow.pop %v2775
        %v2777 = vmul.f32 %v2767, 1.442695
        %v2778 = vpow.pop %v2777
        %v2779 = vmul.f32 %v2768, 1.442695
        %v2780 = vpow.pop %v2779
        %v2781 = vmul.f32 %v2769, 1.442695
        %v2782 = vpow.pop %v2781
        %v2783 = vmul.f32 %v2770, 1.442695
        %v2784 = vpow.pop %v2783
        %v2785 = vmul.f32 %v2771, 1.442695
        %v2786 = vpow.pop %v2785
        %v2787 = vmul.f32 %v2772, 1.442695
        %v2788 = vpow.pop %v2787
        %v2789 = vadd.f32 %v2774, 1.0
        %v2790 = vadd.f32 %v2776, 1.0
        %v2791 = vadd.f32 %v2778, 1.0
        %v2792 = vadd.f32 %v2780, 1.0
        %v2793 = vadd.f32 %v2782, 1.0
        %v2794 = vadd.f32 %v2784, 1.0
        %v2795 = vadd.f32 %v2786, 1.0
        %v2796 = vadd.f32 %v2788, 1.0
        %v2797 = vrcp.pop %v2789
        %v2798 = vmul.f32 1.0, %v2797
        %v2799 = vrcp.pop %v2790
        %v2800 = vmul.f32 1.0, %v2799
        %v2801 = vrcp.pop %v2791
        %v2802 = vmul.f32 1.0, %v2801
        %v2803 = vrcp.pop %v2792
        %v2804 = vmul.f32 1.0, %v2803
        %v2805 = vrcp.pop %v2793
        %v2806 = vmul.f32 1.0, %v2805
        %v2807 = vrcp.pop %v2794
        %v2808 = vmul.f32 1.0, %v2807
        %v2809 = vrcp.pop %v2795
        %v2810 = vmul.f32 1.0, %v2809
        %v2811 = vrcp.pop %v2796
        %v2812 = vmul.f32 1.0, %v2811
        %v2813 = vtanh.pop %v2757
        %v2814 = vtanh.pop %v2758
        %v2815 = vtanh.pop %v2759
        %v2816 = vtanh.pop %v2760
        %v2817 = vtanh.pop %v2761
        %v2818 = vtanh.pop %v2762
        %v2819 = vtanh.pop %v2763
        %v2820 = vtanh.pop %v2764
        %2829 = vrot.lane.b32.xlu0 %v2813, 96
        %v2830 = vpop.permute.xlu0 %2829
        %2831 = vrot.lane.b32.xlu0 %v2814, 96
        %v2832 = vpop.permute.xlu0 %2831
        %2833 = vrot.lane.b32.xlu0 %v2815, 96
        %v2834 = vpop.permute.xlu0 %2833
        %2835 = vrot.lane.b32.xlu0 %v2816, 96
        %v2836 = vpop.permute.xlu0 %2835
        %2837 = vrot.lane.b32.xlu0 %v2817, 96
        %v2838 = vpop.permute.xlu0 %2837
        %2839 = vrot.lane.b32.xlu0 %v2818, 96
        %v2840 = vpop.permute.xlu0 %2839
        %2841 = vrot.lane.b32.xlu0 %v2819, 96
        %v2842 = vpop.permute.xlu0 %2841
        %2843 = vrot.lane.b32.xlu0 %v2820, 96
        %v2844 = vpop.permute.xlu0 %2843
        %v2853 = vmul.f32 %v2798, %v2830
        %v2854 = vmul.f32 %v2800, %v2832
        %v2855 = vmul.f32 %v2802, %v2834
        %v2856 = vmul.f32 %v2804, %v2836
        %v2857 = vmul.f32 %v2806, %v2838
        %v2858 = vmul.f32 %v2808, %v2840
        %v2859 = vmul.f32 %v2810, %v2842
        %v2860 = vmul.f32 %v2812, %v2844
        %s2861 = scalar_lea.vmem [#allocation8], 32
        %v2862 = vld [vmem:[%s2861] sm:$0xff]
        %v2863 = vld [vmem:[%s2861 + $0x8] sm:$0xff]
        %v2864 = vld [vmem:[%s2861 + $0x10] sm:$0xff]
        %v2865 = vld [vmem:[%s2861 + $0x18] sm:$0xff]
        %v2866 = vld [vmem:[%s8 + $0x1] sm:$0x1]
        %v2867 = vlaneseq
        %v2868 = vshrl.u32 %v2867, 7
        %v2869 = vsub.s32 0, %v2868
        %v2870 = vrot.slane %v2866, %v2869
        %v2872 = vsel %vm392, %v2853, 0
        %v2875 = vsel %vm392, %v2854, 0
        %v2878 = vsel %vm392, %v2855, 0
        %v2881 = vsel %vm392, %v2856, 0
        %v2884 = vsel %vm392, %v2857, 0
        %v2887 = vsel %vm392, %v2858, 0
        %v2890 = vsel %vm392, %v2859, 0
        %v2893 = vsel %vm392, %v2860, 0
        %2895 = vmatprep.subr.mxu0 0.0
        %2896 = vmatpush1.msra.mxu0 %v2862
        %2897 = vmatprep.subr.mxu0 0.0
        %2898 = vmatpush1.msra.mxu0 %v2863
        %2899 = vmatprep.subr.mxu0 0.0
        %2900 = vmatpush1.msra.mxu0 %v2864
        %2901 = vmatprep.subr.mxu0 0.0
        %2902 = vmatpush1.msra.mxu0 %v2865
        %2903 = vmatprep.subr.mxu0 0.0
        %2904 = vmatpush1.msra.mxu0 0.0
        %2905 = vmatprep.subr.mxu0 0.0
        %2906 = vmatpush1.msra.mxu0 0.0
        %2907 = vmatprep.subr.mxu0 0.0
        %2908 = vmatpush1.msra.mxu0 0.0
        %2909 = vmatprep.subr.mxu0 0.0
        %2910 = vmatpush1.msra.mxu0 0.0
        %2911 = vmatprep.subr.mxu0 0.0
        %2912 = vmatpush1.msra.mxu0 0.0
        %2913 = vmatprep.subr.mxu0 0.0
        %2914 = vmatpush1.msra.mxu0 0.0
        %2915 = vmatprep.subr.mxu0 0.0
        %2916 = vmatpush1.msra.mxu0 0.0
        %2917 = vmatprep.subr.mxu0 0.0
        %2918 = vmatpush1.msra.mxu0 0.0
        %2919 = vmatprep.subr.mxu0 0.0
        %2920 = vmatpush1.msra.mxu0 0.0
        %2921 = vmatprep.subr.mxu0 0.0
        %2922 = vmatpush1.msra.mxu0 0.0
        %2923 = vmatprep.subr.mxu0 0.0
        %2924 = vmatpush1.msra.mxu0 0.0
        %2925 = vmatprep.subr.mxu0 0.0
        %2926 = vmatpush1.msra.mxu0 0.0
        %2927 = vmatprep.subr.mxu0 0.0
        %2928 = vmatpush1.msra.mxu0 0.0
        %2929 = vmatprep.subr.mxu0 0.0
        %2930 = vmatpush1.msra.mxu0 0.0
        %2931 = vmatprep.subr.mxu0 0.0
        %2932 = vmatpush1.msra.mxu0 0.0
        %2933 = vmatprep.subr.mxu0 0.0
        %2934 = vmatpush1.msra.mxu0 0.0
        %2935 = vmatprep.subr.mxu0 0.0
        %2936 = vmatpush1.msra.mxu0 0.0
        %2937 = vmatprep.subr.mxu0 0.0
        %2938 = vmatpush1.msra.mxu0 0.0
        %2939 = vmatprep.subr.mxu0 0.0
        %2940 = vmatpush1.msra.mxu0 0.0
        %2941 = vmatprep.subr.mxu0 0.0
        %2942 = vmatpush1.msra.mxu0 0.0
        %2943 = vmatprep.subr.mxu0 0.0
        %2944 = vmatpush1.msra.mxu0 0.0
        %2945 = vmatprep.subr.mxu0 0.0
        %2946 = vmatpush1.msra.mxu0 0.0
        %2947 = vmatprep.subr.mxu0 0.0
        %2948 = vmatpush1.msra.mxu0 0.0
        %2949 = vmatprep.subr.mxu0 0.0
        %2950 = vmatpush1.msra.mxu0 0.0
        %2951 = vmatprep.subr.mxu0 0.0
        %2952 = vmatpush1.msra.mxu0 0.0
        %2953 = vmatprep.subr.mxu0 0.0
        %2954 = vmatpush1.msra.mxu0 0.0
        %2955 = vmatprep.subr.mxu0 0.0
        %2956 = vmatpush1.msra.mxu0 0.0
        %2957 = vmatprep.subr.mxu0 0.0
        %2958 = vmatpush1.msra.mxu0 0.0
        %2959 = vmatprep.mubr.f32.mxu0 0.0
        %2960 = vmatmul.mubr.f32.gmra.mrb[0].mxu0 %v2872
        %v2961 = vpop.f32.mrb[0].mxu0
        %v2962 = vadd.f32 %v2870, %v2961
        %v2963 = vpop.f32.mrb[0].mxu0
        %2964 = vmatprep.mubr.f32.mxu0 0.0
        %2965 = vmatmul.mubr.f32.gmra.mrb[0].mxu0 %v2875
        %v2966 = vpop.f32.mrb[0].mxu0
        %v2967 = vadd.f32 %v2870, %v2966
        %v2968 = vpop.f32.mrb[0].mxu0
        %2969 = vmatprep.mubr.f32.mxu0 0.0
        %2970 = vmatmul.mubr.f32.gmra.mrb[0].mxu0 %v2878
        %v2971 = vpop.f32.mrb[0].mxu0
        %v2972 = vadd.f32 %v2870, %v2971
        %v2973 = vpop.f32.mrb[0].mxu0
        %2974 = vmatprep.mubr.f32.mxu0 0.0
        %2975 = vmatmul.mubr.f32.gmra.mrb[0].mxu0 %v2881
        %v2976 = vpop.f32.mrb[0].mxu0
        %v2977 = vadd.f32 %v2870, %v2976
        %v2978 = vpop.f32.mrb[0].mxu0
        %2979 = vmatprep.mubr.f32.mxu0 0.0
        %2980 = vmatmul.mubr.f32.gmra.mrb[0].mxu0 %v2884
        %v2981 = vpop.f32.mrb[0].mxu0
        %v2982 = vadd.f32 %v2870, %v2981
        %v2983 = vpop.f32.mrb[0].mxu0
        %2984 = vmatprep.mubr.f32.mxu0 0.0
        %2985 = vmatmul.mubr.f32.gmra.mrb[0].mxu0 %v2887
        %v2986 = vpop.f32.mrb[0].mxu0
        %v2987 = vadd.f32 %v2870, %v2986
        %v2988 = vpop.f32.mrb[0].mxu0
        %2989 = vmatprep.mubr.f32.mxu0 0.0
        %2990 = vmatmul.mubr.f32.gmra.mrb[0].mxu0 %v2890
        %v2991 = vpop.f32.mrb[0].mxu0
        %v2992 = vadd.f32 %v2870, %v2991
        %v2993 = vpop.f32.mrb[0].mxu0
        %2994 = vmatprep.mubr.f32.mxu0 0.0
        %2995 = vmatmul.mubr.f32.gmra.mrb[0].mxu0 %v2893
        %v2996 = vpop.f32.mrb[0].mxu0
        %v2997 = vadd.f32 %v2870, %v2996
        %v2998 = vpop.f32.mrb[0].mxu0
        %2999 = vdwg.mxu0
        %v3000 = vadd.f32 %v1555, %v2962
        %v3001 = vadd.f32 %v1556, %v2967
        %v3002 = vadd.f32 %v1557, %v2972
        %v3003 = vadd.f32 %v1558, %v2977
        %v3004 = vadd.f32 %v1559, %v2982
        %v3005 = vadd.f32 %v1560, %v2987
        %v3006 = vadd.f32 %v1561, %v2992
        %v3007 = vadd.f32 %v1562, %v2997
        %v3008 = vadd.f32 %v1563, %v2962
        %v3009 = vadd.f32 %v1564, %v2967
        %v3010 = vadd.f32 %v1565, %v2972
        %v3011 = vadd.f32 %v1566, %v2977
        %v3012 = vadd.f32 %v1567, %v2982
        %v3013 = vadd.f32 %v1568, %v2987
        %v3014 = vadd.f32 %v1569, %v2992
        %v3015 = vadd.f32 %v1570, %v2997
        %3016 = vst.msk [vmem:[#allocation2 + $0x10] sm:$0xff] %vm392, %v3000
        %3017 = vst.msk [vmem:[#allocation2 + $0x18] sm:$0xff] %vm392, %v3001
        %3018 = vst.msk [vmem:[#allocation2 + $0x20] sm:$0xff] %vm392, %v3002
        %3019 = vst.msk [vmem:[#allocation2 + $0x28] sm:$0xff] %vm392, %v3003
        %3020 = vst.msk [vmem:[#allocation2 + $0x30] sm:$0xff] %vm392, %v3004
        %3021 = vst.msk [vmem:[#allocation2 + $0x38] sm:$0xff] %vm392, %v3005
        %3022 = vst.msk [vmem:[#allocation2 + $0x40] sm:$0xff] %vm392, %v3006
        %3023 = vst.msk [vmem:[#allocation2 + $0x48] sm:$0xff] %vm392, %v3007
        %v3024 = vld [vmem:[#allocation2 + $0xf] sm:$0xff]
        %v3025 = vld [vmem:[#allocation2 + $0x17] sm:$0xff]
        %v3026 = vld [vmem:[#allocation2 + $0x1f] sm:$0xff]
        %v3027 = vld [vmem:[#allocation2 + $0x27] sm:$0xff]
        %v3028 = vld [vmem:[#allocation2 + $0x2f] sm:$0xff]
        %v3029 = vld [vmem:[#allocation2 + $0x37] sm:$0xff]
        %v3030 = vld [vmem:[#allocation2 + $0x3f] sm:$0xff]
        %v3031 = vld [vmem:[#allocation2 + $0x47] sm:$0xff]
        %v3032 = vld [vmem:[#allocation2 + $0x11] sm:$0xff]
        %v3033 = vld [vmem:[#allocation2 + $0x19] sm:$0xff]
        %v3034 = vld [vmem:[#allocation2 + $0x21] sm:$0xff]
        %v3035 = vld [vmem:[#allocation2 + $0x29] sm:$0xff]
        %v3036 = vld [vmem:[#allocation2 + $0x31] sm:$0xff]
        %v3037 = vld [vmem:[#allocation2 + $0x39] sm:$0xff]
        %v3038 = vld [vmem:[#allocation2 + $0x41] sm:$0xff]
        %v3039 = vld [vmem:[#allocation2 + $0x49] sm:$0xff]
        %v3040 = vld [vmem:[#allocation2 + $0x7] sm:$0xff]
        %v3041 = vld [vmem:[#allocation2 + $0x51] sm:$0xff]
        %s3042 = scalar_lea.vmem %s1, 128
        %v3043 = vld [vmem:[%s3042] sm:$0xff]
        %v3044 = vld [vmem:[%s3042 + $0x8] sm:$0xff]
        %v3045 = vld [vmem:[%s3042 + $0x10] sm:$0xff]
        %v3046 = vld [vmem:[%s3042 + $0x18] sm:$0xff]
        %s3047 = scalar_lea.vmem %s1, 160
        %v3048 = vld [vmem:[%s3047] sm:$0xff]
        %v3049 = vld [vmem:[%s3047 + $0x8] sm:$0xff]
        %v3050 = vld [vmem:[%s3047 + $0x10] sm:$0xff]
        %v3051 = vld [vmem:[%s3047 + $0x18] sm:$0xff]
        %v3053 = vsel %vm392, %v3033, 0
        %v3056 = vsel %vm392, %v3034, 0
        %v3059 = vsel %vm392, %v3035, 0
        %v3062 = vsel %vm392, %v3036, 0
        %v3065 = vsel %vm392, %v3037, 0
        %v3068 = vsel %vm392, %v3038, 0
        %v3071 = vsel %vm392, %v3039, 0
        %v3074 = vsel %vm392, %v3041, 0
        %3076 = vmatprep.subr.mxu0 0.0
        %3077 = vmatpush1.msra.mxu0 %v3048
        %3078 = vmatprep.subr.mxu0 0.0
        %3079 = vmatpush1.msra.mxu0 %v3049
        %3080 = vmatprep.subr.mxu0 0.0
        %3081 = vmatpush1.msra.mxu0 %v3050
        %3082 = vmatprep.subr.mxu0 0.0
        %3083 = vmatpush1.msra.mxu0 %v3051
        %3084 = vmatprep.subr.mxu0 0.0
        %3085 = vmatpush1.msra.mxu0 0.0
        %3086 = vmatprep.subr.mxu0 0.0
        %3087 = vmatpush1.msra.mxu0 0.0
        %3088 = vmatprep.subr.mxu0 0.0
        %3089 = vmatpush1.msra.mxu0 0.0
        %3090 = vmatprep.subr.mxu0 0.0
        %3091 = vmatpush1.msra.mxu0 0.0
        %3092 = vmatprep.subr.mxu0 0.0
        %3093 = vmatpush1.msra.mxu0 0.0
        %3094 = vmatprep.subr.mxu0 0.0
        %3095 = vmatpush1.msra.mxu0 0.0
        %3096 = vmatprep.subr.mxu0 0.0
        %3097 = vmatpush1.msra.mxu0 0.0
        %3098 = vmatprep.subr.mxu0 0.0
        %3099 = vmatpush1.msra.mxu0 0.0
        %3100 = vmatprep.subr.mxu0 0.0
        %3101 = vmatpush1.msra.mxu0 0.0
        %3102 = vmatprep.subr.mxu0 0.0
        %3103 = vmatpush1.msra.mxu0 0.0
        %3104 = vmatprep.subr.mxu0 0.0
        %3105 = vmatpush1.msra.mxu0 0.0
        %3106 = vmatprep.subr.mxu0 0.0
        %3107 = vmatpush1.msra.mxu0 0.0
        %3108 = vmatprep.subr.mxu0 0.0
        %3109 = vmatpush1.msra.mxu0 0.0
        %3110 = vmatprep.subr.mxu0 0.0
        %3111 = vmatpush1.msra.mxu0 0.0
        %3112 = vmatprep.subr.mxu0 0.0
        %3113 = vmatpush1.msra.mxu0 0.0
        %3114 = vmatprep.subr.mxu0 0.0
        %3115 = vmatpush1.msra.mxu0 0.0
        %3116 = vmatprep.subr.mxu0 0.0
        %3117 = vmatpush1.msra.mxu0 0.0
        %3118 = vmatprep.subr.mxu0 0.0
        %3119 = vmatpush1.msra.mxu0 0.0
        %3120 = vmatprep.subr.mxu0 0.0
        %3121 = vmatpush1.msra.mxu0 0.0
        %3122 = vmatprep.subr.mxu0 0.0
        %3123 = vmatpush1.msra.mxu0 0.0
        %3124 = vmatprep.subr.mxu0 0.0
        %3125 = vmatpush1.msra.mxu0 0.0
        %3126 = vmatprep.subr.mxu0 0.0
        %3127 = vmatpush1.msra.mxu0 0.0
        %3128 = vmatprep.subr.mxu0 0.0
        %3129 = vmatpush1.msra.mxu0 0.0
        %3130 = vmatprep.subr.mxu0 0.0
        %3131 = vmatpush1.msra.mxu0 0.0
        %3132 = vmatprep.subr.mxu0 0.0
        %3133 = vmatpush1.msra.mxu0 0.0
        %3134 = vmatprep.subr.mxu0 0.0
        %3135 = vmatpush1.msra.mxu0 0.0
        %3136 = vmatprep.subr.mxu0 0.0
        %3137 = vmatpush1.msra.mxu0 0.0
        %3138 = vmatprep.subr.mxu0 0.0
        %3139 = vmatpush1.msra.mxu0 0.0
        %3140 = vmatprep.mubr.f32.mxu0 0.0
        %3141 = vmatmul.mubr.f32.gmra.mrb[0].mxu0 %v3053
        %v3142 = vpop.f32.mrb[0].mxu0
        %v3143 = vadd.f32 0.0, %v3142
        %v3144 = vpop.f32.mrb[0].mxu0
        %3145 = vmatprep.mubr.f32.mxu0 0.0
        %3146 = vmatmul.mubr.f32.gmra.mrb[0].mxu0 %v3056
        %v3147 = vpop.f32.mrb[0].mxu0
        %v3148 = vadd.f32 0.0, %v3147
        %v3149 = vpop.f32.mrb[0].mxu0
        %3150 = vmatprep.mubr.f32.mxu0 0.0
        %3151 = vmatmul.mubr.f32.gmra.mrb[0].mxu0 %v3059
        %v3152 = vpop.f32.mrb[0].mxu0
        %v3153 = vadd.f32 0.0, %v3152
        %v3154 = vpop.f32.mrb[0].mxu0
        %3155 = vmatprep.mubr.f32.mxu0 0.0
        %3156 = vmatmul.mubr.f32.gmra.mrb[0].mxu0 %v3062
        %v3157 = vpop.f32.mrb[0].mxu0
        %v3158 = vadd.f32 0.0, %v3157
        %v3159 = vpop.f32.mrb[0].mxu0
        %3160 = vmatprep.mubr.f32.mxu0 0.0
        %3161 = vmatmul.mubr.f32.gmra.mrb[0].mxu0 %v3065
        %v3162 = vpop.f32.mrb[0].mxu0
        %v3163 = vadd.f32 0.0, %v3162
        %v3164 = vpop.f32.mrb[0].mxu0
        %3165 = vmatprep.mubr.f32.mxu0 0.0
        %3166 = vmatmul.mubr.f32.gmra.mrb[0].mxu0 %v3068
        %v3167 = vpop.f32.mrb[0].mxu0
        %v3168 = vadd.f32 0.0, %v3167
        %v3169 = vpop.f32.mrb[0].mxu0
        %3170 = vmatprep.mubr.f32.mxu0 0.0
        %3171 = vmatmul.mubr.f32.gmra.mrb[0].mxu0 %v3071
        %v3172 = vpop.f32.mrb[0].mxu0
        %v3173 = vadd.f32 0.0, %v3172
        %v3174 = vpop.f32.mrb[0].mxu0
        %3175 = vmatprep.mubr.f32.mxu0 0.0
        %3176 = vmatmul.mubr.f32.gmra.mrb[0].mxu0 %v3074
        %v3177 = vpop.f32.mrb[0].mxu0
        %v3178 = vadd.f32 0.0, %v3177
        %v3179 = vpop.f32.mrb[0].mxu0
        %3180 = vdwg.mxu0
        %v3182 = vsel %vm392, %v3040, 0
        %v3185 = vsel %vm392, %v3024, 0
        %v3188 = vsel %vm392, %v3025, 0
        %v3191 = vsel %vm392, %v3026, 0
        %v3194 = vsel %vm392, %v3027, 0
        %v3197 = vsel %vm392, %v3028, 0
        %v3200 = vsel %vm392, %v3029, 0
        %v3203 = vsel %vm392, %v3030, 0
        %3205 = vmatprep.subr.mxu0 0.0
        %3206 = vmatpush1.msra.mxu0 %v3043
        %3207 = vmatprep.subr.mxu0 0.0
        %3208 = vmatpush1.msra.mxu0 %v3044
        %3209 = vmatprep.subr.mxu0 0.0
        %3210 = vmatpush1.msra.mxu0 %v3045
        %3211 = vmatprep.subr.mxu0 0.0
        %3212 = vmatpush1.msra.mxu0 %v3046
        %3213 = vmatprep.subr.mxu0 0.0
        %3214 = vmatpush1.msra.mxu0 0.0
        %3215 = vmatprep.subr.mxu0 0.0
        %3216 = vmatpush1.msra.mxu0 0.0
        %3217 = vmatprep.subr.mxu0 0.0
        %3218 = vmatpush1.msra.mxu0 0.0
        %3219 = vmatprep.subr.mxu0 0.0
        %3220 = vmatpush1.msra.mxu0 0.0
        %3221 = vmatprep.subr.mxu0 0.0
        %3222 = vmatpush1.msra.mxu0 0.0
        %3223 = vmatprep.subr.mxu0 0.0
        %3224 = vmatpush1.msra.mxu0 0.0
        %3225 = vmatprep.subr.mxu0 0.0
        %3226 = vmatpush1.msra.mxu0 0.0
        %3227 = vmatprep.subr.mxu0 0.0
        %3228 = vmatpush1.msra.mxu0 0.0
        %3229 = vmatprep.subr.mxu0 0.0
        %3230 = vmatpush1.msra.mxu0 0.0
        %3231 = vmatprep.subr.mxu0 0.0
        %3232 = vmatpush1.msra.mxu0 0.0
        %3233 = vmatprep.subr.mxu0 0.0
        %3234 = vmatpush1.msra.mxu0 0.0
        %3235 = vmatprep.subr.mxu0 0.0
        %3236 = vmatpush1.msra.mxu0 0.0
        %3237 = vmatprep.subr.mxu0 0.0
        %3238 = vmatpush1.msra.mxu0 0.0
        %3239 = vmatprep.subr.mxu0 0.0
        %3240 = vmatpush1.msra.mxu0 0.0
        %3241 = vmatprep.subr.mxu0 0.0
        %3242 = vmatpush1.msra.mxu0 0.0
        %3243 = vmatprep.subr.mxu0 0.0
        %3244 = vmatpush1.msra.mxu0 0.0
        %3245 = vmatprep.subr.mxu0 0.0
        %3246 = vmatpush1.msra.mxu0 0.0
        %3247 = vmatprep.subr.mxu0 0.0
        %3248 = vmatpush1.msra.mxu0 0.0
        %3249 = vmatprep.subr.mxu0 0.0
        %3250 = vmatpush1.msra.mxu0 0.0
        %3251 = vmatprep.subr.mxu0 0.0
        %3252 = vmatpush1.msra.mxu0 0.0
        %3253 = vmatprep.subr.mxu0 0.0
        %3254 = vmatpush1.msra.mxu0 0.0
        %3255 = vmatprep.subr.mxu0 0.0
        %3256 = vmatpush1.msra.mxu0 0.0
        %3257 = vmatprep.subr.mxu0 0.0
        %3258 = vmatpush1.msra.mxu0 0.0
        %3259 = vmatprep.subr.mxu0 0.0
        %3260 = vmatpush1.msra.mxu0 0.0
        %3261 = vmatprep.subr.mxu0 0.0
        %3262 = vmatpush1.msra.mxu0 0.0
        %3263 = vmatprep.subr.mxu0 0.0
        %3264 = vmatpush1.msra.mxu0 0.0
        %3265 = vmatprep.subr.mxu0 0.0
        %3266 = vmatpush1.msra.mxu0 0.0
        %3267 = vmatprep.subr.mxu0 0.0
        %3268 = vmatpush1.msra.mxu0 0.0
        %3269 = vmatprep.mubr.f32.mxu0 0.0
        %3270 = vmatmul.mubr.f32.gmra.mrb[0].mxu0 %v3182
        %v3271 = vpop.f32.mrb[0].mxu0
        %v3272 = vadd.f32 %v3143, %v3271
        %v3273 = vpop.f32.mrb[0].mxu0
        %3274 = vmatprep.mubr.f32.mxu0 0.0
        %3275 = vmatmul.mubr.f32.gmra.mrb[0].mxu0 %v3185
        %v3276 = vpop.f32.mrb[0].mxu0
        %v3277 = vadd.f32 %v3148, %v3276
        %v3278 = vpop.f32.mrb[0].mxu0
        %3279 = vmatprep.mubr.f32.mxu0 0.0
        %3280 = vmatmul.mubr.f32.gmra.mrb[0].mxu0 %v3188
        %v3281 = vpop.f32.mrb[0].mxu0
        %v3282 = vadd.f32 %v3153, %v3281
        %v3283 = vpop.f32.mrb[0].mxu0
        %3284 = vmatprep.mubr.f32.mxu0 0.0
        %3285 = vmatmul.mubr.f32.gmra.mrb[0].mxu0 %v3191
        %v3286 = vpop.f32.mrb[0].mxu0
        %v3287 = vadd.f32 %v3158, %v3286
        %v3288 = vpop.f32.mrb[0].mxu0
        %3289 = vmatprep.mubr.f32.mxu0 0.0
        %3290 = vmatmul.mubr.f32.gmra.mrb[0].mxu0 %v3194
        %v3291 = vpop.f32.mrb[0].mxu0
        %v3292 = vadd.f32 %v3163, %v3291
        %v3293 = vpop.f32.mrb[0].mxu0
        %3294 = vmatprep.mubr.f32.mxu0 0.0
        %3295 = vmatmul.mubr.f32.gmra.mrb[0].mxu0 %v3197
        %v3296 = vpop.f32.mrb[0].mxu0
        %v3297 = vadd.f32 %v3168, %v3296
        %v3298 = vpop.f32.mrb[0].mxu0
        %3299 = vmatprep.mubr.f32.mxu0 0.0
        %3300 = vmatmul.mubr.f32.gmra.mrb[0].mxu0 %v3200
        %v3301 = vpop.f32.mrb[0].mxu0
        %v3302 = vadd.f32 %v3173, %v3301
        %v3303 = vpop.f32.mrb[0].mxu0
        %3304 = vmatprep.mubr.f32.mxu0 0.0
        %3305 = vmatmul.mubr.f32.gmra.mrb[0].mxu0 %v3203
        %v3306 = vpop.f32.mrb[0].mxu0
        %v3307 = vadd.f32 %v3178, %v3306
        %v3308 = vpop.f32.mrb[0].mxu0
        %3309 = vdwg.mxu0
        %s3310 = scalar_lea.vmem [#allocation3], 128
        %v3311 = vld [vmem:[%s3310] sm:$0xff]
        %v3312 = vld [vmem:[%s3310 + $0x8] sm:$0xff]
        %v3313 = vld [vmem:[%s3310 + $0x10] sm:$0xff]
        %v3314 = vld [vmem:[%s3310 + $0x18] sm:$0xff]
        %v3316 = vsel %vm392, %v3031, 0
        %3318 = vmatprep.subr.mxu0 0.0
        %3319 = vmatpush1.msra.mxu0 %v3311
        %3320 = vmatprep.subr.mxu0 0.0
        %3321 = vmatpush1.msra.mxu0 %v3312
        %3322 = vmatprep.subr.mxu0 0.0
        %3323 = vmatpush1.msra.mxu0 %v3313
        %3324 = vmatprep.subr.mxu0 0.0
        %3325 = vmatpush1.msra.mxu0 %v3314
        %3326 = vmatprep.subr.mxu0 0.0
        %3327 = vmatpush1.msra.mxu0 0.0
        %3328 = vmatprep.subr.mxu0 0.0
        %3329 = vmatpush1.msra.mxu0 0.0
        %3330 = vmatprep.subr.mxu0 0.0
        %3331 = vmatpush1.msra.mxu0 0.0
        %3332 = vmatprep.subr.mxu0 0.0
        %3333 = vmatpush1.msra.mxu0 0.0
        %3334 = vmatprep.subr.mxu0 0.0
        %3335 = vmatpush1.msra.mxu0 0.0
        %3336 = vmatprep.subr.mxu0 0.0
        %3337 = vmatpush1.msra.mxu0 0.0
        %3338 = vmatprep.subr.mxu0 0.0
        %3339 = vmatpush1.msra.mxu0 0.0
        %3340 = vmatprep.subr.mxu0 0.0
        %3341 = vmatpush1.msra.mxu0 0.0
        %3342 = vmatprep.subr.mxu0 0.0
        %3343 = vmatpush1.msra.mxu0 0.0
        %3344 = vmatprep.subr.mxu0 0.0
        %3345 = vmatpush1.msra.mxu0 0.0
        %3346 = vmatprep.subr.mxu0 0.0
        %3347 = vmatpush1.msra.mxu0 0.0
        %3348 = vmatprep.subr.mxu0 0.0
        %3349 = vmatpush1.msra.mxu0 0.0
        %3350 = vmatprep.subr.mxu0 0.0
        %3351 = vmatpush1.msra.mxu0 0.0
        %3352 = vmatprep.subr.mxu0 0.0
        %3353 = vmatpush1.msra.mxu0 0.0
        %3354 = vmatprep.subr.mxu0 0.0
        %3355 = vmatpush1.msra.mxu0 0.0
        %3356 = vmatprep.subr.mxu0 0.0
        %3357 = vmatpush1.msra.mxu0 0.0
        %3358 = vmatprep.subr.mxu0 0.0
        %3359 = vmatpush1.msra.mxu0 0.0
        %3360 = vmatprep.subr.mxu0 0.0
        %3361 = vmatpush1.msra.mxu0 0.0
        %3362 = vmatprep.subr.mxu0 0.0
        %3363 = vmatpush1.msra.mxu0 0.0
        %3364 = vmatprep.subr.mxu0 0.0
        %3365 = vmatpush1.msra.mxu0 0.0
        %3366 = vmatprep.subr.mxu0 0.0
        %3367 = vmatpush1.msra.mxu0 0.0
        %3368 = vmatprep.subr.mxu0 0.0
        %3369 = vmatpush1.msra.mxu0 0.0
        %3370 = vmatprep.subr.mxu0 0.0
        %3371 = vmatpush1.msra.mxu0 0.0
        %3372 = vmatprep.subr.mxu0 0.0
        %3373 = vmatpush1.msra.mxu0 0.0
        %3374 = vmatprep.subr.mxu0 0.0
        %3375 = vmatpush1.msra.mxu0 0.0
        %3376 = vmatprep.subr.mxu0 0.0
        %3377 = vmatpush1.msra.mxu0 0.0
        %3378 = vmatprep.subr.mxu0 0.0
        %3379 = vmatpush1.msra.mxu0 0.0
        %3380 = vmatprep.subr.mxu0 0.0
        %3381 = vmatpush1.msra.mxu0 0.0
        %3382 = vmatprep.mubr.f32.mxu0 0.0
        %3383 = vmatmul.mubr.f32.gmra.mrb[0].mxu0 %v3185
        %v3384 = vpop.f32.mrb[0].mxu0
        %v3385 = vadd.f32 0.0, %v3384
        %v3386 = vpop.f32.mrb[0].mxu0
        %3387 = vmatprep.mubr.f32.mxu0 0.0
        %3388 = vmatmul.mubr.f32.gmra.mrb[0].mxu0 %v3188
        %v3389 = vpop.f32.mrb[0].mxu0
        %v3390 = vadd.f32 0.0, %v3389
        %v3391 = vpop.f32.mrb[0].mxu0
        %3392 = vmatprep.mubr.f32.mxu0 0.0
        %3393 = vmatmul.mubr.f32.gmra.mrb[0].mxu0 %v3191
        %v3394 = vpop.f32.mrb[0].mxu0
        %v3395 = vadd.f32 0.0, %v3394
        %v3396 = vpop.f32.mrb[0].mxu0
        %3397 = vmatprep.mubr.f32.mxu0 0.0
        %3398 = vmatmul.mubr.f32.gmra.mrb[0].mxu0 %v3194
        %v3399 = vpop.f32.mrb[0].mxu0
        %v3400 = vadd.f32 0.0, %v3399
        %v3401 = vpop.f32.mrb[0].mxu0
        %3402 = vmatprep.mubr.f32.mxu0 0.0
        %3403 = vmatmul.mubr.f32.gmra.mrb[0].mxu0 %v3197
        %v3404 = vpop.f32.mrb[0].mxu0
        %v3405 = vadd.f32 0.0, %v3404
        %v3406 = vpop.f32.mrb[0].mxu0
        %3407 = vmatprep.mubr.f32.mxu0 0.0
        %3408 = vmatmul.mubr.f32.gmra.mrb[0].mxu0 %v3200
        %v3409 = vpop.f32.mrb[0].mxu0
        %v3410 = vadd.f32 0.0, %v3409
        %v3411 = vpop.f32.mrb[0].mxu0
        %3412 = vmatprep.mubr.f32.mxu0 0.0
        %3413 = vmatmul.mubr.f32.gmra.mrb[0].mxu0 %v3203
        %v3414 = vpop.f32.mrb[0].mxu0
        %v3415 = vadd.f32 0.0, %v3414
        %v3416 = vpop.f32.mrb[0].mxu0
        %3417 = vmatprep.mubr.f32.mxu0 0.0
        %3418 = vmatmul.mubr.f32.gmra.mrb[0].mxu0 %v3316
        %v3419 = vpop.f32.mrb[0].mxu0
        %v3420 = vadd.f32 0.0, %v3419
        %v3421 = vpop.f32.mrb[0].mxu0
        %3422 = vdwg.mxu0
        %v3423 = vadd.f32 %v3272, %v3385
        %v3424 = vadd.f32 %v3277, %v3390
        %v3425 = vadd.f32 %v3282, %v3395
        %v3426 = vadd.f32 %v3287, %v3400
        %v3427 = vadd.f32 %v3292, %v3405
        %v3428 = vadd.f32 %v3297, %v3410
        %v3429 = vadd.f32 %v3302, %v3415
        %v3430 = vadd.f32 %v3307, %v3420
        %s3431 = scalar_lea.vmem [#allocation3], 160
        %v3432 = vld [vmem:[%s3431] sm:$0xff]
        %v3433 = vld [vmem:[%s3431 + $0x8] sm:$0xff]
        %v3434 = vld [vmem:[%s3431 + $0x10] sm:$0xff]
        %v3435 = vld [vmem:[%s3431 + $0x18] sm:$0xff]
        %v3437 = vsel %vm392, %v3032, 0
        %3439 = vmatprep.subr.mxu0 0.0
        %3440 = vmatpush1.msra.mxu0 %v3432
        %3441 = vmatprep.subr.mxu0 0.0
        %3442 = vmatpush1.msra.mxu0 %v3433
        %3443 = vmatprep.subr.mxu0 0.0
        %3444 = vmatpush1.msra.mxu0 %v3434
        %3445 = vmatprep.subr.mxu0 0.0
        %3446 = vmatpush1.msra.mxu0 %v3435
        %3447 = vmatprep.subr.mxu0 0.0
        %3448 = vmatpush1.msra.mxu0 0.0
        %3449 = vmatprep.subr.mxu0 0.0
        %3450 = vmatpush1.msra.mxu0 0.0
        %3451 = vmatprep.subr.mxu0 0.0
        %3452 = vmatpush1.msra.mxu0 0.0
        %3453 = vmatprep.subr.mxu0 0.0
        %3454 = vmatpush1.msra.mxu0 0.0
        %3455 = vmatprep.subr.mxu0 0.0
        %3456 = vmatpush1.msra.mxu0 0.0
        %3457 = vmatprep.subr.mxu0 0.0
        %3458 = vmatpush1.msra.mxu0 0.0
        %3459 = vmatprep.subr.mxu0 0.0
        %3460 = vmatpush1.msra.mxu0 0.0
        %3461 = vmatprep.subr.mxu0 0.0
        %3462 = vmatpush1.msra.mxu0 0.0
        %3463 = vmatprep.subr.mxu0 0.0
        %3464 = vmatpush1.msra.mxu0 0.0
        %3465 = vmatprep.subr.mxu0 0.0
        %3466 = vmatpush1.msra.mxu0 0.0
        %3467 = vmatprep.subr.mxu0 0.0
        %3468 = vmatpush1.msra.mxu0 0.0
        %3469 = vmatprep.subr.mxu0 0.0
        %3470 = vmatpush1.msra.mxu0 0.0
        %3471 = vmatprep.subr.mxu0 0.0
        %3472 = vmatpush1.msra.mxu0 0.0
        %3473 = vmatprep.subr.mxu0 0.0
        %3474 = vmatpush1.msra.mxu0 0.0
        %3475 = vmatprep.subr.mxu0 0.0
        %3476 = vmatpush1.msra.mxu0 0.0
        %3477 = vmatprep.subr.mxu0 0.0
        %3478 = vmatpush1.msra.mxu0 0.0
        %3479 = vmatprep.subr.mxu0 0.0
        %3480 = vmatpush1.msra.mxu0 0.0
        %3481 = vmatprep.subr.mxu0 0.0
        %3482 = vmatpush1.msra.mxu0 0.0
        %3483 = vmatprep.subr.mxu0 0.0
        %3484 = vmatpush1.msra.mxu0 0.0
        %3485 = vmatprep.subr.mxu0 0.0
        %3486 = vmatpush1.msra.mxu0 0.0
        %3487 = vmatprep.subr.mxu0 0.0
        %3488 = vmatpush1.msra.mxu0 0.0
        %3489 = vmatprep.subr.mxu0 0.0
        %3490 = vmatpush1.msra.mxu0 0.0
        %3491 = vmatprep.subr.mxu0 0.0
        %3492 = vmatpush1.msra.mxu0 0.0
        %3493 = vmatprep.subr.mxu0 0.0
        %3494 = vmatpush1.msra.mxu0 0.0
        %3495 = vmatprep.subr.mxu0 0.0
        %3496 = vmatpush1.msra.mxu0 0.0
        %3497 = vmatprep.subr.mxu0 0.0
        %3498 = vmatpush1.msra.mxu0 0.0
        %3499 = vmatprep.subr.mxu0 0.0
        %3500 = vmatpush1.msra.mxu0 0.0
        %3501 = vmatprep.subr.mxu0 0.0
        %3502 = vmatpush1.msra.mxu0 0.0
        %3503 = vmatprep.mubr.f32.mxu0 0.0
        %3504 = vmatmul.mubr.f32.gmra.mrb[0].mxu0 %v3437
        %v3505 = vpop.f32.mrb[0].mxu0
        %v3506 = vadd.f32 0.0, %v3505
        %v3507 = vpop.f32.mrb[0].mxu0
        %3508 = vmatprep.mubr.f32.mxu0 0.0
        %3509 = vmatmul.mubr.f32.gmra.mrb[0].mxu0 %v3053
        %v3510 = vpop.f32.mrb[0].mxu0
        %v3511 = vadd.f32 0.0, %v3510
        %v3512 = vpop.f32.mrb[0].mxu0
        %3513 = vmatprep.mubr.f32.mxu0 0.0
        %3514 = vmatmul.mubr.f32.gmra.mrb[0].mxu0 %v3056
        %v3515 = vpop.f32.mrb[0].mxu0
        %v3516 = vadd.f32 0.0, %v3515
        %v3517 = vpop.f32.mrb[0].mxu0
        %3518 = vmatprep.mubr.f32.mxu0 0.0
        %3519 = vmatmul.mubr.f32.gmra.mrb[0].mxu0 %v3059
        %v3520 = vpop.f32.mrb[0].mxu0
        %v3521 = vadd.f32 0.0, %v3520
        %v3522 = vpop.f32.mrb[0].mxu0
        %3523 = vmatprep.mubr.f32.mxu0 0.0
        %3524 = vmatmul.mubr.f32.gmra.mrb[0].mxu0 %v3062
        %v3525 = vpop.f32.mrb[0].mxu0
        %v3526 = vadd.f32 0.0, %v3525
        %v3527 = vpop.f32.mrb[0].mxu0
        %3528 = vmatprep.mubr.f32.mxu0 0.0
        %3529 = vmatmul.mubr.f32.gmra.mrb[0].mxu0 %v3065
        %v3530 = vpop.f32.mrb[0].mxu0
        %v3531 = vadd.f32 0.0, %v3530
        %v3532 = vpop.f32.mrb[0].mxu0
        %3533 = vmatprep.mubr.f32.mxu0 0.0
        %3534 = vmatmul.mubr.f32.gmra.mrb[0].mxu0 %v3068
        %v3535 = vpop.f32.mrb[0].mxu0
        %v3536 = vadd.f32 0.0, %v3535
        %v3537 = vpop.f32.mrb[0].mxu0
        %3538 = vmatprep.mubr.f32.mxu0 0.0
        %3539 = vmatmul.mubr.f32.gmra.mrb[0].mxu0 %v3071
        %v3540 = vpop.f32.mrb[0].mxu0
        %v3541 = vadd.f32 0.0, %v3540
        %v3542 = vpop.f32.mrb[0].mxu0
        %3543 = vdwg.mxu0
        %v3544 = vadd.f32 %v3423, %v3506
        %v3545 = vadd.f32 %v3424, %v3511
        %v3546 = vadd.f32 %v3425, %v3516
        %v3547 = vadd.f32 %v3426, %v3521
        %v3548 = vadd.f32 %v3427, %v3526
        %v3549 = vadd.f32 %v3428, %v3531
        %v3550 = vadd.f32 %v3429, %v3536
        %v3551 = vadd.f32 %v3430, %v3541
        %s3552 = scalar_lea.vmem [#allocation5], 64
        %v3553 = vld [vmem:[%s3552] sm:$0xff]
        %v3554 = vld [vmem:[%s3552 + $0x8] sm:$0xff]
        %v3555 = vld [vmem:[%s3552 + $0x10] sm:$0xff]
        %v3556 = vld [vmem:[%s3552 + $0x18] sm:$0xff]
        %v3558 = vsel %vm392, %v3000, 0
        %v3561 = vsel %vm392, %v3001, 0
        %v3564 = vsel %vm392, %v3002, 0
        %v3567 = vsel %vm392, %v3003, 0
        %v3570 = vsel %vm392, %v3004, 0
        %v3573 = vsel %vm392, %v3005, 0
        %v3576 = vsel %vm392, %v3006, 0
        %v3579 = vsel %vm392, %v3007, 0
        %3581 = vmatprep.subr.mxu0 0.0
        %3582 = vmatpush1.msra.mxu0 %v3553
        %3583 = vmatprep.subr.mxu0 0.0
        %3584 = vmatpush1.msra.mxu0 %v3554
        %3585 = vmatprep.subr.mxu0 0.0
        %3586 = vmatpush1.msra.mxu0 %v3555
        %3587 = vmatprep.subr.mxu0 0.0
        %3588 = vmatpush1.msra.mxu0 %v3556
        %3589 = vmatprep.subr.mxu0 0.0
        %3590 = vmatpush1.msra.mxu0 0.0
        %3591 = vmatprep.subr.mxu0 0.0
        %3592 = vmatpush1.msra.mxu0 0.0
        %3593 = vmatprep.subr.mxu0 0.0
        %3594 = vmatpush1.msra.mxu0 0.0
        %3595 = vmatprep.subr.mxu0 0.0
        %3596 = vmatpush1.msra.mxu0 0.0
        %3597 = vmatprep.subr.mxu0 0.0
        %3598 = vmatpush1.msra.mxu0 0.0
        %3599 = vmatprep.subr.mxu0 0.0
        %3600 = vmatpush1.msra.mxu0 0.0
        %3601 = vmatprep.subr.mxu0 0.0
        %3602 = vmatpush1.msra.mxu0 0.0
        %3603 = vmatprep.subr.mxu0 0.0
        %3604 = vmatpush1.msra.mxu0 0.0
        %3605 = vmatprep.subr.mxu0 0.0
        %3606 = vmatpush1.msra.mxu0 0.0
        %3607 = vmatprep.subr.mxu0 0.0
        %3608 = vmatpush1.msra.mxu0 0.0
        %3609 = vmatprep.subr.mxu0 0.0
        %3610 = vmatpush1.msra.mxu0 0.0
        %3611 = vmatprep.subr.mxu0 0.0
        %3612 = vmatpush1.msra.mxu0 0.0
        %3613 = vmatprep.subr.mxu0 0.0
        %3614 = vmatpush1.msra.mxu0 0.0
        %3615 = vmatprep.subr.mxu0 0.0
        %3616 = vmatpush1.msra.mxu0 0.0
        %3617 = vmatprep.subr.mxu0 0.0
        %3618 = vmatpush1.msra.mxu0 0.0
        %3619 = vmatprep.subr.mxu0 0.0
        %3620 = vmatpush1.msra.mxu0 0.0
        %3621 = vmatprep.subr.mxu0 0.0
        %3622 = vmatpush1.msra.mxu0 0.0
        %3623 = vmatprep.subr.mxu0 0.0
        %3624 = vmatpush1.msra.mxu0 0.0
        %3625 = vmatprep.subr.mxu0 0.0
        %3626 = vmatpush1.msra.mxu0 0.0
        %3627 = vmatprep.subr.mxu0 0.0
        %3628 = vmatpush1.msra.mxu0 0.0
        %3629 = vmatprep.subr.mxu0 0.0
        %3630 = vmatpush1.msra.mxu0 0.0
        %3631 = vmatprep.subr.mxu0 0.0
        %3632 = vmatpush1.msra.mxu0 0.0
        %3633 = vmatprep.subr.mxu0 0.0
        %3634 = vmatpush1.msra.mxu0 0.0
        %3635 = vmatprep.subr.mxu0 0.0
        %3636 = vmatpush1.msra.mxu0 0.0
        %3637 = vmatprep.subr.mxu0 0.0
        %3638 = vmatpush1.msra.mxu0 0.0
        %3639 = vmatprep.subr.mxu0 0.0
        %3640 = vmatpush1.msra.mxu0 0.0
        %3641 = vmatprep.subr.mxu0 0.0
        %3642 = vmatpush1.msra.mxu0 0.0
        %3643 = vmatprep.subr.mxu0 0.0
        %3644 = vmatpush1.msra.mxu0 0.0
        %3645 = vmatprep.mubr.f32.mxu0 0.0
        %3646 = vmatmul.mubr.f32.gmra.mrb[0].mxu0 %v3558
        %v3647 = vpop.f32.mrb[0].mxu0
        %v3648 = vadd.f32 0.0, %v3647
        %v3649 = vpop.f32.mrb[0].mxu0
        %3650 = vmatprep.mubr.f32.mxu0 0.0
        %3651 = vmatmul.mubr.f32.gmra.mrb[0].mxu0 %v3561
        %v3652 = vpop.f32.mrb[0].mxu0
        %v3653 = vadd.f32 0.0, %v3652
        %v3654 = vpop.f32.mrb[0].mxu0
        %3655 = vmatprep.mubr.f32.mxu0 0.0
        %3656 = vmatmul.mubr.f32.gmra.mrb[0].mxu0 %v3564
        %v3657 = vpop.f32.mrb[0].mxu0
        %v3658 = vadd.f32 0.0, %v3657
        %v3659 = vpop.f32.mrb[0].mxu0
        %3660 = vmatprep.mubr.f32.mxu0 0.0
        %3661 = vmatmul.mubr.f32.gmra.mrb[0].mxu0 %v3567
        %v3662 = vpop.f32.mrb[0].mxu0
        %v3663 = vadd.f32 0.0, %v3662
        %v3664 = vpop.f32.mrb[0].mxu0
        %3665 = vmatprep.mubr.f32.mxu0 0.0
        %3666 = vmatmul.mubr.f32.gmra.mrb[0].mxu0 %v3570
        %v3667 = vpop.f32.mrb[0].mxu0
        %v3668 = vadd.f32 0.0, %v3667
        %v3669 = vpop.f32.mrb[0].mxu0
        %3670 = vmatprep.mubr.f32.mxu0 0.0
        %3671 = vmatmul.mubr.f32.gmra.mrb[0].mxu0 %v3573
        %v3672 = vpop.f32.mrb[0].mxu0
        %v3673 = vadd.f32 0.0, %v3672
        %v3674 = vpop.f32.mrb[0].mxu0
        %3675 = vmatprep.mubr.f32.mxu0 0.0
        %3676 = vmatmul.mubr.f32.gmra.mrb[0].mxu0 %v3576
        %v3677 = vpop.f32.mrb[0].mxu0
        %v3678 = vadd.f32 0.0, %v3677
        %v3679 = vpop.f32.mrb[0].mxu0
        %3680 = vmatprep.mubr.f32.mxu0 0.0
        %3681 = vmatmul.mubr.f32.gmra.mrb[0].mxu0 %v3579
        %v3682 = vpop.f32.mrb[0].mxu0
        %v3683 = vadd.f32 0.0, %v3682
        %v3684 = vpop.f32.mrb[0].mxu0
        %3685 = vdwg.mxu0
        %v3686 = vadd.f32 %v3544, %v3648
        %v3687 = vadd.f32 %v3545, %v3653
        %v3688 = vadd.f32 %v3546, %v3658
        %v3689 = vadd.f32 %v3547, %v3663
        %v3690 = vadd.f32 %v3548, %v3668
        %v3691 = vadd.f32 %v3549, %v3673
        %v3692 = vadd.f32 %v3550, %v3678
        %v3693 = vadd.f32 %v3551, %v3683
        %v3694 = vld [vmem:[%s4 + $0x2] sm:$0x1]
        %v3695 = vlaneseq
        %v3696 = vshrl.u32 %v3695, 7
        %v3697 = vsub.s32 0, %v3696
        %v3698 = vrot.slane %v3694, %v3697
        %v3699 = vadd.f32 %v3686, %v3698
        %v3700 = vadd.f32 %v3687, %v3698
        %v3701 = vadd.f32 %v3688, %v3698
        %v3702 = vadd.f32 %v3689, %v3698
        %v3703 = vadd.f32 %v3690, %v3698
        %v3704 = vadd.f32 %v3691, %v3698
        %v3705 = vadd.f32 %v3692, %v3698
        %v3706 = vadd.f32 %v3693, %v3698
        %3707 = vst.msk [vmem:[#allocation2 + $0x10] sm:$0xff] %vm392, %v3699
        %3708 = vst.msk [vmem:[#allocation2 + $0x18] sm:$0xff] %vm392, %v3700
        %3709 = vst.msk [vmem:[#allocation2 + $0x20] sm:$0xff] %vm392, %v3701
        %3710 = vst.msk [vmem:[#allocation2 + $0x28] sm:$0xff] %vm392, %v3702
        %3711 = vst.msk [vmem:[#allocation2 + $0x30] sm:$0xff] %vm392, %v3703
        %3712 = vst.msk [vmem:[#allocation2 + $0x38] sm:$0xff] %vm392, %v3704
        %3713 = vst.msk [vmem:[#allocation2 + $0x40] sm:$0xff] %vm392, %v3705
        %3714 = vst.msk [vmem:[#allocation2 + $0x48] sm:$0xff] %vm392, %v3706
        %v3715 = vld [vmem:[#allocation2 + $0xf] sm:$0xff]
        %v3716 = vld [vmem:[#allocation2 + $0x17] sm:$0xff]
        %v3717 = vld [vmem:[#allocation2 + $0x1f] sm:$0xff]
        %v3718 = vld [vmem:[#allocation2 + $0x27] sm:$0xff]
        %v3719 = vld [vmem:[#allocation2 + $0x2f] sm:$0xff]
        %v3720 = vld [vmem:[#allocation2 + $0x37] sm:$0xff]
        %v3721 = vld [vmem:[#allocation2 + $0x3f] sm:$0xff]
        %v3722 = vld [vmem:[#allocation2 + $0x47] sm:$0xff]
        %v3723 = vld [vmem:[#allocation2 + $0x11] sm:$0xff]
        %v3724 = vld [vmem:[#allocation2 + $0x19] sm:$0xff]
        %v3725 = vld [vmem:[#allocation2 + $0x21] sm:$0xff]
        %v3726 = vld [vmem:[#allocation2 + $0x29] sm:$0xff]
        %v3727 = vld [vmem:[#allocation2 + $0x31] sm:$0xff]
        %v3728 = vld [vmem:[#allocation2 + $0x39] sm:$0xff]
        %v3729 = vld [vmem:[#allocation2 + $0x41] sm:$0xff]
        %v3730 = vld [vmem:[#allocation2 + $0x49] sm:$0xff]
        %s3731 = scalar_lea.vmem [#allocation7], 192
        %v3732 = vld [vmem:[%s3731] sm:$0xff]
        %v3733 = vld [vmem:[%s3731 + $0x8] sm:$0xff]
        %v3734 = vld [vmem:[%s3731 + $0x10] sm:$0xff]
        %v3735 = vld [vmem:[%s3731 + $0x18] sm:$0xff]
        %s3736 = scalar_lea.vmem [#allocation7], 224
        %v3737 = vld [vmem:[%s3736] sm:$0xff]
        %v3738 = vld [vmem:[%s3736 + $0x8] sm:$0xff]
        %v3739 = vld [vmem:[%s3736 + $0x10] sm:$0xff]
        %v3740 = vld [vmem:[%s3736 + $0x18] sm:$0xff]
        %v3742 = vsel %vm392, %v3699, 0
        %v3745 = vsel %vm392, %v3700, 0
        %v3748 = vsel %vm392, %v3701, 0
        %v3751 = vsel %vm392, %v3702, 0
        %v3754 = vsel %vm392, %v3703, 0
        %v3757 = vsel %vm392, %v3704, 0
        %v3760 = vsel %vm392, %v3705, 0
        %v3763 = vsel %vm392, %v3706, 0
        %3765 = vmatprep.subr.mxu0 0.0
        %3766 = vmatpush1.msra.mxu0 %v3737
        %3767 = vmatprep.subr.mxu0 0.0
        %3768 = vmatpush1.msra.mxu0 %v3738
        %3769 = vmatprep.subr.mxu0 0.0
        %3770 = vmatpush1.msra.mxu0 %v3739
        %3771 = vmatprep.subr.mxu0 0.0
        %3772 = vmatpush1.msra.mxu0 %v3740
        %3773 = vmatprep.subr.mxu0 0.0
        %3774 = vmatpush1.msra.mxu0 0.0
        %3775 = vmatprep.subr.mxu0 0.0
        %3776 = vmatpush1.msra.mxu0 0.0
        %3777 = vmatprep.subr.mxu0 0.0
        %3778 = vmatpush1.msra.mxu0 0.0
        %3779 = vmatprep.subr.mxu0 0.0
        %3780 = vmatpush1.msra.mxu0 0.0
        %3781 = vmatprep.subr.mxu0 0.0
        %3782 = vmatpush1.msra.mxu0 0.0
        %3783 = vmatprep.subr.mxu0 0.0
        %3784 = vmatpush1.msra.mxu0 0.0
        %3785 = vmatprep.subr.mxu0 0.0
        %3786 = vmatpush1.msra.mxu0 0.0
        %3787 = vmatprep.subr.mxu0 0.0
        %3788 = vmatpush1.msra.mxu0 0.0
        %3789 = vmatprep.subr.mxu0 0.0
        %3790 = vmatpush1.msra.mxu0 0.0
        %3791 = vmatprep.subr.mxu0 0.0
        %3792 = vmatpush1.msra.mxu0 0.0
        %3793 = vmatprep.subr.mxu0 0.0
        %3794 = vmatpush1.msra.mxu0 0.0
        %3795 = vmatprep.subr.mxu0 0.0
        %3796 = vmatpush1.msra.mxu0 0.0
        %3797 = vmatprep.subr.mxu0 0.0
        %3798 = vmatpush1.msra.mxu0 0.0
        %3799 = vmatprep.subr.mxu0 0.0
        %3800 = vmatpush1.msra.mxu0 0.0
        %3801 = vmatprep.subr.mxu0 0.0
        %3802 = vmatpush1.msra.mxu0 0.0
        %3803 = vmatprep.subr.mxu0 0.0
        %3804 = vmatpush1.msra.mxu0 0.0
        %3805 = vmatprep.subr.mxu0 0.0
        %3806 = vmatpush1.msra.mxu0 0.0
        %3807 = vmatprep.subr.mxu0 0.0
        %3808 = vmatpush1.msra.mxu0 0.0
        %3809 = vmatprep.subr.mxu0 0.0
        %3810 = vmatpush1.msra.mxu0 0.0
        %3811 = vmatprep.subr.mxu0 0.0
        %3812 = vmatpush1.msra.mxu0 0.0
        %3813 = vmatprep.subr.mxu0 0.0
        %3814 = vmatpush1.msra.mxu0 0.0
        %3815 = vmatprep.subr.mxu0 0.0
        %3816 = vmatpush1.msra.mxu0 0.0
        %3817 = vmatprep.subr.mxu0 0.0
        %3818 = vmatpush1.msra.mxu0 0.0
        %3819 = vmatprep.subr.mxu0 0.0
        %3820 = vmatpush1.msra.mxu0 0.0
        %3821 = vmatprep.subr.mxu0 0.0
        %3822 = vmatpush1.msra.mxu0 0.0
        %3823 = vmatprep.subr.mxu0 0.0
        %3824 = vmatpush1.msra.mxu0 0.0
        %3825 = vmatprep.subr.mxu0 0.0
        %3826 = vmatpush1.msra.mxu0 0.0
        %3827 = vmatprep.subr.mxu0 0.0
        %3828 = vmatpush1.msra.mxu0 0.0
        %3829 = vmatprep.mubr.f32.mxu0 0.0
        %3830 = vmatmul.mubr.f32.gmra.mrb[0].mxu0 %v3742
        %v3831 = vpop.f32.mrb[0].mxu0
        %v3832 = vadd.f32 0.0, %v3831
        %v3833 = vpop.f32.mrb[0].mxu0
        %3834 = vmatprep.mubr.f32.mxu0 0.0
        %3835 = vmatmul.mubr.f32.gmra.mrb[0].mxu0 %v3745
        %v3836 = vpop.f32.mrb[0].mxu0
        %v3837 = vadd.f32 0.0, %v3836
        %v3838 = vpop.f32.mrb[0].mxu0
        %3839 = vmatprep.mubr.f32.mxu0 0.0
        %3840 = vmatmul.mubr.f32.gmra.mrb[0].mxu0 %v3748
        %v3841 = vpop.f32.mrb[0].mxu0
        %v3842 = vadd.f32 0.0, %v3841
        %v3843 = vpop.f32.mrb[0].mxu0
        %3844 = vmatprep.mubr.f32.mxu0 0.0
        %3845 = vmatmul.mubr.f32.gmra.mrb[0].mxu0 %v3751
        %v3846 = vpop.f32.mrb[0].mxu0
        %v3847 = vadd.f32 0.0, %v3846
        %v3848 = vpop.f32.mrb[0].mxu0
        %3849 = vmatprep.mubr.f32.mxu0 0.0
        %3850 = vmatmul.mubr.f32.gmra.mrb[0].mxu0 %v3754
        %v3851 = vpop.f32.mrb[0].mxu0
        %v3852 = vadd.f32 0.0, %v3851
        %v3853 = vpop.f32.mrb[0].mxu0
        %3854 = vmatprep.mubr.f32.mxu0 0.0
        %3855 = vmatmul.mubr.f32.gmra.mrb[0].mxu0 %v3757
        %v3856 = vpop.f32.mrb[0].mxu0
        %v3857 = vadd.f32 0.0, %v3856
        %v3858 = vpop.f32.mrb[0].mxu0
        %3859 = vmatprep.mubr.f32.mxu0 0.0
        %3860 = vmatmul.mubr.f32.gmra.mrb[0].mxu0 %v3760
        %v3861 = vpop.f32.mrb[0].mxu0
        %v3862 = vadd.f32 0.0, %v3861
        %v3863 = vpop.f32.mrb[0].mxu0
        %3864 = vmatprep.mubr.f32.mxu0 0.0
        %3865 = vmatmul.mubr.f32.gmra.mrb[0].mxu0 %v3763
        %v3866 = vpop.f32.mrb[0].mxu0
        %v3867 = vadd.f32 0.0, %v3866
        %v3868 = vpop.f32.mrb[0].mxu0
        %3869 = vdwg.mxu0
        %v3871 = vsel %vm392, %v3715, 0
        %v3874 = vsel %vm392, %v3716, 0
        %v3877 = vsel %vm392, %v3717, 0
        %v3880 = vsel %vm392, %v3718, 0
        %v3883 = vsel %vm392, %v3719, 0
        %v3886 = vsel %vm392, %v3720, 0
        %v3889 = vsel %vm392, %v3721, 0
        %v3892 = vsel %vm392, %v3722, 0
        %3894 = vmatprep.subr.mxu0 0.0
        %3895 = vmatpush1.msra.mxu0 %v3732
        %3896 = vmatprep.subr.mxu0 0.0
        %3897 = vmatpush1.msra.mxu0 %v3733
        %3898 = vmatprep.subr.mxu0 0.0
        %3899 = vmatpush1.msra.mxu0 %v3734
        %3900 = vmatprep.subr.mxu0 0.0
        %3901 = vmatpush1.msra.mxu0 %v3735
        %3902 = vmatprep.subr.mxu0 0.0
        %3903 = vmatpush1.msra.mxu0 0.0
        %3904 = vmatprep.subr.mxu0 0.0
        %3905 = vmatpush1.msra.mxu0 0.0
        %3906 = vmatprep.subr.mxu0 0.0
        %3907 = vmatpush1.msra.mxu0 0.0
        %3908 = vmatprep.subr.mxu0 0.0
        %3909 = vmatpush1.msra.mxu0 0.0
        %3910 = vmatprep.subr.mxu0 0.0
        %3911 = vmatpush1.msra.mxu0 0.0
        %3912 = vmatprep.subr.mxu0 0.0
        %3913 = vmatpush1.msra.mxu0 0.0
        %3914 = vmatprep.subr.mxu0 0.0
        %3915 = vmatpush1.msra.mxu0 0.0
        %3916 = vmatprep.subr.mxu0 0.0
        %3917 = vmatpush1.msra.mxu0 0.0
        %3918 = vmatprep.subr.mxu0 0.0
        %3919 = vmatpush1.msra.mxu0 0.0
        %3920 = vmatprep.subr.mxu0 0.0
        %3921 = vmatpush1.msra.mxu0 0.0
        %3922 = vmatprep.subr.mxu0 0.0
        %3923 = vmatpush1.msra.mxu0 0.0
        %3924 = vmatprep.subr.mxu0 0.0
        %3925 = vmatpush1.msra.mxu0 0.0
        %3926 = vmatprep.subr.mxu0 0.0
        %3927 = vmatpush1.msra.mxu0 0.0
        %3928 = vmatprep.subr.mxu0 0.0
        %3929 = vmatpush1.msra.mxu0 0.0
        %3930 = vmatprep.subr.mxu0 0.0
        %3931 = vmatpush1.msra.mxu0 0.0
        %3932 = vmatprep.subr.mxu0 0.0
        %3933 = vmatpush1.msra.mxu0 0.0
        %3934 = vmatprep.subr.mxu0 0.0
        %3935 = vmatpush1.msra.mxu0 0.0
        %3936 = vmatprep.subr.mxu0 0.0
        %3937 = vmatpush1.msra.mxu0 0.0
        %3938 = vmatprep.subr.mxu0 0.0
        %3939 = vmatpush1.msra.mxu0 0.0
        %3940 = vmatprep.subr.mxu0 0.0
        %3941 = vmatpush1.msra.mxu0 0.0
        %3942 = vmatprep.subr.mxu0 0.0
        %3943 = vmatpush1.msra.mxu0 0.0
        %3944 = vmatprep.subr.mxu0 0.0
        %3945 = vmatpush1.msra.mxu0 0.0
        %3946 = vmatprep.subr.mxu0 0.0
        %3947 = vmatpush1.msra.mxu0 0.0
        %3948 = vmatprep.subr.mxu0 0.0
        %3949 = vmatpush1.msra.mxu0 0.0
        %3950 = vmatprep.subr.mxu0 0.0
        %3951 = vmatpush1.msra.mxu0 0.0
        %3952 = vmatprep.subr.mxu0 0.0
        %3953 = vmatpush1.msra.mxu0 0.0
        %3954 = vmatprep.subr.mxu0 0.0
        %3955 = vmatpush1.msra.mxu0 0.0
        %3956 = vmatprep.subr.mxu0 0.0
        %3957 = vmatpush1.msra.mxu0 0.0
        %3958 = vmatprep.mubr.f32.mxu0 0.0
        %3959 = vmatmul.mubr.f32.gmra.mrb[0].mxu0 %v3871
        %v3960 = vpop.f32.mrb[0].mxu0
        %v3961 = vadd.f32 %v3832, %v3960
        %v3962 = vpop.f32.mrb[0].mxu0
        %3963 = vmatprep.mubr.f32.mxu0 0.0
        %3964 = vmatmul.mubr.f32.gmra.mrb[0].mxu0 %v3874
        %v3965 = vpop.f32.mrb[0].mxu0
        %v3966 = vadd.f32 %v3837, %v3965
        %v3967 = vpop.f32.mrb[0].mxu0
        %3968 = vmatprep.mubr.f32.mxu0 0.0
        %3969 = vmatmul.mubr.f32.gmra.mrb[0].mxu0 %v3877
        %v3970 = vpop.f32.mrb[0].mxu0
        %v3971 = vadd.f32 %v3842, %v3970
        %v3972 = vpop.f32.mrb[0].mxu0
        %3973 = vmatprep.mubr.f32.mxu0 0.0
        %3974 = vmatmul.mubr.f32.gmra.mrb[0].mxu0 %v3880
        %v3975 = vpop.f32.mrb[0].mxu0
        %v3976 = vadd.f32 %v3847, %v3975
        %v3977 = vpop.f32.mrb[0].mxu0
        %3978 = vmatprep.mubr.f32.mxu0 0.0
        %3979 = vmatmul.mubr.f32.gmra.mrb[0].mxu0 %v3883
        %v3980 = vpop.f32.mrb[0].mxu0
        %v3981 = vadd.f32 %v3852, %v3980
        %v3982 = vpop.f32.mrb[0].mxu0
        %3983 = vmatprep.mubr.f32.mxu0 0.0
        %3984 = vmatmul.mubr.f32.gmra.mrb[0].mxu0 %v3886
        %v3985 = vpop.f32.mrb[0].mxu0
        %v3986 = vadd.f32 %v3857, %v3985
        %v3987 = vpop.f32.mrb[0].mxu0
        %3988 = vmatprep.mubr.f32.mxu0 0.0
        %3989 = vmatmul.mubr.f32.gmra.mrb[0].mxu0 %v3889
        %v3990 = vpop.f32.mrb[0].mxu0
        %v3991 = vadd.f32 %v3862, %v3990
        %v3992 = vpop.f32.mrb[0].mxu0
        %3993 = vmatprep.mubr.f32.mxu0 0.0
        %3994 = vmatmul.mubr.f32.gmra.mrb[0].mxu0 %v3892
        %v3995 = vpop.f32.mrb[0].mxu0
        %v3996 = vadd.f32 %v3867, %v3995
        %v3997 = vpop.f32.mrb[0].mxu0
        %3998 = vdwg.mxu0
        %s3999 = scalar_lea.vmem [#allocation7], 256
        %v4000 = vld [vmem:[%s3999] sm:$0xff]
        %v4001 = vld [vmem:[%s3999 + $0x8] sm:$0xff]
        %v4002 = vld [vmem:[%s3999 + $0x10] sm:$0xff]
        %v4003 = vld [vmem:[%s3999 + $0x18] sm:$0xff]
        %v4005 = vsel %vm392, %v3723, 0
        %v4008 = vsel %vm392, %v3724, 0
        %v4011 = vsel %vm392, %v3725, 0
        %v4014 = vsel %vm392, %v3726, 0
        %v4017 = vsel %vm392, %v3727, 0
        %v4020 = vsel %vm392, %v3728, 0
        %v4023 = vsel %vm392, %v3729, 0
        %v4026 = vsel %vm392, %v3730, 0
        %4028 = vmatprep.subr.mxu0 0.0
        %4029 = vmatpush1.msra.mxu0 %v4000
        %4030 = vmatprep.subr.mxu0 0.0
        %4031 = vmatpush1.msra.mxu0 %v4001
        %4032 = vmatprep.subr.mxu0 0.0
        %4033 = vmatpush1.msra.mxu0 %v4002
        %4034 = vmatprep.subr.mxu0 0.0
        %4035 = vmatpush1.msra.mxu0 %v4003
        %4036 = vmatprep.subr.mxu0 0.0
        %4037 = vmatpush1.msra.mxu0 0.0
        %4038 = vmatprep.subr.mxu0 0.0
        %4039 = vmatpush1.msra.mxu0 0.0
        %4040 = vmatprep.subr.mxu0 0.0
        %4041 = vmatpush1.msra.mxu0 0.0
        %4042 = vmatprep.subr.mxu0 0.0
        %4043 = vmatpush1.msra.mxu0 0.0
        %4044 = vmatprep.subr.mxu0 0.0
        %4045 = vmatpush1.msra.mxu0 0.0
        %4046 = vmatprep.subr.mxu0 0.0
        %4047 = vmatpush1.msra.mxu0 0.0
        %4048 = vmatprep.subr.mxu0 0.0
        %4049 = vmatpush1.msra.mxu0 0.0
        %4050 = vmatprep.subr.mxu0 0.0
        %4051 = vmatpush1.msra.mxu0 0.0
        %4052 = vmatprep.subr.mxu0 0.0
        %4053 = vmatpush1.msra.mxu0 0.0
        %4054 = vmatprep.subr.mxu0 0.0
        %4055 = vmatpush1.msra.mxu0 0.0
        %4056 = vmatprep.subr.mxu0 0.0
        %4057 = vmatpush1.msra.mxu0 0.0
        %4058 = vmatprep.subr.mxu0 0.0
        %4059 = vmatpush1.msra.mxu0 0.0
        %4060 = vmatprep.subr.mxu0 0.0
        %4061 = vmatpush1.msra.mxu0 0.0
        %4062 = vmatprep.subr.mxu0 0.0
        %4063 = vmatpush1.msra.mxu0 0.0
        %4064 = vmatprep.subr.mxu0 0.0
        %4065 = vmatpush1.msra.mxu0 0.0
        %4066 = vmatprep.subr.mxu0 0.0
        %4067 = vmatpush1.msra.mxu0 0.0
        %4068 = vmatprep.subr.mxu0 0.0
        %4069 = vmatpush1.msra.mxu0 0.0
        %4070 = vmatprep.subr.mxu0 0.0
        %4071 = vmatpush1.msra.mxu0 0.0
        %4072 = vmatprep.subr.mxu0 0.0
        %4073 = vmatpush1.msra.mxu0 0.0
        %4074 = vmatprep.subr.mxu0 0.0
        %4075 = vmatpush1.msra.mxu0 0.0
        %4076 = vmatprep.subr.mxu0 0.0
        %4077 = vmatpush1.msra.mxu0 0.0
        %4078 = vmatprep.subr.mxu0 0.0
        %4079 = vmatpush1.msra.mxu0 0.0
        %4080 = vmatprep.subr.mxu0 0.0
        %4081 = vmatpush1.msra.mxu0 0.0
        %4082 = vmatprep.subr.mxu0 0.0
        %4083 = vmatpush1.msra.mxu0 0.0
        %4084 = vmatprep.subr.mxu0 0.0
        %4085 = vmatpush1.msra.mxu0 0.0
        %4086 = vmatprep.subr.mxu0 0.0
        %4087 = vmatpush1.msra.mxu0 0.0
        %4088 = vmatprep.subr.mxu0 0.0
        %4089 = vmatpush1.msra.mxu0 0.0
        %4090 = vmatprep.subr.mxu0 0.0
        %4091 = vmatpush1.msra.mxu0 0.0
        %4092 = vmatprep.mubr.f32.mxu0 0.0
        %4093 = vmatmul.mubr.f32.gmra.mrb[0].mxu0 %v4005
        %v4094 = vpop.f32.mrb[0].mxu0
        %v4095 = vadd.f32 0.0, %v4094
        %v4096 = vpop.f32.mrb[0].mxu0
        %4097 = vmatprep.mubr.f32.mxu0 0.0
        %4098 = vmatmul.mubr.f32.gmra.mrb[0].mxu0 %v4008
        %v4099 = vpop.f32.mrb[0].mxu0
        %v4100 = vadd.f32 0.0, %v4099
        %v4101 = vpop.f32.mrb[0].mxu0
        %4102 = vmatprep.mubr.f32.mxu0 0.0
        %4103 = vmatmul.mubr.f32.gmra.mrb[0].mxu0 %v4011
        %v4104 = vpop.f32.mrb[0].mxu0
        %v4105 = vadd.f32 0.0, %v4104
        %v4106 = vpop.f32.mrb[0].mxu0
        %4107 = vmatprep.mubr.f32.mxu0 0.0
        %4108 = vmatmul.mubr.f32.gmra.mrb[0].mxu0 %v4014
        %v4109 = vpop.f32.mrb[0].mxu0
        %v4110 = vadd.f32 0.0, %v4109
        %v4111 = vpop.f32.mrb[0].mxu0
        %4112 = vmatprep.mubr.f32.mxu0 0.0
        %4113 = vmatmul.mubr.f32.gmra.mrb[0].mxu0 %v4017
        %v4114 = vpop.f32.mrb[0].mxu0
        %v4115 = vadd.f32 0.0, %v4114
        %v4116 = vpop.f32.mrb[0].mxu0
        %4117 = vmatprep.mubr.f32.mxu0 0.0
        %4118 = vmatmul.mubr.f32.gmra.mrb[0].mxu0 %v4020
        %v4119 = vpop.f32.mrb[0].mxu0
        %v4120 = vadd.f32 0.0, %v4119
        %v4121 = vpop.f32.mrb[0].mxu0
        %4122 = vmatprep.mubr.f32.mxu0 0.0
        %4123 = vmatmul.mubr.f32.gmra.mrb[0].mxu0 %v4023
        %v4124 = vpop.f32.mrb[0].mxu0
        %v4125 = vadd.f32 0.0, %v4124
        %v4126 = vpop.f32.mrb[0].mxu0
        %4127 = vmatprep.mubr.f32.mxu0 0.0
        %4128 = vmatmul.mubr.f32.gmra.mrb[0].mxu0 %v4026
        %v4129 = vpop.f32.mrb[0].mxu0
        %v4130 = vadd.f32 0.0, %v4129
        %v4131 = vpop.f32.mrb[0].mxu0
        %4132 = vdwg.mxu0
        %v4133 = vadd.f32 %v3961, %v4095
        %v4134 = vadd.f32 %v3966, %v4100
        %v4135 = vadd.f32 %v3971, %v4105
        %v4136 = vadd.f32 %v3976, %v4110
        %v4137 = vadd.f32 %v3981, %v4115
        %v4138 = vadd.f32 %v3986, %v4120
        %v4139 = vadd.f32 %v3991, %v4125
        %v4140 = vadd.f32 %v3996, %v4130
        %v4141 = vld [vmem:[%s6 + $0x2] sm:$0x1]
        %v4142 = vlaneseq
        %v4143 = vshrl.u32 %v4142, 7
        %v4144 = vsub.s32 0, %v4143
        %v4145 = vrot.slane %v4141, %v4144
        %v4146 = vadd.f32 %v4133, %v4145
        %v4147 = vadd.f32 %v4134, %v4145
        %v4148 = vadd.f32 %v4135, %v4145
        %v4149 = vadd.f32 %v4136, %v4145
        %v4150 = vadd.f32 %v4137, %v4145
        %v4151 = vadd.f32 %v4138, %v4145
        %v4152 = vadd.f32 %v4139, %v4145
        %v4153 = vadd.f32 %v4140, %v4145
        %v4154 = vxor.u32 %v4146, 2147483648
        %v4155 = vxor.u32 %v4147, 2147483648
        %v4156 = vxor.u32 %v4148, 2147483648
        %v4157 = vxor.u32 %v4149, 2147483648
        %v4158 = vxor.u32 %v4150, 2147483648
        %v4159 = vxor.u32 %v4151, 2147483648
        %v4160 = vxor.u32 %v4152, 2147483648
        %v4161 = vxor.u32 %v4153, 2147483648
        %v4162 = vmul.f32 %v4154, 1.442695
        %v4163 = vpow.pop %v4162
        %v4164 = vmul.f32 %v4155, 1.442695
        %v4165 = vpow.pop %v4164
        %v4166 = vmul.f32 %v4156, 1.442695
        %v4167 = vpow.pop %v4166
        %v4168 = vmul.f32 %v4157, 1.442695
        %v4169 = vpow.pop %v4168
        %v4170 = vmul.f32 %v4158, 1.442695
        %v4171 = vpow.pop %v4170
        %v4172 = vmul.f32 %v4159, 1.442695
        %v4173 = vpow.pop %v4172
        %v4174 = vmul.f32 %v4160, 1.442695
        %v4175 = vpow.pop %v4174
        %v4176 = vmul.f32 %v4161, 1.442695
        %v4177 = vpow.pop %v4176
        %v4178 = vadd.f32 %v4163, 1.0
        %v4179 = vadd.f32 %v4165, 1.0
        %v4180 = vadd.f32 %v4167, 1.0
        %v4181 = vadd.f32 %v4169, 1.0
        %v4182 = vadd.f32 %v4171, 1.0
        %v4183 = vadd.f32 %v4173, 1.0
        %v4184 = vadd.f32 %v4175, 1.0
        %v4185 = vadd.f32 %v4177, 1.0
        %v4186 = vrcp.pop %v4178
        %v4187 = vmul.f32 1.0, %v4186
        %v4188 = vrcp.pop %v4179
        %v4189 = vmul.f32 1.0, %v4188
        %v4190 = vrcp.pop %v4180
        %v4191 = vmul.f32 1.0, %v4190
        %v4192 = vrcp.pop %v4181
        %v4193 = vmul.f32 1.0, %v4192
        %v4194 = vrcp.pop %v4182
        %v4195 = vmul.f32 1.0, %v4194
        %v4196 = vrcp.pop %v4183
        %v4197 = vmul.f32 1.0, %v4196
        %v4198 = vrcp.pop %v4184
        %v4199 = vmul.f32 1.0, %v4198
        %v4200 = vrcp.pop %v4185
        %v4201 = vmul.f32 1.0, %v4200
        %v4202 = vtanh.pop %v4146
        %v4203 = vtanh.pop %v4147
        %v4204 = vtanh.pop %v4148
        %v4205 = vtanh.pop %v4149
        %v4206 = vtanh.pop %v4150
        %v4207 = vtanh.pop %v4151
        %v4208 = vtanh.pop %v4152
        %v4209 = vtanh.pop %v4153
        %4218 = vrot.lane.b32.xlu0 %v4202, 96
        %v4219 = vpop.permute.xlu0 %4218
        %4220 = vrot.lane.b32.xlu0 %v4203, 96
        %v4221 = vpop.permute.xlu0 %4220
        %4222 = vrot.lane.b32.xlu0 %v4204, 96
        %v4223 = vpop.permute.xlu0 %4222
        %4224 = vrot.lane.b32.xlu0 %v4205, 96
        %v4225 = vpop.permute.xlu0 %4224
        %4226 = vrot.lane.b32.xlu0 %v4206, 96
        %v4227 = vpop.permute.xlu0 %4226
        %4228 = vrot.lane.b32.xlu0 %v4207, 96
        %v4229 = vpop.permute.xlu0 %4228
        %4230 = vrot.lane.b32.xlu0 %v4208, 96
        %v4231 = vpop.permute.xlu0 %4230
        %4232 = vrot.lane.b32.xlu0 %v4209, 96
        %v4233 = vpop.permute.xlu0 %4232
        %v4242 = vmul.f32 %v4187, %v4219
        %v4243 = vmul.f32 %v4189, %v4221
        %v4244 = vmul.f32 %v4191, %v4223
        %v4245 = vmul.f32 %v4193, %v4225
        %v4246 = vmul.f32 %v4195, %v4227
        %v4247 = vmul.f32 %v4197, %v4229
        %v4248 = vmul.f32 %v4199, %v4231
        %v4249 = vmul.f32 %v4201, %v4233
        %s4250 = scalar_lea.vmem [#allocation8], 64
        %v4251 = vld [vmem:[%s4250] sm:$0xff]
        %v4252 = vld [vmem:[%s4250 + $0x8] sm:$0xff]
        %v4253 = vld [vmem:[%s4250 + $0x10] sm:$0xff]
        %v4254 = vld [vmem:[%s4250 + $0x18] sm:$0xff]
        %v4255 = vld [vmem:[%s8 + $0x2] sm:$0x1]
        %v4256 = vlaneseq
        %v4257 = vshrl.u32 %v4256, 7
        %v4258 = vsub.s32 0, %v4257
        %v4259 = vrot.slane %v4255, %v4258
        %v4261 = vsel %vm392, %v4242, 0
        %v4264 = vsel %vm392, %v4243, 0
        %v4267 = vsel %vm392, %v4244, 0
        %v4270 = vsel %vm392, %v4245, 0
        %v4273 = vsel %vm392, %v4246, 0
        %v4276 = vsel %vm392, %v4247, 0
        %v4279 = vsel %vm392, %v4248, 0
        %v4282 = vsel %vm392, %v4249, 0
        %4284 = vmatprep.subr.mxu0 0.0
        %4285 = vmatpush1.msra.mxu0 %v4251
        %4286 = vmatprep.subr.mxu0 0.0
        %4287 = vmatpush1.msra.mxu0 %v4252
        %4288 = vmatprep.subr.mxu0 0.0
        %4289 = vmatpush1.msra.mxu0 %v4253
        %4290 = vmatprep.subr.mxu0 0.0
        %4291 = vmatpush1.msra.mxu0 %v4254
        %4292 = vmatprep.subr.mxu0 0.0
        %4293 = vmatpush1.msra.mxu0 0.0
        %4294 = vmatprep.subr.mxu0 0.0
        %4295 = vmatpush1.msra.mxu0 0.0
        %4296 = vmatprep.subr.mxu0 0.0
        %4297 = vmatpush1.msra.mxu0 0.0
        %4298 = vmatprep.subr.mxu0 0.0
        %4299 = vmatpush1.msra.mxu0 0.0
        %4300 = vmatprep.subr.mxu0 0.0
        %4301 = vmatpush1.msra.mxu0 0.0
        %4302 = vmatprep.subr.mxu0 0.0
        %4303 = vmatpush1.msra.mxu0 0.0
        %4304 = vmatprep.subr.mxu0 0.0
        %4305 = vmatpush1.msra.mxu0 0.0
        %4306 = vmatprep.subr.mxu0 0.0
        %4307 = vmatpush1.msra.mxu0 0.0
        %4308 = vmatprep.subr.mxu0 0.0
        %4309 = vmatpush1.msra.mxu0 0.0
        %4310 = vmatprep.subr.mxu0 0.0
        %4311 = vmatpush1.msra.mxu0 0.0
        %4312 = vmatprep.subr.mxu0 0.0
        %4313 = vmatpush1.msra.mxu0 0.0
        %4314 = vmatprep.subr.mxu0 0.0
        %4315 = vmatpush1.msra.mxu0 0.0
        %4316 = vmatprep.subr.mxu0 0.0
        %4317 = vmatpush1.msra.mxu0 0.0
        %4318 = vmatprep.subr.mxu0 0.0
        %4319 = vmatpush1.msra.mxu0 0.0
        %4320 = vmatprep.subr.mxu0 0.0
        %4321 = vmatpush1.msra.mxu0 0.0
        %4322 = vmatprep.subr.mxu0 0.0
        %4323 = vmatpush1.msra.mxu0 0.0
        %4324 = vmatprep.subr.mxu0 0.0
        %4325 = vmatpush1.msra.mxu0 0.0
        %4326 = vmatprep.subr.mxu0 0.0
        %4327 = vmatpush1.msra.mxu0 0.0
        %4328 = vmatprep.subr.mxu0 0.0
        %4329 = vmatpush1.msra.mxu0 0.0
        %4330 = vmatprep.subr.mxu0 0.0
        %4331 = vmatpush1.msra.mxu0 0.0
        %4332 = vmatprep.subr.mxu0 0.0
        %4333 = vmatpush1.msra.mxu0 0.0
        %4334 = vmatprep.subr.mxu0 0.0
        %4335 = vmatpush1.msra.mxu0 0.0
        %4336 = vmatprep.subr.mxu0 0.0
        %4337 = vmatpush1.msra.mxu0 0.0
        %4338 = vmatprep.subr.mxu0 0.0
        %4339 = vmatpush1.msra.mxu0 0.0
        %4340 = vmatprep.subr.mxu0 0.0
        %4341 = vmatpush1.msra.mxu0 0.0
        %4342 = vmatprep.subr.mxu0 0.0
        %4343 = vmatpush1.msra.mxu0 0.0
        %4344 = vmatprep.subr.mxu0 0.0
        %4345 = vmatpush1.msra.mxu0 0.0
        %4346 = vmatprep.subr.mxu0 0.0
        %4347 = vmatpush1.msra.mxu0 0.0
        %4348 = vmatprep.mubr.f32.mxu0 0.0
        %4349 = vmatmul.mubr.f32.gmra.mrb[0].mxu0 %v4261
        %v4350 = vpop.f32.mrb[0].mxu0
        %v4351 = vadd.f32 %v4259, %v4350
        %v4352 = vpop.f32.mrb[0].mxu0
        %4353 = vmatprep.mubr.f32.mxu0 0.0
        %4354 = vmatmul.mubr.f32.gmra.mrb[0].mxu0 %v4264
        %v4355 = vpop.f32.mrb[0].mxu0
        %v4356 = vadd.f32 %v4259, %v4355
        %v4357 = vpop.f32.mrb[0].mxu0
        %4358 = vmatprep.mubr.f32.mxu0 0.0
        %4359 = vmatmul.mubr.f32.gmra.mrb[0].mxu0 %v4267
        %v4360 = vpop.f32.mrb[0].mxu0
        %v4361 = vadd.f32 %v4259, %v4360
        %v4362 = vpop.f32.mrb[0].mxu0
        %4363 = vmatprep.mubr.f32.mxu0 0.0
        %4364 = vmatmul.mubr.f32.gmra.mrb[0].mxu0 %v4270
        %v4365 = vpop.f32.mrb[0].mxu0
        %v4366 = vadd.f32 %v4259, %v4365
        %v4367 = vpop.f32.mrb[0].mxu0
        %4368 = vmatprep.mubr.f32.mxu0 0.0
        %4369 = vmatmul.mubr.f32.gmra.mrb[0].mxu0 %v4273
        %v4370 = vpop.f32.mrb[0].mxu0
        %v4371 = vadd.f32 %v4259, %v4370
        %v4372 = vpop.f32.mrb[0].mxu0
        %4373 = vmatprep.mubr.f32.mxu0 0.0
        %4374 = vmatmul.mubr.f32.gmra.mrb[0].mxu0 %v4276
        %v4375 = vpop.f32.mrb[0].mxu0
        %v4376 = vadd.f32 %v4259, %v4375
        %v4377 = vpop.f32.mrb[0].mxu0
        %4378 = vmatprep.mubr.f32.mxu0 0.0
        %4379 = vmatmul.mubr.f32.gmra.mrb[0].mxu0 %v4279
        %v4380 = vpop.f32.mrb[0].mxu0
        %v4381 = vadd.f32 %v4259, %v4380
        %v4382 = vpop.f32.mrb[0].mxu0
        %4383 = vmatprep.mubr.f32.mxu0 0.0
        %4384 = vmatmul.mubr.f32.gmra.mrb[0].mxu0 %v4282
        %v4385 = vpop.f32.mrb[0].mxu0
        %v4386 = vadd.f32 %v4259, %v4385
        %v4387 = vpop.f32.mrb[0].mxu0
        %4388 = vdwg.mxu0
        %v4389 = vadd.f32 %v3008, %v4351
        %v4390 = vadd.f32 %v3009, %v4356
        %v4391 = vadd.f32 %v3010, %v4361
        %v4392 = vadd.f32 %v3011, %v4366
        %v4393 = vadd.f32 %v3012, %v4371
        %v4394 = vadd.f32 %v3013, %v4376
        %v4395 = vadd.f32 %v3014, %v4381
        %v4396 = vadd.f32 %v3015, %v4386
        %4397 = vst.msk [vmem:[%s391] sm:$0xff] %vm392, %v4389
        %4398 = vst.msk [vmem:[%s391 + $0x8] sm:$0xff] %vm392, %v4390
        %4399 = vst.msk [vmem:[%s391 + $0x10] sm:$0xff] %vm392, %v4391
        %4400 = vst.msk [vmem:[%s391 + $0x18] sm:$0xff] %vm392, %v4392
        %4401 = vst.msk [vmem:[%s391 + $0x20] sm:$0xff] %vm392, %v4393
        %4402 = vst.msk [vmem:[%s391 + $0x28] sm:$0xff] %vm392, %v4394
        %4403 = vst.msk [vmem:[%s391 + $0x30] sm:$0xff] %vm392, %v4395
        %4404 = vst.msk [vmem:[%s391 + $0x38] sm:$0xff] %vm392, %v4396
        %p4405 = scmp.lt.s32.totalorder %s23, 1
        %s4406 = scalar_select %p4405, %s23, 1
        %s4407 = smul.addr %s4406, 8
        %s4408 = smul.addr %s4407, 8
        %s4409 = scalar_lea.vmem %s9, %s4408
        // Predicated region
        $region73: #{tpu_custom_call.1} parent=55 // pred_check
          %p4410 = pneg %p235
        $region74: #{tpu_custom_call.1} parent=55 // pred_check_branch
          %4412 = sbr.rel (%p4410) target = $region76
        $region75: #{tpu_custom_call.1} parent=55 // pred_region
          _
        $region76: #{tpu_custom_call.1} parent=55 // pred_fallthru
          _
      $region56: #{tpu_custom_call.1} parent=5 // pred_fallthru
        _
      %p4413 = scmp.le.s32.totalorder 2, %s18
      // Predicated region
      $region77: #{tpu_custom_call.1} parent=5 // pred_check
        %p4414 = pneg %p4413
      $region78: #{tpu_custom_call.1} parent=5 // pred_check_branch
        %4416 = sbr.rel (%p4414) target = $region80
      $region79: #{tpu_custom_call.1} parent=5 // pred_region
        %s4417 = ssub.s32 %s18, 2
        // Predicated region
        $region81: #{tpu_custom_call.1} parent=79 // pred_check
          %p4418 = pneg %p241
        $region82: #{tpu_custom_call.1} parent=79 // pred_check_branch
          %4420 = sbr.rel (%p4418) target = $region84
        $region83: #{tpu_custom_call.1} parent=79 // pred_region
          %p4421 = scmp.lt.s32.totalorder %s24, 1
          %s4422 = scalar_select %p4421, %s24, 1
          %s4423 = smul.addr %s4422, 8
          %s4424 = smul.addr %s4423, 8
          %s4425 = scalar_lea.vmem %s9, %s4424
        $region84: #{tpu_custom_call.1} parent=79 // pred_fallthru
          _
      $region80: #{tpu_custom_call.1} parent=5 // pred_fallthru
        _
    $region6: #{tpu_custom_call.1} parent=1 // loop_footer
      %s22 = sadd.s32 1, %s18
    $region7: #{tpu_custom_call.1} parent=1 // loop_footer_branch
      %17 = sbr.rel target = $region3
    $region8: #{tpu_custom_call.1} parent=1 // loop_exit
      _
    %4426 = vsyncpa [#allocation4], 1
    %s4427 = scalar_lea.sflag [#allocation4], 1
    %4428 = vsyncpa %s4427, 1
    %4429 = vsyncpa [#allocation6], 1
    %4430 = vsyncpa [#allocation9], 1

</llo_original>
